<compile_context>
chip_gen: v6e
topology: v6e:2x2x1
jax: 0.10.0
libtpu: 0.0.40
codegen_flags: <defaults>
</compile_context>

<pallas_src>
import functools
import numpy as np

import jax
import jax.numpy as jnp
from jax.experimental import pallas as pl
from jax.experimental.pallas import tpu as pltpu

EPS = 1e-5  # PyTorch GroupNorm default eps


def _silu(x):
    return x * jax.nn.sigmoid(x)


# ----------------------------------------------------------------------------
# Fused UpBlock kernel: one grid step == one sample.
# Activation layout inside the kernel: (channels, Ho*Wo) -- spatial in lanes.
# ----------------------------------------------------------------------------
def upblock_kernel(x_ref, skip_ref, t_ref, u_ref,
                   w1_ref, g1_ref, b1_ref,
                   w2_ref, g2_ref, b2_ref,
                   w3_ref, g3_ref, b3_ref,
                   w4_ref, g4_ref, b4_ref,
                   ew_ref, eb_ref,
                   out_ref, *, Ho, Wo):
    f32 = jnp.float32
    bf16 = jnp.bfloat16
    P = Ho * Wo

    # Flattened spatial position p = oh*Wo + ow lives in the lane dim.
    # (float math: vector int div/mod is not guaranteed on the VPU; floor of an
    #  exact-valued f32 division is exact at these magnitudes.)
    p_idx = jax.lax.broadcasted_iota(jnp.int32, (1, P), 1).astype(f32)
    oh = jnp.floor(p_idx / Wo)
    ow = p_idx - oh * Wo

    # 3x3 halo validity masks, computed once and reused by all four convs.
    offsets = [(dh, dw) for dh in (-1, 0, 1) for dw in (-1, 0, 1)]

    def tap_mask(dh, dw):
        def _and(a, b):
            return b if a is None else jnp.logical_and(a, b)
        m = None
        if dh == -1:
            m = _and(m, oh > 0.5)
        if dh == 1:
            m = _and(m, oh < Ho - 1.5)
        if dw == -1:
            m = _and(m, ow > 0.5)
        if dw == 1:
            m = _and(m, ow < Wo - 1.5)
        return None if m is None else m.astype(f32)

    masks = [tap_mask(dh, dw) for dh, dw in offsets]

    def conv3x3(act, w_ref):
        # act: (cin, P) f32 ; w_ref: (cout, 9*cin) bf16  ->  (cout, P) f32.
        # tap(dh,dw)[c, p] = act[c, p + dh*Wo + dw] when the source pixel is in
        # bounds, else 0: lane roll (jnp.roll semantics) + border mask.
        taps = []
        for (dh, dw), m in zip(offsets, masks):
            s = dh * Wo + dw
            t = act if s == 0 else pltpu.roll(act, shift=(-s) % P, axis=1)
            if m is not None:
                t = t * m
            taps.append(t)
        patches = jnp.concatenate(taps, axis=0)               # (9*cin, P) f32
        return jnp.dot(w_ref[...], patches.astype(bf16),
                       preferred_element_type=f32)            # (cout, P) f32

    def gnorm(y, g_ref, b_ref):
        # GroupNorm(num_groups=1): per-sample stats over (C,H,W), per-channel affine.
        mean = jnp.mean(y)
        var = jnp.mean((y - mean) ** 2)
        return (y - mean) * jax.lax.rsqrt(var + EPS) * g_ref[...] + b_ref[...]

    # ---- bilinear x2 upsample (align_corners=True) as one MXU matmul ----
    up = jnp.dot(x_ref[...].astype(bf16), u_ref[...],
                 preferred_element_type=f32)                   # (Cx, P)

    # ---- torch.cat([skip_x, x], dim=1): stack channels in sublanes ----
    cat = jnp.concatenate([skip_ref[...], up], axis=0)         # (Cin, P)

    # ---- DoubleConv #1 (in -> in, residual): silu(x + GN(conv(silu(GN(conv(x)))))) ----
    h = conv3x3(cat, w1_ref)
    h = _silu(gnorm(h, g1_ref, b1_ref))
    h = conv3x3(h, w2_ref)
    h = _silu(cat + gnorm(h, g2_ref, b2_ref))

    # ---- DoubleConv #2 (in -> out, mid = in // 2): GN(conv(silu(GN(conv(x))))) ----
    h2 = conv3x3(h, w3_ref)
    h2 = _silu(gnorm(h2, g3_ref, b3_ref))
    h2 = conv3x3(h2, w4_ref)
    h2 = gnorm(h2, g4_ref, b4_ref)

    # ---- time embedding: Linear(SiLU(t)), broadcast over spatial ----
    t_row = _silu(t_ref[...])                                  # (1, E)
    emb = jnp.sum(ew_ref[...] * t_row, axis=1, keepdims=True) + eb_ref[...]  # (Cout, 1)

    out_ref[...] = (h2 + emb).astype(out_ref.dtype)


# ----------------------------------------------------------------------------
# Host-side helpers
# ----------------------------------------------------------------------------
def bilinear_matrix(n_in, n_out):
    """1-D interpolation matrix (n_out, n_in) for align_corners=True bilinear."""
    A = np.zeros((n_out, n_in), np.float32)
    if n_in == 1 or n_out == 1:
        A[:, 0] = 1.0
        return A
    src = np.arange(n_out) * (n_in - 1) / (n_out - 1)
    i0 = np.clip(np.floor(src).astype(np.int64), 0, n_in - 1)
    i1 = np.minimum(i0 + 1, n_in - 1)
    w1 = (src - i0).astype(np.float32)
    w0 = 1.0 - w1
    for o in range(n_out):
        A[o, i0[o]] += w0[o]
        A[o, i1[o]] += w1[o]
    return A


def upsample_matrix_T(h, w):
    """(H*W, Ho*Wo) bf16 operator: (C, H*W) @ U^T == bilinear x2 upsample."""
    u = np.kron(bilinear_matrix(h, 2 * h), bilinear_matrix(w, 2 * w))  # (Ho*Wo, H*W)
    return jnp.asarray(np.ascontiguousarray(u.T), dtype=jnp.bfloat16)


def init_params(key, in_ch, out_ch, emb_ch):
    mid = in_ch // 2
    ks = jax.random.split(key, 10)

    def conv_w(k, cin, cout):
        # (cout, kh, kw, cin) flattened to (cout, 9*cin); bf16 MXU operand.
        w = jax.random.normal(k, (cout, 3, 3, cin), jnp.float32) * 0.1
        return w.reshape(cout, 9 * cin).astype(jnp.bfloat16)

    def gn(k, c):
        k1, k2 = jax.random.split(k)
        g = 1.0 + 0.1 * jax.random.normal(k1, (c, 1), jnp.float32)
        b = 0.1 * jax.random.normal(k2, (c, 1), jnp.float32)
        return g, b

    p = {}
    p["dc1_w1"] = conv_w(ks[0], in_ch, in_ch)
    p["dc1_g1"], p["dc1_b1"] = gn(ks[1], in_ch)
    p["dc1_w2"] = conv_w(ks[2], in_ch, in_ch)
    p["dc1_g2"], p["dc1_b2"] = gn(ks[3], in_ch)
    p["dc2_w1"] = conv_w(ks[4], in_ch, mid)
    p["dc2_g1"], p["dc2_b1"] = gn(ks[5], mid)
    p["dc2_w2"] = conv_w(ks[6], mid, out_ch)
    p["dc2_g2"], p["dc2_b2"] = gn(ks[7], out_ch)
    p["emb_w"] = jax.random.normal(ks[8], (out_ch, emb_ch), jnp.float32) * 0.1
    p["emb_b"] = 0.1 * jax.random.normal(ks[9], (out_ch, 1), jnp.float32)
    return p


def upblock_forward(params, x_nchw, skip_nchw, t_emb):
    N, Cx, H, W = x_nchw.shape
    Cskip = skip_nchw.shape[1]
    Ho, Wo = 2 * H, 2 * W
    P = Ho * Wo
    Cin = Cx + Cskip
    Mid = params["dc2_w1"].shape[0]
    Cout = params["dc2_w2"].shape[0]
    E = t_emb.shape[1]

    # NCHW stays NCHW: channels in sublanes, flat spatial in lanes (free reshapes).
    x = x_nchw.reshape(N, Cx, H * W)
    skip = skip_nchw.reshape(N, Cskip, P)
    t3 = t_emb.reshape(N, 1, E)
    u_t = upsample_matrix_T(H, W)                       # (H*W, P) bf16

    const2 = lambda n: (0, 0)                           # weights resident across grid

    out = pl.pallas_call(
        functools.partial(upblock_kernel, Ho=Ho, Wo=Wo),
        out_shape=jax.ShapeDtypeStruct((N, Cout, P), jnp.float32),
        grid=(N,),
        in_specs=[
            pl.BlockSpec((None, Cx, H * W), lambda n: (n, 0, 0)),
            pl.BlockSpec((None, Cskip, P), lambda n: (n, 0, 0)),
            pl.BlockSpec((None, 1, E), lambda n: (n, 0, 0)),
            pl.BlockSpec((H * W, P), const2),
            pl.BlockSpec((Cin, 9 * Cin), const2),
            pl.BlockSpec((Cin, 1), const2),
            pl.BlockSpec((Cin, 1), const2),
            pl.BlockSpec((Cin, 9 * Cin), const2),
            pl.BlockSpec((Cin, 1), const2),
            pl.BlockSpec((Cin, 1), const2),
            pl.BlockSpec((Mid, 9 * Cin), const2),
            pl.BlockSpec((Mid, 1), const2),
            pl.BlockSpec((Mid, 1), const2),
            pl.BlockSpec((Cout, 9 * Mid), const2),
            pl.BlockSpec((Cout, 1), const2),
            pl.BlockSpec((Cout, 1), const2),
            pl.BlockSpec((Cout, E), const2),
            pl.BlockSpec((Cout, 1), const2),
        ],
        out_specs=pl.BlockSpec((None, Cout, P), lambda n: (n, 0, 0)),
        compiler_params=pltpu.CompilerParams(
            dimension_semantics=("parallel",),
            vmem_limit_bytes=32 * 1024 * 1024),
    )(x, skip, t3, u_t,
      params["dc1_w1"], params["dc1_g1"], params["dc1_b1"],
      params["dc1_w2"], params["dc1_g2"], params["dc1_b2"],
      params["dc2_w1"], params["dc2_g1"], params["dc2_b1"],
      params["dc2_w2"], params["dc2_g2"], params["dc2_b2"],
      params["emb_w"], params["emb_b"])

    return out.reshape(N, Cout, Ho, Wo)                 # already NCHW


# ----------------------------------------------------------------------------
# Pure-JAX (XLA) reference of the same forward pass, for a numeric self-check.
# ----------------------------------------------------------------------------
def upblock_reference(params, x_nchw, skip_nchw, t_emb):
    f32, bf16 = jnp.float32, jnp.bfloat16
    N, Cx, H, W = x_nchw.shape
    Ho, Wo = 2 * H, 2 * W
    u_t = upsample_matrix_T(H, W)

    x_cl = jnp.transpose(x_nchw, (0, 2, 3, 1)).reshape(N, H * W, Cx)
    up = jnp.einsum("qp,nqc->npc", u_t, x_cl.astype(bf16),
                    preferred_element_type=f32).reshape(N, Ho, Wo, Cx)
    skip_cl = jnp.transpose(skip_nchw, (0, 2, 3, 1))
    cat = jnp.concatenate([skip_cl, up], axis=-1)

    def conv(x, w_flat):
        n, hh, ww, cin = x.shape
        xp = jnp.pad(x, ((0, 0), (1, 1), (1, 1), (0, 0)))
        taps = [xp[:, kh:kh + hh, kw:kw + ww, :]
                for kh in range(3) for kw in range(3)]
        patches = jnp.concatenate(taps, axis=-1)
        return jnp.einsum("nhwk,ok->nhwo", patches.astype(bf16), w_flat,
                          preferred_element_type=f32)

    def gn(x, g, b):
        mean = jnp.mean(x, axis=(1, 2, 3), keepdims=True)
        var = jnp.mean((x - mean) ** 2, axis=(1, 2, 3), keepdims=True)
        return ((x - mean) * jax.lax.rsqrt(var + EPS)
                * g.reshape(1, 1, 1, -1) + b.reshape(1, 1, 1, -1))

    h = conv(cat, params["dc1_w1"])
    h = _silu(gn(h, params["dc1_g1"], params["dc1_b1"]))
    h = conv(h, params["dc1_w2"])
    h = _silu(cat + gn(h, params["dc1_g2"], params["dc1_b2"]))
    h2 = conv(h, params["dc2_w1"])
    h2 = _silu(gn(h2, params["dc2_g1"], params["dc2_b1"]))
    h2 = conv(h2, params["dc2_w2"])
    h2 = gn(h2, params["dc2_g2"], params["dc2_b2"])
    emb = _silu(t_emb) @ params["emb_w"].T + params["emb_b"].reshape(1, -1)
    out = h2 + emb[:, None, None, :]
    return jnp.transpose(out, (0, 3, 1, 2))


if __name__ == "__main__":
    in_ch, out_ch, emb_ch = 16, 16, 32
    N, Cx, H, W = 2, 8, 16, 16          # x: (N, Cx, H, W); skip has in_ch - Cx channels
    Cskip = in_ch - Cx

    key = jax.random.PRNGKey(0)
    kx, ks, kt, kp = jax.random.split(key, 4)
    x = jax.random.normal(kx, (N, Cx, H, W), jnp.float32)
    skip_x = jax.random.normal(ks, (N, Cskip, 2 * H, 2 * W), jnp.float32)
    t_emb = jax.random.normal(kt, (N, emb_ch), jnp.float32)

    params = init_params(kp, in_ch, out_ch, emb_ch)

    out = jax.jit(upblock_forward)(params, x, skip_x, t_emb)
    out = jax.block_until_ready(out)
    assert out.shape == (N, out_ch, 2 * H, 2 * W), out.shape
    assert bool(jnp.all(jnp.isfinite(out)))

    ref = jax.block_until_ready(upblock_reference(params, x, skip_x, t_emb))
    err = float(jnp.max(jnp.abs(out - ref)))
    assert err < 5e-2, f"max abs err vs reference: {err}"

    print("KERNEL_OK")
</pallas_src>

<mosaic_0001>
module attributes {stable_mosaic.version = 11 : i64} {
  func.func @upblock_kernel(%arg0: i32, %arg1: memref<1x8x256xf32, #tpu.memory_space<vmem>>, %arg2: memref<1x8x1024xf32, #tpu.memory_space<vmem>>, %arg3: memref<1x1x32xf32, #tpu.memory_space<vmem>>, %arg4: memref<256x1024xbf16, #tpu.memory_space<vmem>>, %arg5: memref<16x144xbf16, #tpu.memory_space<vmem>>, %arg6: memref<16x1xf32, #tpu.memory_space<vmem>>, %arg7: memref<16x1xf32, #tpu.memory_space<vmem>>, %arg8: memref<16x144xbf16, #tpu.memory_space<vmem>>, %arg9: memref<16x1xf32, #tpu.memory_space<vmem>>, %arg10: memref<16x1xf32, #tpu.memory_space<vmem>>, %arg11: memref<8x144xbf16, #tpu.memory_space<vmem>>, %arg12: memref<8x1xf32, #tpu.memory_space<vmem>>, %arg13: memref<8x1xf32, #tpu.memory_space<vmem>>, %arg14: memref<16x72xbf16, #tpu.memory_space<vmem>>, %arg15: memref<16x1xf32, #tpu.memory_space<vmem>>, %arg16: memref<16x1xf32, #tpu.memory_space<vmem>>, %arg17: memref<16x32xf32, #tpu.memory_space<vmem>>, %arg18: memref<16x1xf32, #tpu.memory_space<vmem>>, %arg19: memref<1x16x1024xf32, #tpu.memory_space<vmem>>) attributes {dimension_semantics = [#tpu.dimension_semantics<parallel>], iteration_bounds = array<i64: 2>, scalar_prefetch = 0 : i64, scratch_operands = 0 : i64, tpu.core_type = #tpu.core_type<tc>, window_params = [{transform_indices = @transform_0, window_bounds = array<i64: 1, 8, 256>}, {transform_indices = @transform_1, window_bounds = array<i64: 1, 8, 1024>}, {transform_indices = @transform_2, window_bounds = array<i64: 1, 1, 32>}, {pipeline_mode = #tpu.pipeline_mode<synchronous>, transform_indices = @transform_3, window_bounds = array<i64: 256, 1024>}, {pipeline_mode = #tpu.pipeline_mode<synchronous>, transform_indices = @transform_4, window_bounds = array<i64: 16, 144>}, {pipeline_mode = #tpu.pipeline_mode<synchronous>, transform_indices = @transform_5, window_bounds = array<i64: 16, 1>}, {pipeline_mode = #tpu.pipeline_mode<synchronous>, transform_indices = @transform_6, window_bounds = array<i64: 16, 1>}, {pipeline_mode = #tpu.pipeline_mode<synchronous>, transform_indices = @transform_7, window_bounds = array<i64: 16, 144>}, {pipeline_mode = #tpu.pipeline_mode<synchronous>, transform_indices = @transform_8, window_bounds = array<i64: 16, 1>}, {pipeline_mode = #tpu.pipeline_mode<synchronous>, transform_indices = @transform_9, window_bounds = array<i64: 16, 1>}, {pipeline_mode = #tpu.pipeline_mode<synchronous>, transform_indices = @transform_10, window_bounds = array<i64: 8, 144>}, {pipeline_mode = #tpu.pipeline_mode<synchronous>, transform_indices = @transform_11, window_bounds = array<i64: 8, 1>}, {pipeline_mode = #tpu.pipeline_mode<synchronous>, transform_indices = @transform_12, window_bounds = array<i64: 8, 1>}, {pipeline_mode = #tpu.pipeline_mode<synchronous>, transform_indices = @transform_13, window_bounds = array<i64: 16, 72>}, {pipeline_mode = #tpu.pipeline_mode<synchronous>, transform_indices = @transform_14, window_bounds = array<i64: 16, 1>}, {pipeline_mode = #tpu.pipeline_mode<synchronous>, transform_indices = @transform_15, window_bounds = array<i64: 16, 1>}, {pipeline_mode = #tpu.pipeline_mode<synchronous>, transform_indices = @transform_16, window_bounds = array<i64: 16, 32>}, {pipeline_mode = #tpu.pipeline_mode<synchronous>, transform_indices = @transform_17, window_bounds = array<i64: 16, 1>}, {transform_indices = @transform_18, window_bounds = array<i64: 1, 16, 1024>}]} {
    %0 = tpu.iota {dimensions = array<i32: 1>} : vector<1x1024xi32>
    %1 = arith.sitofp %0 : vector<1x1024xi32> to vector<1x1024xf32>
    %cst = arith.constant 3.200000e+01 : f32
    %2 = vector.broadcast %cst : f32 to vector<1x1024xf32>
    %3 = arith.divf %1, %2 : vector<1x1024xf32>
    %4 = math.floor %3 : vector<1x1024xf32>
    %cst_0 = arith.constant 3.200000e+01 : f32
    %5 = vector.broadcast %cst_0 : f32 to vector<1x1024xf32>
    %6 = arith.mulf %4, %5 : vector<1x1024xf32>
    %7 = arith.subf %1, %6 : vector<1x1024xf32>
    %cst_1 = arith.constant 5.000000e-01 : f32
    %8 = vector.broadcast %cst_1 : f32 to vector<1x1024xf32>
    %9 = arith.cmpf ogt, %4, %8 : vector<1x1024xf32>
    %cst_2 = arith.constant 5.000000e-01 : f32
    %10 = vector.broadcast %cst_2 : f32 to vector<1x1024xf32>
    %11 = arith.cmpf ogt, %7, %10 : vector<1x1024xf32>
    %12 = arith.andi %9, %11 : vector<1x1024xi1>
    %13 = arith.extui %12 : vector<1x1024xi1> to vector<1x1024xi32>
    %14 = arith.sitofp %13 : vector<1x1024xi32> to vector<1x1024xf32>
    %cst_3 = arith.constant 5.000000e-01 : f32
    %15 = vector.broadcast %cst_3 : f32 to vector<1x1024xf32>
    %16 = arith.cmpf ogt, %4, %15 : vector<1x1024xf32>
    %17 = arith.extui %16 : vector<1x1024xi1> to vector<1x1024xi32>
    %18 = arith.sitofp %17 : vector<1x1024xi32> to vector<1x1024xf32>
    %cst_4 = arith.constant 5.000000e-01 : f32
    %19 = vector.broadcast %cst_4 : f32 to vector<1x1024xf32>
    %20 = arith.cmpf ogt, %4, %19 : vector<1x1024xf32>
    %cst_5 = arith.constant 3.050000e+01 : f32
    %21 = vector.broadcast %cst_5 : f32 to vector<1x1024xf32>
    %22 = arith.cmpf olt, %7, %21 : vector<1x1024xf32>
    %23 = arith.andi %20, %22 : vector<1x1024xi1>
    %24 = arith.extui %23 : vector<1x1024xi1> to vector<1x1024xi32>
    %25 = arith.sitofp %24 : vector<1x1024xi32> to vector<1x1024xf32>
    %cst_6 = arith.constant 5.000000e-01 : f32
    %26 = vector.broadcast %cst_6 : f32 to vector<1x1024xf32>
    %27 = arith.cmpf ogt, %7, %26 : vector<1x1024xf32>
    %28 = arith.extui %27 : vector<1x1024xi1> to vector<1x1024xi32>
    %29 = arith.sitofp %28 : vector<1x1024xi32> to vector<1x1024xf32>
    %cst_7 = arith.constant 3.050000e+01 : f32
    %30 = vector.broadcast %cst_7 : f32 to vector<1x1024xf32>
    %31 = arith.cmpf olt, %7, %30 : vector<1x1024xf32>
    %32 = arith.extui %31 : vector<1x1024xi1> to vector<1x1024xi32>
    %33 = arith.sitofp %32 : vector<1x1024xi32> to vector<1x1024xf32>
    %cst_8 = arith.constant 3.050000e+01 : f32
    %34 = vector.broadcast %cst_8 : f32 to vector<1x1024xf32>
    %35 = arith.cmpf olt, %4, %34 : vector<1x1024xf32>
    %cst_9 = arith.constant 5.000000e-01 : f32
    %36 = vector.broadcast %cst_9 : f32 to vector<1x1024xf32>
    %37 = arith.cmpf ogt, %7, %36 : vector<1x1024xf32>
    %38 = arith.andi %35, %37 : vector<1x1024xi1>
    %39 = arith.extui %38 : vector<1x1024xi1> to vector<1x1024xi32>
    %40 = arith.sitofp %39 : vector<1x1024xi32> to vector<1x1024xf32>
    %cst_10 = arith.constant 3.050000e+01 : f32
    %41 = vector.broadcast %cst_10 : f32 to vector<1x1024xf32>
    %42 = arith.cmpf olt, %4, %41 : vector<1x1024xf32>
    %43 = arith.extui %42 : vector<1x1024xi1> to vector<1x1024xi32>
    %44 = arith.sitofp %43 : vector<1x1024xi32> to vector<1x1024xf32>
    %cst_11 = arith.constant 3.050000e+01 : f32
    %45 = vector.broadcast %cst_11 : f32 to vector<1x1024xf32>
    %46 = arith.cmpf olt, %4, %45 : vector<1x1024xf32>
    %cst_12 = arith.constant 3.050000e+01 : f32
    %47 = vector.broadcast %cst_12 : f32 to vector<1x1024xf32>
    %48 = arith.cmpf olt, %7, %47 : vector<1x1024xf32>
    %49 = arith.andi %46, %48 : vector<1x1024xi1>
    %50 = arith.extui %49 : vector<1x1024xi1> to vector<1x1024xi32>
    %51 = arith.sitofp %50 : vector<1x1024xi32> to vector<1x1024xf32>
    %c0 = arith.constant 0 : index
    %c0_13 = arith.constant 0 : index
    %c0_14 = arith.constant 0 : index
    %52 = vector.load %arg1[%c0, %c0_13, %c0_14] : memref<1x8x256xf32, #tpu.memory_space<vmem>>, vector<1x8x256xf32>
    %53 = vector.shape_cast %52 : vector<1x8x256xf32> to vector<8x256xf32>
    %54 = arith.truncf %53 : vector<8x256xf32> to vector<8x256xbf16>
    %c0_15 = arith.constant 0 : index
    %c0_16 = arith.constant 0 : index
    %55 = vector.load %arg4[%c0_15, %c0_16] : memref<256x1024xbf16, #tpu.memory_space<vmem>>, vector<256x1024xbf16>
    %cst_17 = arith.constant dense<0.000000e+00> : vector<8x1024xf32>
    %56 = tpu.matmul %54, %55, %cst_17 {dimension_numbers = #tpu.dot_dimension_numbers<[1], [0], [0], [1], [0, 0, 1, 1], [], []>} : vector<8x256xbf16>, vector<256x1024xbf16>, vector<8x1024xf32> -> vector<8x1024xf32>
    %c0_18 = arith.constant 0 : index
    %c0_19 = arith.constant 0 : index
    %c0_20 = arith.constant 0 : index
    %57 = vector.load %arg2[%c0_18, %c0_19, %c0_20] : memref<1x8x1024xf32, #tpu.memory_space<vmem>>, vector<1x8x1024xf32>
    %58 = vector.shape_cast %57 : vector<1x8x1024xf32> to vector<8x1024xf32>
    %59 = tpu.concatenate %58, %56 in 0 : vector<8x1024xf32>, vector<8x1024xf32> -> vector<16x1024xf32>
    %c33_i32 = arith.constant 33 : i32
    %60 = tpu.dynamic_rotate %59 by %c33_i32 dim 1 : vector<16x1024xf32>, i32 -> vector<16x1024xf32>
    %61 = vector.broadcast %14 : vector<1x1024xf32> to vector<16x1024xf32>
    %62 = arith.mulf %60, %61 : vector<16x1024xf32>
    %c32_i32 = arith.constant 32 : i32
    %63 = tpu.dynamic_rotate %59 by %c32_i32 dim 1 : vector<16x1024xf32>, i32 -> vector<16x1024xf32>
    %64 = vector.broadcast %18 : vector<1x1024xf32> to vector<16x1024xf32>
    %65 = arith.mulf %63, %64 : vector<16x1024xf32>
    %c31_i32 = arith.constant 31 : i32
    %66 = tpu.dynamic_rotate %59 by %c31_i32 dim 1 : vector<16x1024xf32>, i32 -> vector<16x1024xf32>
    %67 = vector.broadcast %25 : vector<1x1024xf32> to vector<16x1024xf32>
    %68 = arith.mulf %66, %67 : vector<16x1024xf32>
    %c1_i32 = arith.constant 1 : i32
    %69 = tpu.dynamic_rotate %59 by %c1_i32 dim 1 : vector<16x1024xf32>, i32 -> vector<16x1024xf32>
    %70 = vector.broadcast %29 : vector<1x1024xf32> to vector<16x1024xf32>
    %71 = arith.mulf %69, %70 : vector<16x1024xf32>
    %c1023_i32 = arith.constant 1023 : i32
    %72 = tpu.dynamic_rotate %59 by %c1023_i32 dim 1 : vector<16x1024xf32>, i32 -> vector<16x1024xf32>
    %73 = vector.broadcast %33 : vector<1x1024xf32> to vector<16x1024xf32>
    %74 = arith.mulf %72, %73 : vector<16x1024xf32>
    %c993_i32 = arith.constant 993 : i32
    %75 = tpu.dynamic_rotate %59 by %c993_i32 dim 1 : vector<16x1024xf32>, i32 -> vector<16x1024xf32>
    %76 = vector.broadcast %40 : vector<1x1024xf32> to vector<16x1024xf32>
    %77 = arith.mulf %75, %76 : vector<16x1024xf32>
    %c992_i32 = arith.constant 992 : i32
    %78 = tpu.dynamic_rotate %59 by %c992_i32 dim 1 : vector<16x1024xf32>, i32 -> vector<16x1024xf32>
    %79 = vector.broadcast %44 : vector<1x1024xf32> to vector<16x1024xf32>
    %80 = arith.mulf %78, %79 : vector<16x1024xf32>
    %c991_i32 = arith.constant 991 : i32
    %81 = tpu.dynamic_rotate %59 by %c991_i32 dim 1 : vector<16x1024xf32>, i32 -> vector<16x1024xf32>
    %82 = vector.broadcast %51 : vector<1x1024xf32> to vector<16x1024xf32>
    %83 = arith.mulf %81, %82 : vector<16x1024xf32>
    %84 = tpu.concatenate %62, %65, %68, %71, %59, %74, %77, %80, %83 in 0 : vector<16x1024xf32>, vector<16x1024xf32>, vector<16x1024xf32>, vector<16x1024xf32>, vector<16x1024xf32>, vector<16x1024xf32>, vector<16x1024xf32>, vector<16x1024xf32>, vector<16x1024xf32> -> vector<144x1024xf32>
    %c0_21 = arith.constant 0 : index
    %c0_22 = arith.constant 0 : index
    %85 = vector.load %arg5[%c0_21, %c0_22] : memref<16x144xbf16, #tpu.memory_space<vmem>>, vector<16x144xbf16>
    %86 = arith.truncf %84 : vector<144x1024xf32> to vector<144x1024xbf16>
    %cst_23 = arith.constant dense<0.000000e+00> : vector<16x1024xf32>
    %87 = tpu.matmul %85, %86, %cst_23 {dimension_numbers = #tpu.dot_dimension_numbers<[1], [0], [0], [1], [0, 0, 1, 1], [], []>} : vector<16x144xbf16>, vector<144x1024xbf16>, vector<16x1024xf32> -> vector<16x1024xf32>
    %88 = vector.shape_cast %87 : vector<16x1024xf32> to vector<1x16x1024xf32>
    %cst_24 = arith.constant dense<0.000000e+00> : vector<1xf32>
    %89 = vector.multi_reduction <add>, %88, %cst_24 [1, 2] : vector<1x16x1024xf32> to vector<1xf32>
    %90 = vector.shape_cast %89 : vector<1xf32> to vector<1x1x1xf32>
    %91 = vector.extract %90[0, 0, 0] : f32 from vector<1x1x1xf32>
    %cst_25 = arith.constant 1.638400e+04 : f32
    %92 = arith.divf %91, %cst_25 : f32
    %93 = vector.broadcast %92 : f32 to vector<16x1024xf32>
    %94 = arith.subf %87, %93 : vector<16x1024xf32>
    %95 = arith.mulf %94, %94 : vector<16x1024xf32>
    %96 = vector.shape_cast %95 : vector<16x1024xf32> to vector<1x16x1024xf32>
    %cst_26 = arith.constant dense<0.000000e+00> : vector<1xf32>
    %97 = vector.multi_reduction <add>, %96, %cst_26 [1, 2] : vector<1x16x1024xf32> to vector<1xf32>
    %98 = vector.shape_cast %97 : vector<1xf32> to vector<1x1x1xf32>
    %99 = vector.extract %98[0, 0, 0] : f32 from vector<1x1x1xf32>
    %cst_27 = arith.constant 1.638400e+04 : f32
    %100 = arith.divf %99, %cst_27 : f32
    %101 = vector.broadcast %92 : f32 to vector<16x1024xf32>
    %102 = arith.subf %87, %101 : vector<16x1024xf32>
    %cst_28 = arith.constant 9.99999974E-6 : f32
    %103 = arith.addf %100, %cst_28 : f32
    %104 = math.rsqrt %103 : f32
    %105 = vector.broadcast %104 : f32 to vector<16x1024xf32>
    %106 = arith.mulf %102, %105 : vector<16x1024xf32>
    %c0_29 = arith.constant 0 : index
    %c0_30 = arith.constant 0 : index
    %107 = vector.load %arg6[%c0_29, %c0_30] : memref<16x1xf32, #tpu.memory_space<vmem>>, vector<16x1xf32>
    %108 = vector.broadcast %107 : vector<16x1xf32> to vector<16x1024xf32>
    %109 = arith.mulf %106, %108 : vector<16x1024xf32>
    %c0_31 = arith.constant 0 : index
    %c0_32 = arith.constant 0 : index
    %110 = vector.load %arg7[%c0_31, %c0_32] : memref<16x1xf32, #tpu.memory_space<vmem>>, vector<16x1xf32>
    %111 = vector.broadcast %110 : vector<16x1xf32> to vector<16x1024xf32>
    %112 = arith.addf %109, %111 : vector<16x1024xf32>
    %113 = arith.negf %112 : vector<16x1024xf32>
    %114 = math.exp %113 : vector<16x1024xf32>
    %cst_33 = arith.constant 1.000000e+00 : f32
    %115 = vector.broadcast %cst_33 : f32 to vector<16x1024xf32>
    %116 = arith.addf %115, %114 : vector<16x1024xf32>
    %117 = arith.divf %115, %116 : vector<16x1024xf32>
    %118 = arith.mulf %112, %117 : vector<16x1024xf32>
    %c33_i32_34 = arith.constant 33 : i32
    %119 = tpu.dynamic_rotate %118 by %c33_i32_34 dim 1 : vector<16x1024xf32>, i32 -> vector<16x1024xf32>
    %120 = vector.broadcast %14 : vector<1x1024xf32> to vector<16x1024xf32>
    %121 = arith.mulf %119, %120 : vector<16x1024xf32>
    %c32_i32_35 = arith.constant 32 : i32
    %122 = tpu.dynamic_rotate %118 by %c32_i32_35 dim 1 : vector<16x1024xf32>, i32 -> vector<16x1024xf32>
    %123 = vector.broadcast %18 : vector<1x1024xf32> to vector<16x1024xf32>
    %124 = arith.mulf %122, %123 : vector<16x1024xf32>
    %c31_i32_36 = arith.constant 31 : i32
    %125 = tpu.dynamic_rotate %118 by %c31_i32_36 dim 1 : vector<16x1024xf32>, i32 -> vector<16x1024xf32>
    %126 = vector.broadcast %25 : vector<1x1024xf32> to vector<16x1024xf32>
    %127 = arith.mulf %125, %126 : vector<16x1024xf32>
    %c1_i32_37 = arith.constant 1 : i32
    %128 = tpu.dynamic_rotate %118 by %c1_i32_37 dim 1 : vector<16x1024xf32>, i32 -> vector<16x1024xf32>
    %129 = vector.broadcast %29 : vector<1x1024xf32> to vector<16x1024xf32>
    %130 = arith.mulf %128, %129 : vector<16x1024xf32>
    %c1023_i32_38 = arith.constant 1023 : i32
    %131 = tpu.dynamic_rotate %118 by %c1023_i32_38 dim 1 : vector<16x1024xf32>, i32 -> vector<16x1024xf32>
    %132 = vector.broadcast %33 : vector<1x1024xf32> to vector<16x1024xf32>
    %133 = arith.mulf %131, %132 : vector<16x1024xf32>
    %c993_i32_39 = arith.constant 993 : i32
    %134 = tpu.dynamic_rotate %118 by %c993_i32_39 dim 1 : vector<16x1024xf32>, i32 -> vector<16x1024xf32>
    %135 = vector.broadcast %40 : vector<1x1024xf32> to vector<16x1024xf32>
    %136 = arith.mulf %134, %135 : vector<16x1024xf32>
    %c992_i32_40 = arith.constant 992 : i32
    %137 = tpu.dynamic_rotate %118 by %c992_i32_40 dim 1 : vector<16x1024xf32>, i32 -> vector<16x1024xf32>
    %138 = vector.broadcast %44 : vector<1x1024xf32> to vector<16x1024xf32>
    %139 = arith.mulf %137, %138 : vector<16x1024xf32>
    %c991_i32_41 = arith.constant 991 : i32
    %140 = tpu.dynamic_rotate %118 by %c991_i32_41 dim 1 : vector<16x1024xf32>, i32 -> vector<16x1024xf32>
    %141 = vector.broadcast %51 : vector<1x1024xf32> to vector<16x1024xf32>
    %142 = arith.mulf %140, %141 : vector<16x1024xf32>
    %143 = tpu.concatenate %121, %124, %127, %130, %118, %133, %136, %139, %142 in 0 : vector<16x1024xf32>, vector<16x1024xf32>, vector<16x1024xf32>, vector<16x1024xf32>, vector<16x1024xf32>, vector<16x1024xf32>, vector<16x1024xf32>, vector<16x1024xf32>, vector<16x1024xf32> -> vector<144x1024xf32>
    %c0_42 = arith.constant 0 : index
    %c0_43 = arith.constant 0 : index
    %144 = vector.load %arg8[%c0_42, %c0_43] : memref<16x144xbf16, #tpu.memory_space<vmem>>, vector<16x144xbf16>
    %145 = arith.truncf %143 : vector<144x1024xf32> to vector<144x1024xbf16>
    %cst_44 = arith.constant dense<0.000000e+00> : vector<16x1024xf32>
    %146 = tpu.matmul %144, %145, %cst_44 {dimension_numbers = #tpu.dot_dimension_numbers<[1], [0], [0], [1], [0, 0, 1, 1], [], []>} : vector<16x144xbf16>, vector<144x1024xbf16>, vector<16x1024xf32> -> vector<16x1024xf32>
    %147 = vector.shape_cast %146 : vector<16x1024xf32> to vector<1x16x1024xf32>
    %cst_45 = arith.constant dense<0.000000e+00> : vector<1xf32>
    %148 = vector.multi_reduction <add>, %147, %cst_45 [1, 2] : vector<1x16x1024xf32> to vector<1xf32>
    %149 = vector.shape_cast %148 : vector<1xf32> to vector<1x1x1xf32>
    %150 = vector.extract %149[0, 0, 0] : f32 from vector<1x1x1xf32>
    %cst_46 = arith.constant 1.638400e+04 : f32
    %151 = arith.divf %150, %cst_46 : f32
    %152 = vector.broadcast %151 : f32 to vector<16x1024xf32>
    %153 = arith.subf %146, %152 : vector<16x1024xf32>
    %154 = arith.mulf %153, %153 : vector<16x1024xf32>
    %155 = vector.shape_cast %154 : vector<16x1024xf32> to vector<1x16x1024xf32>
    %cst_47 = arith.constant dense<0.000000e+00> : vector<1xf32>
    %156 = vector.multi_reduction <add>, %155, %cst_47 [1, 2] : vector<1x16x1024xf32> to vector<1xf32>
    %157 = vector.shape_cast %156 : vector<1xf32> to vector<1x1x1xf32>
    %158 = vector.extract %157[0, 0, 0] : f32 from vector<1x1x1xf32>
    %cst_48 = arith.constant 1.638400e+04 : f32
    %159 = arith.divf %158, %cst_48 : f32
    %160 = vector.broadcast %151 : f32 to vector<16x1024xf32>
    %161 = arith.subf %146, %160 : vector<16x1024xf32>
    %cst_49 = arith.constant 9.99999974E-6 : f32
    %162 = arith.addf %159, %cst_49 : f32
    %163 = math.rsqrt %162 : f32
    %164 = vector.broadcast %163 : f32 to vector<16x1024xf32>
    %165 = arith.mulf %161, %164 : vector<16x1024xf32>
    %c0_50 = arith.constant 0 : index
    %c0_51 = arith.constant 0 : index
    %166 = vector.load %arg9[%c0_50, %c0_51] : memref<16x1xf32, #tpu.memory_space<vmem>>, vector<16x1xf32>
    %167 = vector.broadcast %166 : vector<16x1xf32> to vector<16x1024xf32>
    %168 = arith.mulf %165, %167 : vector<16x1024xf32>
    %c0_52 = arith.constant 0 : index
    %c0_53 = arith.constant 0 : index
    %169 = vector.load %arg10[%c0_52, %c0_53] : memref<16x1xf32, #tpu.memory_space<vmem>>, vector<16x1xf32>
    %170 = vector.broadcast %169 : vector<16x1xf32> to vector<16x1024xf32>
    %171 = arith.addf %168, %170 : vector<16x1024xf32>
    %172 = arith.addf %59, %171 : vector<16x1024xf32>
    %173 = arith.negf %172 : vector<16x1024xf32>
    %174 = math.exp %173 : vector<16x1024xf32>
    %cst_54 = arith.constant 1.000000e+00 : f32
    %175 = vector.broadcast %cst_54 : f32 to vector<16x1024xf32>
    %176 = arith.addf %175, %174 : vector<16x1024xf32>
    %177 = arith.divf %175, %176 : vector<16x1024xf32>
    %178 = arith.mulf %172, %177 : vector<16x1024xf32>
    %c33_i32_55 = arith.constant 33 : i32
    %179 = tpu.dynamic_rotate %178 by %c33_i32_55 dim 1 : vector<16x1024xf32>, i32 -> vector<16x1024xf32>
    %180 = vector.broadcast %14 : vector<1x1024xf32> to vector<16x1024xf32>
    %181 = arith.mulf %179, %180 : vector<16x1024xf32>
    %c32_i32_56 = arith.constant 32 : i32
    %182 = tpu.dynamic_rotate %178 by %c32_i32_56 dim 1 : vector<16x1024xf32>, i32 -> vector<16x1024xf32>
    %183 = vector.broadcast %18 : vector<1x1024xf32> to vector<16x1024xf32>
    %184 = arith.mulf %182, %183 : vector<16x1024xf32>
    %c31_i32_57 = arith.constant 31 : i32
    %185 = tpu.dynamic_rotate %178 by %c31_i32_57 dim 1 : vector<16x1024xf32>, i32 -> vector<16x1024xf32>
    %186 = vector.broadcast %25 : vector<1x1024xf32> to vector<16x1024xf32>
    %187 = arith.mulf %185, %186 : vector<16x1024xf32>
    %c1_i32_58 = arith.constant 1 : i32
    %188 = tpu.dynamic_rotate %178 by %c1_i32_58 dim 1 : vector<16x1024xf32>, i32 -> vector<16x1024xf32>
    %189 = vector.broadcast %29 : vector<1x1024xf32> to vector<16x1024xf32>
    %190 = arith.mulf %188, %189 : vector<16x1024xf32>
    %c1023_i32_59 = arith.constant 1023 : i32
    %191 = tpu.dynamic_rotate %178 by %c1023_i32_59 dim 1 : vector<16x1024xf32>, i32 -> vector<16x1024xf32>
    %192 = vector.broadcast %33 : vector<1x1024xf32> to vector<16x1024xf32>
    %193 = arith.mulf %191, %192 : vector<16x1024xf32>
    %c993_i32_60 = arith.constant 993 : i32
    %194 = tpu.dynamic_rotate %178 by %c993_i32_60 dim 1 : vector<16x1024xf32>, i32 -> vector<16x1024xf32>
    %195 = vector.broadcast %40 : vector<1x1024xf32> to vector<16x1024xf32>
    %196 = arith.mulf %194, %195 : vector<16x1024xf32>
    %c992_i32_61 = arith.constant 992 : i32
    %197 = tpu.dynamic_rotate %178 by %c992_i32_61 dim 1 : vector<16x1024xf32>, i32 -> vector<16x1024xf32>
    %198 = vector.broadcast %44 : vector<1x1024xf32> to vector<16x1024xf32>
    %199 = arith.mulf %197, %198 : vector<16x1024xf32>
    %c991_i32_62 = arith.constant 991 : i32
    %200 = tpu.dynamic_rotate %178 by %c991_i32_62 dim 1 : vector<16x1024xf32>, i32 -> vector<16x1024xf32>
    %201 = vector.broadcast %51 : vector<1x1024xf32> to vector<16x1024xf32>
    %202 = arith.mulf %200, %201 : vector<16x1024xf32>
    %203 = tpu.concatenate %181, %184, %187, %190, %178, %193, %196, %199, %202 in 0 : vector<16x1024xf32>, vector<16x1024xf32>, vector<16x1024xf32>, vector<16x1024xf32>, vector<16x1024xf32>, vector<16x1024xf32>, vector<16x1024xf32>, vector<16x1024xf32>, vector<16x1024xf32> -> vector<144x1024xf32>
    %c0_63 = arith.constant 0 : index
    %c0_64 = arith.constant 0 : index
    %204 = vector.load %arg11[%c0_63, %c0_64] : memref<8x144xbf16, #tpu.memory_space<vmem>>, vector<8x144xbf16>
    %205 = arith.truncf %203 : vector<144x1024xf32> to vector<144x1024xbf16>
    %cst_65 = arith.constant dense<0.000000e+00> : vector<8x1024xf32>
    %206 = tpu.matmul %204, %205, %cst_65 {dimension_numbers = #tpu.dot_dimension_numbers<[1], [0], [0], [1], [0, 0, 1, 1], [], []>} : vector<8x144xbf16>, vector<144x1024xbf16>, vector<8x1024xf32> -> vector<8x1024xf32>
    %207 = vector.shape_cast %206 : vector<8x1024xf32> to vector<1x8x1024xf32>
    %cst_66 = arith.constant dense<0.000000e+00> : vector<1xf32>
    %208 = vector.multi_reduction <add>, %207, %cst_66 [1, 2] : vector<1x8x1024xf32> to vector<1xf32>
    %209 = vector.shape_cast %208 : vector<1xf32> to vector<1x1x1xf32>
    %210 = vector.extract %209[0, 0, 0] : f32 from vector<1x1x1xf32>
    %cst_67 = arith.constant 8.192000e+03 : f32
    %211 = arith.divf %210, %cst_67 : f32
    %212 = vector.broadcast %211 : f32 to vector<8x1024xf32>
    %213 = arith.subf %206, %212 : vector<8x1024xf32>
    %214 = arith.mulf %213, %213 : vector<8x1024xf32>
    %215 = vector.shape_cast %214 : vector<8x1024xf32> to vector<1x8x1024xf32>
    %cst_68 = arith.constant dense<0.000000e+00> : vector<1xf32>
    %216 = vector.multi_reduction <add>, %215, %cst_68 [1, 2] : vector<1x8x1024xf32> to vector<1xf32>
    %217 = vector.shape_cast %216 : vector<1xf32> to vector<1x1x1xf32>
    %218 = vector.extract %217[0, 0, 0] : f32 from vector<1x1x1xf32>
    %cst_69 = arith.constant 8.192000e+03 : f32
    %219 = arith.divf %218, %cst_69 : f32
    %220 = vector.broadcast %211 : f32 to vector<8x1024xf32>
    %221 = arith.subf %206, %220 : vector<8x1024xf32>
    %cst_70 = arith.constant 9.99999974E-6 : f32
    %222 = arith.addf %219, %cst_70 : f32
    %223 = math.rsqrt %222 : f32
    %224 = vector.broadcast %223 : f32 to vector<8x1024xf32>
    %225 = arith.mulf %221, %224 : vector<8x1024xf32>
    %c0_71 = arith.constant 0 : index
    %c0_72 = arith.constant 0 : index
    %226 = vector.load %arg12[%c0_71, %c0_72] : memref<8x1xf32, #tpu.memory_space<vmem>>, vector<8x1xf32>
    %227 = vector.broadcast %226 : vector<8x1xf32> to vector<8x1024xf32>
    %228 = arith.mulf %225, %227 : vector<8x1024xf32>
    %c0_73 = arith.constant 0 : index
    %c0_74 = arith.constant 0 : index
    %229 = vector.load %arg13[%c0_73, %c0_74] : memref<8x1xf32, #tpu.memory_space<vmem>>, vector<8x1xf32>
    %230 = vector.broadcast %229 : vector<8x1xf32> to vector<8x1024xf32>
    %231 = arith.addf %228, %230 : vector<8x1024xf32>
    %232 = arith.negf %231 : vector<8x1024xf32>
    %233 = math.exp %232 : vector<8x1024xf32>
    %cst_75 = arith.constant 1.000000e+00 : f32
    %234 = vector.broadcast %cst_75 : f32 to vector<8x1024xf32>
    %235 = arith.addf %234, %233 : vector<8x1024xf32>
    %236 = arith.divf %234, %235 : vector<8x1024xf32>
    %237 = arith.mulf %231, %236 : vector<8x1024xf32>
    %c33_i32_76 = arith.constant 33 : i32
    %238 = tpu.dynamic_rotate %237 by %c33_i32_76 dim 1 : vector<8x1024xf32>, i32 -> vector<8x1024xf32>
    %239 = vector.broadcast %14 : vector<1x1024xf32> to vector<8x1024xf32>
    %240 = arith.mulf %238, %239 : vector<8x1024xf32>
    %c32_i32_77 = arith.constant 32 : i32
    %241 = tpu.dynamic_rotate %237 by %c32_i32_77 dim 1 : vector<8x1024xf32>, i32 -> vector<8x1024xf32>
    %242 = vector.broadcast %18 : vector<1x1024xf32> to vector<8x1024xf32>
    %243 = arith.mulf %241, %242 : vector<8x1024xf32>
    %c31_i32_78 = arith.constant 31 : i32
    %244 = tpu.dynamic_rotate %237 by %c31_i32_78 dim 1 : vector<8x1024xf32>, i32 -> vector<8x1024xf32>
    %245 = vector.broadcast %25 : vector<1x1024xf32> to vector<8x1024xf32>
    %246 = arith.mulf %244, %245 : vector<8x1024xf32>
    %c1_i32_79 = arith.constant 1 : i32
    %247 = tpu.dynamic_rotate %237 by %c1_i32_79 dim 1 : vector<8x1024xf32>, i32 -> vector<8x1024xf32>
    %248 = vector.broadcast %29 : vector<1x1024xf32> to vector<8x1024xf32>
    %249 = arith.mulf %247, %248 : vector<8x1024xf32>
    %c1023_i32_80 = arith.constant 1023 : i32
    %250 = tpu.dynamic_rotate %237 by %c1023_i32_80 dim 1 : vector<8x1024xf32>, i32 -> vector<8x1024xf32>
    %251 = vector.broadcast %33 : vector<1x1024xf32> to vector<8x1024xf32>
    %252 = arith.mulf %250, %251 : vector<8x1024xf32>
    %c993_i32_81 = arith.constant 993 : i32
    %253 = tpu.dynamic_rotate %237 by %c993_i32_81 dim 1 : vector<8x1024xf32>, i32 -> vector<8x1024xf32>
    %254 = vector.broadcast %40 : vector<1x1024xf32> to vector<8x1024xf32>
    %255 = arith.mulf %253, %254 : vector<8x1024xf32>
    %c992_i32_82 = arith.constant 992 : i32
    %256 = tpu.dynamic_rotate %237 by %c992_i32_82 dim 1 : vector<8x1024xf32>, i32 -> vector<8x1024xf32>
    %257 = vector.broadcast %44 : vector<1x1024xf32> to vector<8x1024xf32>
    %258 = arith.mulf %256, %257 : vector<8x1024xf32>
    %c991_i32_83 = arith.constant 991 : i32
    %259 = tpu.dynamic_rotate %237 by %c991_i32_83 dim 1 : vector<8x1024xf32>, i32 -> vector<8x1024xf32>
    %260 = vector.broadcast %51 : vector<1x1024xf32> to vector<8x1024xf32>
    %261 = arith.mulf %259, %260 : vector<8x1024xf32>
    %262 = tpu.concatenate %240, %243, %246, %249, %237, %252, %255, %258, %261 in 0 : vector<8x1024xf32>, vector<8x1024xf32>, vector<8x1024xf32>, vector<8x1024xf32>, vector<8x1024xf32>, vector<8x1024xf32>, vector<8x1024xf32>, vector<8x1024xf32>, vector<8x1024xf32> -> vector<72x1024xf32>
    %c0_84 = arith.constant 0 : index
    %c0_85 = arith.constant 0 : index
    %263 = vector.load %arg14[%c0_84, %c0_85] : memref<16x72xbf16, #tpu.memory_space<vmem>>, vector<16x72xbf16>
    %264 = arith.truncf %262 : vector<72x1024xf32> to vector<72x1024xbf16>
    %cst_86 = arith.constant dense<0.000000e+00> : vector<16x1024xf32>
    %265 = tpu.matmul %263, %264, %cst_86 {dimension_numbers = #tpu.dot_dimension_numbers<[1], [0], [0], [1], [0, 0, 1, 1], [], []>} : vector<16x72xbf16>, vector<72x1024xbf16>, vector<16x1024xf32> -> vector<16x1024xf32>
    %266 = vector.shape_cast %265 : vector<16x1024xf32> to vector<1x16x1024xf32>
    %cst_87 = arith.constant dense<0.000000e+00> : vector<1xf32>
    %267 = vector.multi_reduction <add>, %266, %cst_87 [1, 2] : vector<1x16x1024xf32> to vector<1xf32>
    %268 = vector.shape_cast %267 : vector<1xf32> to vector<1x1x1xf32>
    %269 = vector.extract %268[0, 0, 0] : f32 from vector<1x1x1xf32>
    %cst_88 = arith.constant 1.638400e+04 : f32
    %270 = arith.divf %269, %cst_88 : f32
    %271 = vector.broadcast %270 : f32 to vector<16x1024xf32>
    %272 = arith.subf %265, %271 : vector<16x1024xf32>
    %273 = arith.mulf %272, %272 : vector<16x1024xf32>
    %274 = vector.shape_cast %273 : vector<16x1024xf32> to vector<1x16x1024xf32>
    %cst_89 = arith.constant dense<0.000000e+00> : vector<1xf32>
    %275 = vector.multi_reduction <add>, %274, %cst_89 [1, 2] : vector<1x16x1024xf32> to vector<1xf32>
    %276 = vector.shape_cast %275 : vector<1xf32> to vector<1x1x1xf32>
    %277 = vector.extract %276[0, 0, 0] : f32 from vector<1x1x1xf32>
    %cst_90 = arith.constant 1.638400e+04 : f32
    %278 = arith.divf %277, %cst_90 : f32
    %279 = vector.broadcast %270 : f32 to vector<16x1024xf32>
    %280 = arith.subf %265, %279 : vector<16x1024xf32>
    %cst_91 = arith.constant 9.99999974E-6 : f32
    %281 = arith.addf %278, %cst_91 : f32
    %282 = math.rsqrt %281 : f32
    %283 = vector.broadcast %282 : f32 to vector<16x1024xf32>
    %284 = arith.mulf %280, %283 : vector<16x1024xf32>
    %c0_92 = arith.constant 0 : index
    %c0_93 = arith.constant 0 : index
    %285 = vector.load %arg15[%c0_92, %c0_93] : memref<16x1xf32, #tpu.memory_space<vmem>>, vector<16x1xf32>
    %286 = vector.broadcast %285 : vector<16x1xf32> to vector<16x1024xf32>
    %287 = arith.mulf %284, %286 : vector<16x1024xf32>
    %c0_94 = arith.constant 0 : index
    %c0_95 = arith.constant 0 : index
    %288 = vector.load %arg16[%c0_94, %c0_95] : memref<16x1xf32, #tpu.memory_space<vmem>>, vector<16x1xf32>
    %289 = vector.broadcast %288 : vector<16x1xf32> to vector<16x1024xf32>
    %290 = arith.addf %287, %289 : vector<16x1024xf32>
    %c0_96 = arith.constant 0 : index
    %c0_97 = arith.constant 0 : index
    %c0_98 = arith.constant 0 : index
    %291 = vector.load %arg3[%c0_96, %c0_97, %c0_98] : memref<1x1x32xf32, #tpu.memory_space<vmem>>, vector<1x1x32xf32>
    %292 = vector.shape_cast %291 : vector<1x1x32xf32> to vector<1x32xf32>
    %293 = arith.negf %292 : vector<1x32xf32>
    %294 = math.exp %293 : vector<1x32xf32>
    %cst_99 = arith.constant 1.000000e+00 : f32
    %295 = vector.broadcast %cst_99 : f32 to vector<1x32xf32>
    %296 = arith.addf %295, %294 : vector<1x32xf32>
    %297 = arith.divf %295, %296 : vector<1x32xf32>
    %298 = arith.mulf %292, %297 : vector<1x32xf32>
    %c0_100 = arith.constant 0 : index
    %c0_101 = arith.constant 0 : index
    %299 = vector.load %arg17[%c0_100, %c0_101] : memref<16x32xf32, #tpu.memory_space<vmem>>, vector<16x32xf32>
    %300 = vector.broadcast %298 : vector<1x32xf32> to vector<16x32xf32>
    %301 = arith.mulf %299, %300 : vector<16x32xf32>
    %cst_102 = arith.constant dense<0.000000e+00> : vector<16xf32>
    %302 = vector.multi_reduction <add>, %301, %cst_102 [1] : vector<16x32xf32> to vector<16xf32>
    %303 = vector.shape_cast %302 : vector<16xf32> to vector<16x1xf32>
    %c0_103 = arith.constant 0 : index
    %c0_104 = arith.constant 0 : index
    %304 = vector.load %arg18[%c0_103, %c0_104] : memref<16x1xf32, #tpu.memory_space<vmem>>, vector<16x1xf32>
    %305 = arith.addf %303, %304 : vector<16x1xf32>
    %306 = vector.broadcast %305 : vector<16x1xf32> to vector<16x1024xf32>
    %307 = arith.addf %290, %306 : vector<16x1024xf32>
    %c0_105 = arith.constant 0 : index
    %c0_106 = arith.constant 0 : index
    %c0_107 = arith.constant 0 : index
    %308 = vector.load %arg19[%c0_105, %c0_106, %c0_107] : memref<1x16x1024xf32, #tpu.memory_space<vmem>>, vector<1x16x1024xf32>
    %309 = vector.shape_cast %308 : vector<1x16x1024xf32> to vector<16x1024xf32>
    %310 = vector.shape_cast %307 : vector<16x1024xf32> to vector<1x16x1024xf32>
    tpu.vector_store %arg19[%c0_105, %c0_106, %c0_107], %310 {strides = array<i32>} : memref<1x16x1024xf32, #tpu.memory_space<vmem>>, vector<1x16x1024xf32>,
    return
  }
  func.func @transform_0(%arg0: i32) -> (i32, i32, i32) {
    %c0_i32 = arith.constant 0 : i32
    %c0_i32_0 = arith.constant 0 : i32
    %c0_i32_1 = arith.constant 0 : i32
    return %arg0, %c0_i32, %c0_i32_0 : i32, i32, i32
  }
  func.func @transform_1(%arg0: i32) -> (i32, i32, i32) {
    %c0_i32 = arith.constant 0 : i32
    %c0_i32_0 = arith.constant 0 : i32
    %c0_i32_1 = arith.constant 0 : i32
    return %arg0, %c0_i32, %c0_i32_0 : i32, i32, i32
  }
  func.func @transform_2(%arg0: i32) -> (i32, i32, i32) {
    %c0_i32 = arith.constant 0 : i32
    %c0_i32_0 = arith.constant 0 : i32
    %c0_i32_1 = arith.constant 0 : i32
    return %arg0, %c0_i32, %c0_i32_0 : i32, i32, i32
  }
  func.func @transform_3(%arg0: i32) -> (i32, i32) {
    %c0_i32 = arith.constant 0 : i32
    %c0_i32_0 = arith.constant 0 : i32
    %c0_i32_1 = arith.constant 0 : i32
    return %c0_i32, %c0_i32_0 : i32, i32
  }
  func.func @transform_4(%arg0: i32) -> (i32, i32) {
    %c0_i32 = arith.constant 0 : i32
    %c0_i32_0 = arith.constant 0 : i32
    %c0_i32_1 = arith.constant 0 : i32
    return %c0_i32, %c0_i32_0 : i32, i32
  }
  func.func @transform_5(%arg0: i32) -> (i32, i32) {
    %c0_i32 = arith.constant 0 : i32
    %c0_i32_0 = arith.constant 0 : i32
    %c0_i32_1 = arith.constant 0 : i32
    return %c0_i32, %c0_i32_0 : i32, i32
  }
  func.func @transform_6(%arg0: i32) -> (i32, i32) {
    %c0_i32 = arith.constant 0 : i32
    %c0_i32_0 = arith.constant 0 : i32
    %c0_i32_1 = arith.constant 0 : i32
    return %c0_i32, %c0_i32_0 : i32, i32
  }
  func.func @transform_7(%arg0: i32) -> (i32, i32) {
    %c0_i32 = arith.constant 0 : i32
    %c0_i32_0 = arith.constant 0 : i32
    %c0_i32_1 = arith.constant 0 : i32
    return %c0_i32, %c0_i32_0 : i32, i32
  }
  func.func @transform_8(%arg0: i32) -> (i32, i32) {
    %c0_i32 = arith.constant 0 : i32
    %c0_i32_0 = arith.constant 0 : i32
    %c0_i32_1 = arith.constant 0 : i32
    return %c0_i32, %c0_i32_0 : i32, i32
  }
  func.func @transform_9(%arg0: i32) -> (i32, i32) {
    %c0_i32 = arith.constant 0 : i32
    %c0_i32_0 = arith.constant 0 : i32
    %c0_i32_1 = arith.constant 0 : i32
    return %c0_i32, %c0_i32_0 : i32, i32
  }
  func.func @transform_10(%arg0: i32) -> (i32, i32) {
    %c0_i32 = arith.constant 0 : i32
    %c0_i32_0 = arith.constant 0 : i32
    %c0_i32_1 = arith.constant 0 : i32
    return %c0_i32, %c0_i32_0 : i32, i32
  }
  func.func @transform_11(%arg0: i32) -> (i32, i32) {
    %c0_i32 = arith.constant 0 : i32
    %c0_i32_0 = arith.constant 0 : i32
    %c0_i32_1 = arith.constant 0 : i32
    return %c0_i32, %c0_i32_0 : i32, i32
  }
  func.func @transform_12(%arg0: i32) -> (i32, i32) {
    %c0_i32 = arith.constant 0 : i32
    %c0_i32_0 = arith.constant 0 : i32
    %c0_i32_1 = arith.constant 0 : i32
    return %c0_i32, %c0_i32_0 : i32, i32
  }
  func.func @transform_13(%arg0: i32) -> (i32, i32) {
    %c0_i32 = arith.constant 0 : i32
    %c0_i32_0 = arith.constant 0 : i32
    %c0_i32_1 = arith.constant 0 : i32
    return %c0_i32, %c0_i32_0 : i32, i32
  }
  func.func @transform_14(%arg0: i32) -> (i32, i32) {
    %c0_i32 = arith.constant 0 : i32
    %c0_i32_0 = arith.constant 0 : i32
    %c0_i32_1 = arith.constant 0 : i32
    return %c0_i32, %c0_i32_0 : i32, i32
  }
  func.func @transform_15(%arg0: i32) -> (i32, i32) {
    %c0_i32 = arith.constant 0 : i32
    %c0_i32_0 = arith.constant 0 : i32
    %c0_i32_1 = arith.constant 0 : i32
    return %c0_i32, %c0_i32_0 : i32, i32
  }
  func.func @transform_16(%arg0: i32) -> (i32, i32) {
    %c0_i32 = arith.constant 0 : i32
    %c0_i32_0 = arith.constant 0 : i32
    %c0_i32_1 = arith.constant 0 : i32
    return %c0_i32, %c0_i32_0 : i32, i32
  }
  func.func @transform_17(%arg0: i32) -> (i32, i32) {
    %c0_i32 = arith.constant 0 : i32
    %c0_i32_0 = arith.constant 0 : i32
    %c0_i32_1 = arith.constant 0 : i32
    return %c0_i32, %c0_i32_0 : i32, i32
  }
  func.func @transform_18(%arg0: i32) -> (i32, i32, i32) {
    %c0_i32 = arith.constant 0 : i32
    %c0_i32_0 = arith.constant 0 : i32
    %c0_i32_1 = arith.constant 0 : i32
    return %arg0, %c0_i32, %c0_i32_0 : i32, i32, i32
  }
}

</mosaic_0001>

<llo_original>
// kernel: upblock_forward.1
$region0: #{upblock_forward.1}
  #allocation0 [shape = 'u32[]', space=smem, size = 0x4, offset = 0x4, fixed_abs, tag = 'smem constant byte address 0x4 - core index']
  #allocation1 [shape = 'u32[144,128]{1,0:T(1,128)}', space=vmem, size = 0x12000, scoped, tag = 'internal scratch']
  %s0 = inlined_call_operand.vmem [shape: f32[2,8,256], index: 0, kind: input, shape index: {}]
  %s1 = inlined_call_operand.vmem [shape: f32[2,8,1024], index: 1, kind: input, shape index: {}]
  %s2 = inlined_call_operand.vmem [shape: f32[2,1,32], index: 2, kind: input, shape index: {}]
  %s3 = inlined_call_operand.vmem [shape: bf16[256,1024], index: 3, kind: input, shape index: {}]
  %s4 = inlined_call_operand.vmem [shape: bf16[16,144], index: 4, kind: input, shape index: {}]
  %s5 = inlined_call_operand.vmem [shape: f32[16,1], index: 5, kind: input, shape index: {}]
  %s6 = inlined_call_operand.vmem [shape: f32[16,1], index: 6, kind: input, shape index: {}]
  %s7 = inlined_call_operand.vmem [shape: bf16[16,144], index: 7, kind: input, shape index: {}]
  %s8 = inlined_call_operand.vmem [shape: f32[16,1], index: 8, kind: input, shape index: {}]
  %s9 = inlined_call_operand.vmem [shape: f32[16,1], index: 9, kind: input, shape index: {}]
  %s10 = inlined_call_operand.vmem [shape: bf16[8,144], index: 10, kind: input, shape index: {}]
  %s11 = inlined_call_operand.vmem [shape: f32[8,1], index: 11, kind: input, shape index: {}]
  %s12 = inlined_call_operand.vmem [shape: f32[8,1], index: 12, kind: input, shape index: {}]
  %s13 = inlined_call_operand.vmem [shape: bf16[16,72], index: 13, kind: input, shape index: {}]
  %s14 = inlined_call_operand.vmem [shape: f32[16,1], index: 14, kind: input, shape index: {}]
  %s15 = inlined_call_operand.vmem [shape: f32[16,1], index: 15, kind: input, shape index: {}]
  %s16 = inlined_call_operand.vmem [shape: f32[16,32], index: 16, kind: input, shape index: {}]
  %s17 = inlined_call_operand.vmem [shape: f32[16,1], index: 17, kind: input, shape index: {}]
  %s18 = inlined_call_operand.vmem [shape: f32[2,16,1024], index: 18, kind: output, shape index: {}]
  %s19 = sld [smem:[#allocation0]]
  $region105: #{upblock_forward.1} parent=0
    _
  %s21 = ssub.s32 1, %s19
  %s22 = scalar_select 0, %s21, %s19
  loop: start=0, step=1, limit=4
  $region2: #{upblock_forward.1} parent=0 // loop_pre_header
    _
  $region3: #{upblock_forward.1} parent=0 // loop_header
    %s24 = sphi 0, %s28
    %p25 = scmp.ge.s32.totalorder %s24, 4
    %s34 = sphi 0, %s36
    %s37 = sphi 0, %s34
    %s38 = sphi 0, %s37
    %s54 = sphi 0, %s38
    %s60 = sphi 0, %s62
    %s63 = sphi 0, %s60
    %s64 = sphi 0, %s63
    %s80 = sphi 0, %s64
    %s86 = sphi 0, %s88
    %s89 = sphi 0, %s86
    %s90 = sphi 0, %s89
    %s106 = sphi 0, %s90
    %s110 = sphi 0, %s110
    %s112 = sphi 0, %s110
    %s113 = sphi 0, %s112
    %s127 = sphi 0, %s113
    %s131 = sphi 0, %s131
    %s133 = sphi 0, %s131
    %s134 = sphi 0, %s133
    %s148 = sphi 0, %s134
    %s152 = sphi 0, %s152
    %s154 = sphi 0, %s152
    %s155 = sphi 0, %s154
    %s169 = sphi 0, %s155
    %s173 = sphi 0, %s173
    %s175 = sphi 0, %s173
    %s176 = sphi 0, %s175
    %s190 = sphi 0, %s176
    %s194 = sphi 0, %s194
    %s196 = sphi 0, %s194
    %s197 = sphi 0, %s196
    %s211 = sphi 0, %s197
    %s215 = sphi 0, %s215
    %s217 = sphi 0, %s215
    %s218 = sphi 0, %s217
    %s232 = sphi 0, %s218
    %s236 = sphi 0, %s236
    %s238 = sphi 0, %s236
    %s239 = sphi 0, %s238
    %s253 = sphi 0, %s239
    %s257 = sphi 0, %s257
    %s259 = sphi 0, %s257
    %s260 = sphi 0, %s259
    %s274 = sphi 0, %s260
    %s278 = sphi 0, %s278
    %s280 = sphi 0, %s278
    %s281 = sphi 0, %s280
    %s295 = sphi 0, %s281
    %s299 = sphi 0, %s299
    %s301 = sphi 0, %s299
    %s302 = sphi 0, %s301
    %s316 = sphi 0, %s302
    %s320 = sphi 0, %s320
    %s322 = sphi 0, %s320
    %s323 = sphi 0, %s322
    %s337 = sphi 0, %s323
    %s341 = sphi 0, %s341
    %s343 = sphi 0, %s341
    %s344 = sphi 0, %s343
    %s358 = sphi 0, %s344
    %s362 = sphi 0, %s362
    %s364 = sphi 0, %s362
    %s365 = sphi 0, %s364
    %s379 = sphi 0, %s365
    %s383 = sphi 0, %s383
    %s385 = sphi 0, %s383
    %s386 = sphi 0, %s385
    %s400 = sphi 0, %s386
    %s404 = sphi 0, %s404
    %s406 = sphi 0, %s404
    %s407 = sphi 0, %s406
    %s421 = sphi 0, %s407
    %s427 = sphi 0, %s429
    %s430 = sphi 0, %s427
    %s431 = sphi 0, %s430
    %s447 = sphi 0, %s431
  $region4: #{upblock_forward.1} parent=0 // loop_header_branch
    %27 = sbr.rel (%p25) target = $region8
  $region5: #{upblock_forward.1} parent=0 // loop_body
    %s29 = ssub.s32 %s24, 1
    %s30 = ssub.s32 %s24, 2
    %s31 = sadd.s32 %s24, 1
    %s32 = ssub.s32 %s24, %s31
    %p33 = scmp.eq.s32.totalorder %s32, 0
    %s35 = sadd.s32 %s34, 1
    %s36 = scalar_select %p33, %s34, %s35
    %p39 = pneg %p33
    %p40 = scmp.eq.s32.totalorder %s24, 1
    %p41 = por %p39, %p40
    %p42 = scmp.ne.s32.totalorder %s34, %s37
    %p43 = scmp.eq.s32.totalorder %s24, 0
    %p44 = por %p42, %p43
    %p45 = scmp.ne.s32.totalorder %s34, %s37
    %p46 = scmp.eq.s32.totalorder %s29, 1
    %p47 = por %p45, %p46
    %p48 = scmp.ne.s32.totalorder %s37, %s38
    %p49 = scmp.eq.s32.totalorder %s29, 0
    %p50 = por %p48, %p49
    %p51 = scmp.ne.s32.totalorder %s37, %s38
    %p52 = scmp.eq.s32.totalorder %s30, 1
    %p53 = por %p51, %p52
    %p55 = scmp.ne.s32.totalorder %s38, %s54
    %p56 = scmp.eq.s32.totalorder %s30, 0
    %p57 = por %p55, %p56
    %s58 = ssub.s32 %s24, %s31
    %p59 = scmp.eq.s32.totalorder %s58, 0
    %s61 = sadd.s32 %s60, 1
    %s62 = scalar_select %p59, %s60, %s61
    %p65 = pneg %p59
    %p66 = scmp.eq.s32.totalorder %s24, 1
    %p67 = por %p65, %p66
    %p68 = scmp.ne.s32.totalorder %s60, %s63
    %p69 = scmp.eq.s32.totalorder %s24, 0
    %p70 = por %p68, %p69
    %p71 = scmp.ne.s32.totalorder %s60, %s63
    %p72 = scmp.eq.s32.totalorder %s29, 1
    %p73 = por %p71, %p72
    %p74 = scmp.ne.s32.totalorder %s63, %s64
    %p75 = scmp.eq.s32.totalorder %s29, 0
    %p76 = por %p74, %p75
    %p77 = scmp.ne.s32.totalorder %s63, %s64
    %p78 = scmp.eq.s32.totalorder %s30, 1
    %p79 = por %p77, %p78
    %p81 = scmp.ne.s32.totalorder %s64, %s80
    %p82 = scmp.eq.s32.totalorder %s30, 0
    %p83 = por %p81, %p82
    %s84 = ssub.s32 %s24, %s31
    %p85 = scmp.eq.s32.totalorder %s84, 0
    %s87 = sadd.s32 %s86, 1
    %s88 = scalar_select %p85, %s86, %s87
    %p91 = pneg %p85
    %p92 = scmp.eq.s32.totalorder %s24, 1
    %p93 = por %p91, %p92
    %p94 = scmp.ne.s32.totalorder %s86, %s89
    %p95 = scmp.eq.s32.totalorder %s24, 0
    %p96 = por %p94, %p95
    %p97 = scmp.ne.s32.totalorder %s86, %s89
    %p98 = scmp.eq.s32.totalorder %s29, 1
    %p99 = por %p97, %p98
    %p100 = scmp.ne.s32.totalorder %s89, %s90
    %p101 = scmp.eq.s32.totalorder %s29, 0
    %p102 = por %p100, %p101
    %p103 = scmp.ne.s32.totalorder %s89, %s90
    %p104 = scmp.eq.s32.totalorder %s30, 1
    %p105 = por %p103, %p104
    %p107 = scmp.ne.s32.totalorder %s90, %s106
    %p108 = scmp.eq.s32.totalorder %s30, 0
    %p109 = por %p107, %p108
    %s111 = sadd.s32 %s110, 1
    %p114 = scmp.eq.s32.totalorder %s24, 1
    %p115 = scmp.ne.s32.totalorder %s110, %s112
    %p116 = scmp.eq.s32.totalorder %s24, 0
    %p117 = por %p115, %p116
    %p118 = scmp.ne.s32.totalorder %s110, %s112
    %p119 = scmp.eq.s32.totalorder %s29, 1
    %p120 = por %p118, %p119
    %p121 = scmp.ne.s32.totalorder %s112, %s113
    %p122 = scmp.eq.s32.totalorder %s29, 0
    %p123 = por %p121, %p122
    %p124 = scmp.ne.s32.totalorder %s112, %s113
    %p125 = scmp.eq.s32.totalorder %s30, 1
    %p126 = por %p124, %p125
    %p128 = scmp.ne.s32.totalorder %s113, %s127
    %p129 = scmp.eq.s32.totalorder %s30, 0
    %p130 = por %p128, %p129
    %s132 = sadd.s32 %s131, 1
    %p135 = scmp.eq.s32.totalorder %s24, 1
    %p136 = scmp.ne.s32.totalorder %s131, %s133
    %p137 = scmp.eq.s32.totalorder %s24, 0
    %p138 = por %p136, %p137
    %p139 = scmp.ne.s32.totalorder %s131, %s133
    %p140 = scmp.eq.s32.totalorder %s29, 1
    %p141 = por %p139, %p140
    %p142 = scmp.ne.s32.totalorder %s133, %s134
    %p143 = scmp.eq.s32.totalorder %s29, 0
    %p144 = por %p142, %p143
    %p145 = scmp.ne.s32.totalorder %s133, %s134
    %p146 = scmp.eq.s32.totalorder %s30, 1
    %p147 = por %p145, %p146
    %p149 = scmp.ne.s32.totalorder %s134, %s148
    %p150 = scmp.eq.s32.totalorder %s30, 0
    %p151 = por %p149, %p150
    %s153 = sadd.s32 %s152, 1
    %p156 = scmp.eq.s32.totalorder %s24, 1
    %p157 = scmp.ne.s32.totalorder %s152, %s154
    %p158 = scmp.eq.s32.totalorder %s24, 0
    %p159 = por %p157, %p158
    %p160 = scmp.ne.s32.totalorder %s152, %s154
    %p161 = scmp.eq.s32.totalorder %s29, 1
    %p162 = por %p160, %p161
    %p163 = scmp.ne.s32.totalorder %s154, %s155
    %p164 = scmp.eq.s32.totalorder %s29, 0
    %p165 = por %p163, %p164
    %p166 = scmp.ne.s32.totalorder %s154, %s155
    %p167 = scmp.eq.s32.totalorder %s30, 1
    %p168 = por %p166, %p167
    %p170 = scmp.ne.s32.totalorder %s155, %s169
    %p171 = scmp.eq.s32.totalorder %s30, 0
    %p172 = por %p170, %p171
    %s174 = sadd.s32 %s173, 1
    %p177 = scmp.eq.s32.totalorder %s24, 1
    %p178 = scmp.ne.s32.totalorder %s173, %s175
    %p179 = scmp.eq.s32.totalorder %s24, 0
    %p180 = por %p178, %p179
    %p181 = scmp.ne.s32.totalorder %s173, %s175
    %p182 = scmp.eq.s32.totalorder %s29, 1
    %p183 = por %p181, %p182
    %p184 = scmp.ne.s32.totalorder %s175, %s176
    %p185 = scmp.eq.s32.totalorder %s29, 0
    %p186 = por %p184, %p185
    %p187 = scmp.ne.s32.totalorder %s175, %s176
    %p188 = scmp.eq.s32.totalorder %s30, 1
    %p189 = por %p187, %p188
    %p191 = scmp.ne.s32.totalorder %s176, %s190
    %p192 = scmp.eq.s32.totalorder %s30, 0
    %p193 = por %p191, %p192
    %s195 = sadd.s32 %s194, 1
    %p198 = scmp.eq.s32.totalorder %s24, 1
    %p199 = scmp.ne.s32.totalorder %s194, %s196
    %p200 = scmp.eq.s32.totalorder %s24, 0
    %p201 = por %p199, %p200
    %p202 = scmp.ne.s32.totalorder %s194, %s196
    %p203 = scmp.eq.s32.totalorder %s29, 1
    %p204 = por %p202, %p203
    %p205 = scmp.ne.s32.totalorder %s196, %s197
    %p206 = scmp.eq.s32.totalorder %s29, 0
    %p207 = por %p205, %p206
    %p208 = scmp.ne.s32.totalorder %s196, %s197
    %p209 = scmp.eq.s32.totalorder %s30, 1
    %p210 = por %p208, %p209
    %p212 = scmp.ne.s32.totalorder %s197, %s211
    %p213 = scmp.eq.s32.totalorder %s30, 0
    %p214 = por %p212, %p213
    %s216 = sadd.s32 %s215, 1
    %p219 = scmp.eq.s32.totalorder %s24, 1
    %p220 = scmp.ne.s32.totalorder %s215, %s217
    %p221 = scmp.eq.s32.totalorder %s24, 0
    %p222 = por %p220, %p221
    %p223 = scmp.ne.s32.totalorder %s215, %s217
    %p224 = scmp.eq.s32.totalorder %s29, 1
    %p225 = por %p223, %p224
    %p226 = scmp.ne.s32.totalorder %s217, %s218
    %p227 = scmp.eq.s32.totalorder %s29, 0
    %p228 = por %p226, %p227
    %p229 = scmp.ne.s32.totalorder %s217, %s218
    %p230 = scmp.eq.s32.totalorder %s30, 1
    %p231 = por %p229, %p230
    %p233 = scmp.ne.s32.totalorder %s218, %s232
    %p234 = scmp.eq.s32.totalorder %s30, 0
    %p235 = por %p233, %p234
    %s237 = sadd.s32 %s236, 1
    %p240 = scmp.eq.s32.totalorder %s24, 1
    %p241 = scmp.ne.s32.totalorder %s236, %s238
    %p242 = scmp.eq.s32.totalorder %s24, 0
    %p243 = por %p241, %p242
    %p244 = scmp.ne.s32.totalorder %s236, %s238
    %p245 = scmp.eq.s32.totalorder %s29, 1
    %p246 = por %p244, %p245
    %p247 = scmp.ne.s32.totalorder %s238, %s239
    %p248 = scmp.eq.s32.totalorder %s29, 0
    %p249 = por %p247, %p248
    %p250 = scmp.ne.s32.totalorder %s238, %s239
    %p251 = scmp.eq.s32.totalorder %s30, 1
    %p252 = por %p250, %p251
    %p254 = scmp.ne.s32.totalorder %s239, %s253
    %p255 = scmp.eq.s32.totalorder %s30, 0
    %p256 = por %p254, %p255
    %s258 = sadd.s32 %s257, 1
    %p261 = scmp.eq.s32.totalorder %s24, 1
    %p262 = scmp.ne.s32.totalorder %s257, %s259
    %p263 = scmp.eq.s32.totalorder %s24, 0
    %p264 = por %p262, %p263
    %p265 = scmp.ne.s32.totalorder %s257, %s259
    %p266 = scmp.eq.s32.totalorder %s29, 1
    %p267 = por %p265, %p266
    %p268 = scmp.ne.s32.totalorder %s259, %s260
    %p269 = scmp.eq.s32.totalorder %s29, 0
    %p270 = por %p268, %p269
    %p271 = scmp.ne.s32.totalorder %s259, %s260
    %p272 = scmp.eq.s32.totalorder %s30, 1
    %p273 = por %p271, %p272
    %p275 = scmp.ne.s32.totalorder %s260, %s274
    %p276 = scmp.eq.s32.totalorder %s30, 0
    %p277 = por %p275, %p276
    %s279 = sadd.s32 %s278, 1
    %p282 = scmp.eq.s32.totalorder %s24, 1
    %p283 = scmp.ne.s32.totalorder %s278, %s280
    %p284 = scmp.eq.s32.totalorder %s24, 0
    %p285 = por %p283, %p284
    %p286 = scmp.ne.s32.totalorder %s278, %s280
    %p287 = scmp.eq.s32.totalorder %s29, 1
    %p288 = por %p286, %p287
    %p289 = scmp.ne.s32.totalorder %s280, %s281
    %p290 = scmp.eq.s32.totalorder %s29, 0
    %p291 = por %p289, %p290
    %p292 = scmp.ne.s32.totalorder %s280, %s281
    %p293 = scmp.eq.s32.totalorder %s30, 1
    %p294 = por %p292, %p293
    %p296 = scmp.ne.s32.totalorder %s281, %s295
    %p297 = scmp.eq.s32.totalorder %s30, 0
    %p298 = por %p296, %p297
    %s300 = sadd.s32 %s299, 1
    %p303 = scmp.eq.s32.totalorder %s24, 1
    %p304 = scmp.ne.s32.totalorder %s299, %s301
    %p305 = scmp.eq.s32.totalorder %s24, 0
    %p306 = por %p304, %p305
    %p307 = scmp.ne.s32.totalorder %s299, %s301
    %p308 = scmp.eq.s32.totalorder %s29, 1
    %p309 = por %p307, %p308
    %p310 = scmp.ne.s32.totalorder %s301, %s302
    %p311 = scmp.eq.s32.totalorder %s29, 0
    %p312 = por %p310, %p311
    %p313 = scmp.ne.s32.totalorder %s301, %s302
    %p314 = scmp.eq.s32.totalorder %s30, 1
    %p315 = por %p313, %p314
    %p317 = scmp.ne.s32.totalorder %s302, %s316
    %p318 = scmp.eq.s32.totalorder %s30, 0
    %p319 = por %p317, %p318
    %s321 = sadd.s32 %s320, 1
    %p324 = scmp.eq.s32.totalorder %s24, 1
    %p325 = scmp.ne.s32.totalorder %s320, %s322
    %p326 = scmp.eq.s32.totalorder %s24, 0
    %p327 = por %p325, %p326
    %p328 = scmp.ne.s32.totalorder %s320, %s322
    %p329 = scmp.eq.s32.totalorder %s29, 1
    %p330 = por %p328, %p329
    %p331 = scmp.ne.s32.totalorder %s322, %s323
    %p332 = scmp.eq.s32.totalorder %s29, 0
    %p333 = por %p331, %p332
    %p334 = scmp.ne.s32.totalorder %s322, %s323
    %p335 = scmp.eq.s32.totalorder %s30, 1
    %p336 = por %p334, %p335
    %p338 = scmp.ne.s32.totalorder %s323, %s337
    %p339 = scmp.eq.s32.totalorder %s30, 0
    %p340 = por %p338, %p339
    %s342 = sadd.s32 %s341, 1
    %p345 = scmp.eq.s32.totalorder %s24, 1
    %p346 = scmp.ne.s32.totalorder %s341, %s343
    %p347 = scmp.eq.s32.totalorder %s24, 0
    %p348 = por %p346, %p347
    %p349 = scmp.ne.s32.totalorder %s341, %s343
    %p350 = scmp.eq.s32.totalorder %s29, 1
    %p351 = por %p349, %p350
    %p352 = scmp.ne.s32.totalorder %s343, %s344
    %p353 = scmp.eq.s32.totalorder %s29, 0
    %p354 = por %p352, %p353
    %p355 = scmp.ne.s32.totalorder %s343, %s344
    %p356 = scmp.eq.s32.totalorder %s30, 1
    %p357 = por %p355, %p356
    %p359 = scmp.ne.s32.totalorder %s344, %s358
    %p360 = scmp.eq.s32.totalorder %s30, 0
    %p361 = por %p359, %p360
    %s363 = sadd.s32 %s362, 1
    %p366 = scmp.eq.s32.totalorder %s24, 1
    %p367 = scmp.ne.s32.totalorder %s362, %s364
    %p368 = scmp.eq.s32.totalorder %s24, 0
    %p369 = por %p367, %p368
    %p370 = scmp.ne.s32.totalorder %s362, %s364
    %p371 = scmp.eq.s32.totalorder %s29, 1
    %p372 = por %p370, %p371
    %p373 = scmp.ne.s32.totalorder %s364, %s365
    %p374 = scmp.eq.s32.totalorder %s29, 0
    %p375 = por %p373, %p374
    %p376 = scmp.ne.s32.totalorder %s364, %s365
    %p377 = scmp.eq.s32.totalorder %s30, 1
    %p378 = por %p376, %p377
    %p380 = scmp.ne.s32.totalorder %s365, %s379
    %p381 = scmp.eq.s32.totalorder %s30, 0
    %p382 = por %p380, %p381
    %s384 = sadd.s32 %s383, 1
    %p387 = scmp.eq.s32.totalorder %s24, 1
    %p388 = scmp.ne.s32.totalorder %s383, %s385
    %p389 = scmp.eq.s32.totalorder %s24, 0
    %p390 = por %p388, %p389
    %p391 = scmp.ne.s32.totalorder %s383, %s385
    %p392 = scmp.eq.s32.totalorder %s29, 1
    %p393 = por %p391, %p392
    %p394 = scmp.ne.s32.totalorder %s385, %s386
    %p395 = scmp.eq.s32.totalorder %s29, 0
    %p396 = por %p394, %p395
    %p397 = scmp.ne.s32.totalorder %s385, %s386
    %p398 = scmp.eq.s32.totalorder %s30, 1
    %p399 = por %p397, %p398
    %p401 = scmp.ne.s32.totalorder %s386, %s400
    %p402 = scmp.eq.s32.totalorder %s30, 0
    %p403 = por %p401, %p402
    %s405 = sadd.s32 %s404, 1
    %p408 = scmp.eq.s32.totalorder %s24, 1
    %p409 = scmp.ne.s32.totalorder %s404, %s406
    %p410 = scmp.eq.s32.totalorder %s24, 0
    %p411 = por %p409, %p410
    %p412 = scmp.ne.s32.totalorder %s404, %s406
    %p413 = scmp.eq.s32.totalorder %s29, 1
    %p414 = por %p412, %p413
    %p415 = scmp.ne.s32.totalorder %s406, %s407
    %p416 = scmp.eq.s32.totalorder %s29, 0
    %p417 = por %p415, %p416
    %p418 = scmp.ne.s32.totalorder %s406, %s407
    %p419 = scmp.eq.s32.totalorder %s30, 1
    %p420 = por %p418, %p419
    %p422 = scmp.ne.s32.totalorder %s407, %s421
    %p423 = scmp.eq.s32.totalorder %s30, 0
    %p424 = por %p422, %p423
    %s425 = ssub.s32 %s24, %s31
    %p426 = scmp.eq.s32.totalorder %s425, 0
    %s428 = sadd.s32 %s427, 1
    %s429 = scalar_select %p426, %s427, %s428
    %p432 = pneg %p426
    %p433 = scmp.eq.s32.totalorder %s24, 1
    %p434 = por %p432, %p433
    %p435 = scmp.ne.s32.totalorder %s427, %s430
    %p436 = scmp.eq.s32.totalorder %s24, 0
    %p437 = por %p435, %p436
    %p438 = scmp.ne.s32.totalorder %s427, %s430
    %p439 = scmp.eq.s32.totalorder %s29, 1
    %p440 = por %p438, %p439
    %p441 = scmp.ne.s32.totalorder %s430, %s431
    %p442 = scmp.eq.s32.totalorder %s29, 0
    %p443 = por %p441, %p442
    %p444 = scmp.ne.s32.totalorder %s430, %s431
    %p445 = scmp.eq.s32.totalorder %s30, 1
    %p446 = por %p444, %p445
    %p448 = scmp.ne.s32.totalorder %s431, %s447
    %p449 = scmp.eq.s32.totalorder %s30, 0
    %p450 = por %p448, %p449
    %p451 = scmp.le.s32.totalorder 1, %s24
    %p452 = scmp.lt.s32.totalorder %s24, 3
    %p453 = pnand %p451, %p452
    %p454 = pneg %p453
    // Predicated region
    $region9: #{upblock_forward.1} parent=5 // pred_check
      _
    $region10: #{upblock_forward.1} parent=5 // pred_check_branch
      %456 = sbr.rel (%p453) target = $region12
    $region11: #{upblock_forward.1} parent=5 // pred_region
      %s457 = ssub.s32 %s24, 1
      // Predicated region
      $region13: #{upblock_forward.1} parent=11 // pred_check
        %p458 = pneg %p123
      $region14: #{upblock_forward.1} parent=11 // pred_check_branch
        %460 = sbr.rel (%p458) target = $region16
      $region15: #{upblock_forward.1} parent=11 // pred_region
        _
      $region16: #{upblock_forward.1} parent=11 // pred_fallthru
        _
      // Predicated region
      $region17: #{upblock_forward.1} parent=11 // pred_check
        %p461 = pneg %p144
      $region18: #{upblock_forward.1} parent=11 // pred_check_branch
        %463 = sbr.rel (%p461) target = $region20
      $region19: #{upblock_forward.1} parent=11 // pred_region
        _
      $region20: #{upblock_forward.1} parent=11 // pred_fallthru
        _
      // Predicated region
      $region21: #{upblock_forward.1} parent=11 // pred_check
        %p464 = pneg %p165
      $region22: #{upblock_forward.1} parent=11 // pred_check_branch
        %466 = sbr.rel (%p464) target = $region24
      $region23: #{upblock_forward.1} parent=11 // pred_region
        _
      $region24: #{upblock_forward.1} parent=11 // pred_fallthru
        _
      // Predicated region
      $region25: #{upblock_forward.1} parent=11 // pred_check
        %p467 = pneg %p186
      $region26: #{upblock_forward.1} parent=11 // pred_check_branch
        %469 = sbr.rel (%p467) target = $region28
      $region27: #{upblock_forward.1} parent=11 // pred_region
        _
      $region28: #{upblock_forward.1} parent=11 // pred_fallthru
        _
      // Predicated region
      $region29: #{upblock_forward.1} parent=11 // pred_check
        %p470 = pneg %p207
      $region30: #{upblock_forward.1} parent=11 // pred_check_branch
        %472 = sbr.rel (%p470) target = $region32
      $region31: #{upblock_forward.1} parent=11 // pred_region
        _
      $region32: #{upblock_forward.1} parent=11 // pred_fallthru
        _
      // Predicated region
      $region33: #{upblock_forward.1} parent=11 // pred_check
        %p473 = pneg %p228
      $region34: #{upblock_forward.1} parent=11 // pred_check_branch
        %475 = sbr.rel (%p473) target = $region36
      $region35: #{upblock_forward.1} parent=11 // pred_region
        _
      $region36: #{upblock_forward.1} parent=11 // pred_fallthru
        _
      // Predicated region
      $region37: #{upblock_forward.1} parent=11 // pred_check
        %p476 = pneg %p249
      $region38: #{upblock_forward.1} parent=11 // pred_check_branch
        %478 = sbr.rel (%p476) target = $region40
      $region39: #{upblock_forward.1} parent=11 // pred_region
        _
      $region40: #{upblock_forward.1} parent=11 // pred_fallthru
        _
      // Predicated region
      $region41: #{upblock_forward.1} parent=11 // pred_check
        %p479 = pneg %p270
      $region42: #{upblock_forward.1} parent=11 // pred_check_branch
        %481 = sbr.rel (%p479) target = $region44
      $region43: #{upblock_forward.1} parent=11 // pred_region
        _
      $region44: #{upblock_forward.1} parent=11 // pred_fallthru
        _
      // Predicated region
      $region45: #{upblock_forward.1} parent=11 // pred_check
        %p482 = pneg %p291
      $region46: #{upblock_forward.1} parent=11 // pred_check_branch
        %484 = sbr.rel (%p482) target = $region48
      $region47: #{upblock_forward.1} parent=11 // pred_region
        _
      $region48: #{upblock_forward.1} parent=11 // pred_fallthru
        _
      // Predicated region
      $region49: #{upblock_forward.1} parent=11 // pred_check
        %p485 = pneg %p312
      $region50: #{upblock_forward.1} parent=11 // pred_check_branch
        %487 = sbr.rel (%p485) target = $region52
      $region51: #{upblock_forward.1} parent=11 // pred_region
        _
      $region52: #{upblock_forward.1} parent=11 // pred_fallthru
        _
      // Predicated region
      $region53: #{upblock_forward.1} parent=11 // pred_check
        %p488 = pneg %p333
      $region54: #{upblock_forward.1} parent=11 // pred_check_branch
        %490 = sbr.rel (%p488) target = $region56
      $region55: #{upblock_forward.1} parent=11 // pred_region
        _
      $region56: #{upblock_forward.1} parent=11 // pred_fallthru
        _
      // Predicated region
      $region57: #{upblock_forward.1} parent=11 // pred_check
        %p491 = pneg %p354
      $region58: #{upblock_forward.1} parent=11 // pred_check_branch
        %493 = sbr.rel (%p491) target = $region60
      $region59: #{upblock_forward.1} parent=11 // pred_region
        _
      $region60: #{upblock_forward.1} parent=11 // pred_fallthru
        _
      // Predicated region
      $region61: #{upblock_forward.1} parent=11 // pred_check
        %p494 = pneg %p375
      $region62: #{upblock_forward.1} parent=11 // pred_check_branch
        %496 = sbr.rel (%p494) target = $region64
      $region63: #{upblock_forward.1} parent=11 // pred_region
        _
      $region64: #{upblock_forward.1} parent=11 // pred_fallthru
        _
      // Predicated region
      $region65: #{upblock_forward.1} parent=11 // pred_check
        %p497 = pneg %p396
      $region66: #{upblock_forward.1} parent=11 // pred_check_branch
        %499 = sbr.rel (%p497) target = $region68
      $region67: #{upblock_forward.1} parent=11 // pred_region
        _
      $region68: #{upblock_forward.1} parent=11 // pred_fallthru
        _
      // Predicated region
      $region69: #{upblock_forward.1} parent=11 // pred_check
        %p500 = pneg %p417
      $region70: #{upblock_forward.1} parent=11 // pred_check_branch
        %502 = sbr.rel (%p500) target = $region72
      $region71: #{upblock_forward.1} parent=11 // pred_region
        _
      $region72: #{upblock_forward.1} parent=11 // pred_fallthru
        _
    $region12: #{upblock_forward.1} parent=5 // pred_fallthru
      _
    %p503 = scmp.lt.s32.totalorder %s24, 2
    // Predicated region
    $region73: #{upblock_forward.1} parent=5 // pred_check
      %p504 = pneg %p503
    $region74: #{upblock_forward.1} parent=5 // pred_check_branch
      %506 = sbr.rel (%p504) target = $region76
    $region75: #{upblock_forward.1} parent=5 // pred_region
      // Predicated region
      $region77: #{upblock_forward.1} parent=75 // pred_check
        %p507 = pneg %p44
      $region78: #{upblock_forward.1} parent=75 // pred_check_branch
        %509 = sbr.rel (%p507) target = $region80
      $region79: #{upblock_forward.1} parent=75 // pred_region
        %p510 = scmp.lt.s32.totalorder %s24, 1
        %s511 = scalar_select %p510, %s24, 1
        %s512 = smul.addr %s511, 2
        %s513 = smul.addr %s512, 8
        %s514 = scalar_lea.vmem %s0, %s513
      $region80: #{upblock_forward.1} parent=75 // pred_fallthru
        _
      // Predicated region
      $region81: #{upblock_forward.1} parent=75 // pred_check
        %p515 = pneg %p70
      $region82: #{upblock_forward.1} parent=75 // pred_check_branch
        %517 = sbr.rel (%p515) target = $region84
      $region83: #{upblock_forward.1} parent=75 // pred_region
        %p518 = scmp.lt.s32.totalorder %s24, 1
        %s519 = scalar_select %p518, %s24, 1
        %s520 = smul.addr %s519, 8
        %s521 = smul.addr %s520, 8
        %s522 = scalar_lea.vmem %s1, %s521
      $region84: #{upblock_forward.1} parent=75 // pred_fallthru
        _
      // Predicated region
      $region85: #{upblock_forward.1} parent=75 // pred_check
        %p523 = pneg %p96
      $region86: #{upblock_forward.1} parent=75 // pred_check_branch
        %525 = sbr.rel (%p523) target = $region88
      $region87: #{upblock_forward.1} parent=75 // pred_region
        %p526 = scmp.lt.s32.totalorder %s24, 1
        %s527 = scalar_select %p526, %s24, 1
        %s528 = scalar_lea.vmem %s2, %s527
      $region88: #{upblock_forward.1} parent=75 // pred_fallthru
        _
    $region76: #{upblock_forward.1} parent=5 // pred_fallthru
      _
    %p529 = scmp.le.s32.totalorder 1, %s24
    %p530 = scmp.lt.s32.totalorder %s24, 3
    %p531 = pnand %p529, %p530
    %p532 = pneg %p531
    // Predicated region
    $region89: #{upblock_forward.1} parent=5 // pred_check
      _
    $region90: #{upblock_forward.1} parent=5 // pred_check_branch
      %534 = sbr.rel (%p531) target = $region92
    $region91: #{upblock_forward.1} parent=5 // pred_region
      %s535 = ssub.s32 %s24, 1
      %p536 = scmp.lt.s32.totalorder %s29, 1
      %s537 = scalar_select %p536, %s29, 1
      %s538 = smul.addr %s537, 2
      %s539 = smul.addr %s538, 8
      %s540 = scalar_lea.vmem %s0, %s539
      %p541 = pneg %p50
      %p542 = pneg %p47
      %p543 = scmp.lt.s32.totalorder %s29, 1
      %s544 = scalar_select %p543, %s29, 1
      %s545 = smul.addr %s544, 8
      %s546 = smul.addr %s545, 8
      %s547 = scalar_lea.vmem %s1, %s546
      %p548 = pneg %p76
      %p549 = pneg %p73
      %p550 = scmp.lt.s32.totalorder %s29, 1
      %s551 = scalar_select %p550, %s29, 1
      %s552 = scalar_lea.vmem %s2, %s551
      %p553 = pneg %p102
      %p554 = pneg %p99
      %p555 = pneg %p123
      %p556 = pneg %p120
      %p557 = pneg %p144
      %p558 = pneg %p141
      %p559 = pneg %p165
      %p560 = pneg %p162
      %p561 = pneg %p186
      %p562 = pneg %p183
      %p563 = pneg %p207
      %p564 = pneg %p204
      %p565 = pneg %p228
      %p566 = pneg %p225
      %p567 = pneg %p249
      %p568 = pneg %p246
      %p569 = pneg %p270
      %p570 = pneg %p267
      %p571 = pneg %p291
      %p572 = pneg %p288
      %p573 = pneg %p312
      %p574 = pneg %p309
      %p575 = pneg %p333
      %p576 = pneg %p330
      %p577 = pneg %p354
      %p578 = pneg %p351
      %p579 = pneg %p375
      %p580 = pneg %p372
      %p581 = pneg %p396
      %p582 = pneg %p393
      %p583 = pneg %p417
      %p584 = pneg %p414
      %p585 = pneg %p443
      %p586 = pneg %p440
      %p587 = scmp.lt.s32.totalorder %s29, 1
      %s588 = scalar_select %p587, %s29, 1
      %s589 = smul.addr %s588, 16
      %s590 = smul.addr %s589, 8
      %s591 = scalar_lea.vmem %s18, %s590
      %p592 = scmp.lt.s32.totalorder %s29, 1
      %s593 = scalar_select %p592, %s29, 1
      %s594 = smul.addr %s593, 2
      %s595 = smul.addr %s594, 8
      %s596 = scalar_lea.vmem %s0, %s595
      %p597 = scmp.lt.s32.totalorder %s29, 1
      %s598 = scalar_select %p597, %s29, 1
      %s599 = smul.addr %s598, 8
      %s600 = smul.addr %s599, 8
      %s601 = scalar_lea.vmem %s1, %s600
      %p602 = scmp.lt.s32.totalorder %s29, 1
      %s603 = scalar_select %p602, %s29, 1
      %s604 = scalar_lea.vmem %s2, %s603
      %p605 = scmp.lt.s32.totalorder %s29, 1
      %s606 = scalar_select %p605, %s29, 1
      %s607 = smul.addr %s606, 16
      %s608 = smul.addr %s607, 8
      %s609 = scalar_lea.vmem %s18, %s608
      %v611 = vlaneseq
      %v612 = vand.u32 %v611, 127
      %v613 = vadd.s32 %v612, 128
      %v614 = vadd.s32 %v612, 256
      %v615 = vadd.s32 %v612, 384
      %v616 = vadd.s32 %v612, 512
      %v617 = vadd.s32 %v612, 640
      %v618 = vadd.s32 %v612, 768
      %v619 = vadd.s32 %v612, 896
      %v620 = vcvt.s32.f32 %v612
      %v621 = vcvt.s32.f32 %v613
      %v622 = vcvt.s32.f32 %v614
      %v623 = vcvt.s32.f32 %v615
      %v624 = vcvt.s32.f32 %v616
      %v625 = vcvt.s32.f32 %v617
      %v626 = vcvt.s32.f32 %v618
      %v627 = vcvt.s32.f32 %v619
      %v628 = vrcp.pop 32.0
      %v629 = vmul.f32 %v620, %v628
      %v630 = vmul.f32 %v621, %v628
      %v631 = vmul.f32 %v622, %v628
      %v632 = vmul.f32 %v623, %v628
      %v633 = vmul.f32 %v624, %v628
      %v634 = vmul.f32 %v625, %v628
      %v635 = vmul.f32 %v626, %v628
      %v636 = vmul.f32 %v627, %v628
      %v637 = vfloor.f32 %v629
      %v638 = vfloor.f32 %v630
      %v639 = vfloor.f32 %v631
      %v640 = vfloor.f32 %v632
      %v641 = vfloor.f32 %v633
      %v642 = vfloor.f32 %v634
      %v643 = vfloor.f32 %v635
      %v644 = vfloor.f32 %v636
      %v645 = vmul.f32 %v637, 32.0
      %v646 = vmul.f32 %v638, 32.0
      %v647 = vmul.f32 %v639, 32.0
      %v648 = vmul.f32 %v640, 32.0
      %v649 = vmul.f32 %v641, 32.0
      %v650 = vmul.f32 %v642, 32.0
      %v651 = vmul.f32 %v643, 32.0
      %v652 = vmul.f32 %v644, 32.0
      %v653 = vsub.f32 %v620, %v645
      %v654 = vsub.f32 %v621, %v646
      %v655 = vsub.f32 %v622, %v647
      %v656 = vsub.f32 %v623, %v648
      %v657 = vsub.f32 %v624, %v649
      %v658 = vsub.f32 %v625, %v650
      %v659 = vsub.f32 %v626, %v651
      %v660 = vsub.f32 %v627, %v652
      %vm661 = vcmp.gt.f32.partialorder %v637, 0.5
      %vm662 = vcmp.gt.f32.partialorder %v638, 0.5
      %vm663 = vcmp.gt.f32.partialorder %v639, 0.5
      %vm664 = vcmp.gt.f32.partialorder %v640, 0.5
      %vm665 = vcmp.gt.f32.partialorder %v641, 0.5
      %vm666 = vcmp.gt.f32.partialorder %v642, 0.5
      %vm667 = vcmp.gt.f32.partialorder %v643, 0.5
      %vm668 = vcmp.gt.f32.partialorder %v644, 0.5
      %vm669 = vcmp.gt.f32.partialorder %v653, 0.5
      %vm670 = vcmp.gt.f32.partialorder %v654, 0.5
      %vm671 = vcmp.gt.f32.partialorder %v655, 0.5
      %vm672 = vcmp.gt.f32.partialorder %v656, 0.5
      %vm673 = vcmp.gt.f32.partialorder %v657, 0.5
      %vm674 = vcmp.gt.f32.partialorder %v658, 0.5
      %vm675 = vcmp.gt.f32.partialorder %v659, 0.5
      %vm676 = vcmp.gt.f32.partialorder %v660, 0.5
      %vm677 = vmand %vm661, %vm669
      %vm678 = vmand %vm662, %vm670
      %vm679 = vmand %vm663, %vm671
      %vm680 = vmand %vm664, %vm672
      %vm681 = vmand %vm665, %vm673
      %vm682 = vmand %vm666, %vm674
      %vm683 = vmand %vm667, %vm675
      %vm684 = vmand %vm668, %vm676
      %v685 = vsel %vm677, 1, 0
      %v686 = vsel %vm678, 1, 0
      %v687 = vsel %vm679, 1, 0
      %v688 = vsel %vm680, 1, 0
      %v689 = vsel %vm681, 1, 0
      %v690 = vsel %vm682, 1, 0
      %v691 = vsel %vm683, 1, 0
      %v692 = vsel %vm684, 1, 0
      %v693 = vcvt.s32.f32 %v685
      %v694 = vcvt.s32.f32 %v686
      %v695 = vcvt.s32.f32 %v687
      %v696 = vcvt.s32.f32 %v688
      %v697 = vcvt.s32.f32 %v689
      %v698 = vcvt.s32.f32 %v690
      %v699 = vcvt.s32.f32 %v691
      %v700 = vcvt.s32.f32 %v692
      %v701 = vsel %vm661, 1, 0
      %v702 = vsel %vm662, 1, 0
      %v703 = vsel %vm663, 1, 0
      %v704 = vsel %vm664, 1, 0
      %v705 = vsel %vm665, 1, 0
      %v706 = vsel %vm666, 1, 0
      %v707 = vsel %vm667, 1, 0
      %v708 = vsel %vm668, 1, 0
      %v709 = vcvt.s32.f32 %v701
      %v710 = vcvt.s32.f32 %v702
      %v711 = vcvt.s32.f32 %v703
      %v712 = vcvt.s32.f32 %v704
      %v713 = vcvt.s32.f32 %v705
      %v714 = vcvt.s32.f32 %v706
      %v715 = vcvt.s32.f32 %v707
      %v716 = vcvt.s32.f32 %v708
      %vm717 = vcmp.lt.f32.partialorder %v653, 30.5
      %vm718 = vcmp.lt.f32.partialorder %v654, 30.5
      %vm719 = vcmp.lt.f32.partialorder %v655, 30.5
      %vm720 = vcmp.lt.f32.partialorder %v656, 30.5
      %vm721 = vcmp.lt.f32.partialorder %v657, 30.5
      %vm722 = vcmp.lt.f32.partialorder %v658, 30.5
      %vm723 = vcmp.lt.f32.partialorder %v659, 30.5
      %vm724 = vcmp.lt.f32.partialorder %v660, 30.5
      %vm725 = vmand %vm661, %vm717
      %vm726 = vmand %vm662, %vm718
      %vm727 = vmand %vm663, %vm719
      %vm728 = vmand %vm664, %vm720
      %vm729 = vmand %vm665, %vm721
      %vm730 = vmand %vm666, %vm722
      %vm731 = vmand %vm667, %vm723
      %vm732 = vmand %vm668, %vm724
      %v733 = vsel %vm725, 1, 0
      %v734 = vsel %vm726, 1, 0
      %v735 = vsel %vm727, 1, 0
      %v736 = vsel %vm728, 1, 0
      %v737 = vsel %vm729, 1, 0
      %v738 = vsel %vm730, 1, 0
      %v739 = vsel %vm731, 1, 0
      %v740 = vsel %vm732, 1, 0
      %v741 = vcvt.s32.f32 %v733
      %v742 = vcvt.s32.f32 %v734
      %v743 = vcvt.s32.f32 %v735
      %v744 = vcvt.s32.f32 %v736
      %v745 = vcvt.s32.f32 %v737
      %v746 = vcvt.s32.f32 %v738
      %v747 = vcvt.s32.f32 %v739
      %v748 = vcvt.s32.f32 %v740
      %v749 = vsel %vm669, 1, 0
      %v750 = vsel %vm670, 1, 0
      %v751 = vsel %vm671, 1, 0
      %v752 = vsel %vm672, 1, 0
      %v753 = vsel %vm673, 1, 0
      %v754 = vsel %vm674, 1, 0
      %v755 = vsel %vm675, 1, 0
      %v756 = vsel %vm676, 1, 0
      %v757 = vcvt.s32.f32 %v749
      %v758 = vcvt.s32.f32 %v750
      %v759 = vcvt.s32.f32 %v751
      %v760 = vcvt.s32.f32 %v752
      %v761 = vcvt.s32.f32 %v753
      %v762 = vcvt.s32.f32 %v754
      %v763 = vcvt.s32.f32 %v755
      %v764 = vcvt.s32.f32 %v756
      %v765 = vsel %vm717, 1, 0
      %v766 = vsel %vm718, 1, 0
      %v767 = vsel %vm719, 1, 0
      %v768 = vsel %vm720, 1, 0
      %v769 = vsel %vm721, 1, 0
      %v770 = vsel %vm722, 1, 0
      %v771 = vsel %vm723, 1, 0
      %v772 = vsel %vm724, 1, 0
      %v773 = vcvt.s32.f32 %v765
      %v774 = vcvt.s32.f32 %v766
      %v775 = vcvt.s32.f32 %v767
      %v776 = vcvt.s32.f32 %v768
      %v777 = vcvt.s32.f32 %v769
      %v778 = vcvt.s32.f32 %v770
      %v779 = vcvt.s32.f32 %v771
      %v780 = vcvt.s32.f32 %v772
      %vm781 = vcmp.lt.f32.partialorder %v637, 30.5
      %vm782 = vcmp.lt.f32.partialorder %v638, 30.5
      %vm783 = vcmp.lt.f32.partialorder %v639, 30.5
      %vm784 = vcmp.lt.f32.partialorder %v640, 30.5
      %vm785 = vcmp.lt.f32.partialorder %v641, 30.5
      %vm786 = vcmp.lt.f32.partialorder %v642, 30.5
      %vm787 = vcmp.lt.f32.partialorder %v643, 30.5
      %vm788 = vcmp.lt.f32.partialorder %v644, 30.5
      %vm789 = vmand %vm781, %vm669
      %vm790 = vmand %vm782, %vm670
      %vm791 = vmand %vm783, %vm671
      %vm792 = vmand %vm784, %vm672
      %vm793 = vmand %vm785, %vm673
      %vm794 = vmand %vm786, %vm674
      %vm795 = vmand %vm787, %vm675
      %vm796 = vmand %vm788, %vm676
      %v797 = vsel %vm789, 1, 0
      %v798 = vsel %vm790, 1, 0
      %v799 = vsel %vm791, 1, 0
      %v800 = vsel %vm792, 1, 0
      %v801 = vsel %vm793, 1, 0
      %v802 = vsel %vm794, 1, 0
      %v803 = vsel %vm795, 1, 0
      %v804 = vsel %vm796, 1, 0
      %v805 = vcvt.s32.f32 %v797
      %v806 = vcvt.s32.f32 %v798
      %v807 = vcvt.s32.f32 %v799
      %v808 = vcvt.s32.f32 %v800
      %v809 = vcvt.s32.f32 %v801
      %v810 = vcvt.s32.f32 %v802
      %v811 = vcvt.s32.f32 %v803
      %v812 = vcvt.s32.f32 %v804
      %v813 = vsel %vm781, 1, 0
      %v814 = vsel %vm782, 1, 0
      %v815 = vsel %vm783, 1, 0
      %v816 = vsel %vm784, 1, 0
      %v817 = vsel %vm785, 1, 0
      %v818 = vsel %vm786, 1, 0
      %v819 = vsel %vm787, 1, 0
      %v820 = vsel %vm788, 1, 0
      %v821 = vcvt.s32.f32 %v813
      %v822 = vcvt.s32.f32 %v814
      %v823 = vcvt.s32.f32 %v815
      %v824 = vcvt.s32.f32 %v816
      %v825 = vcvt.s32.f32 %v817
      %v826 = vcvt.s32.f32 %v818
      %v827 = vcvt.s32.f32 %v819
      %v828 = vcvt.s32.f32 %v820
      %vm829 = vmand %vm781, %vm717
      %vm830 = vmand %vm782, %vm718
      %vm831 = vmand %vm783, %vm719
      %vm832 = vmand %vm784, %vm720
      %vm833 = vmand %vm785, %vm721
      %vm834 = vmand %vm786, %vm722
      %vm835 = vmand %vm787, %vm723
      %vm836 = vmand %vm788, %vm724
      %v837 = vsel %vm829, 1, 0
      %v838 = vsel %vm830, 1, 0
      %v839 = vsel %vm831, 1, 0
      %v840 = vsel %vm832, 1, 0
      %v841 = vsel %vm833, 1, 0
      %v842 = vsel %vm834, 1, 0
      %v843 = vsel %vm835, 1, 0
      %v844 = vsel %vm836, 1, 0
      %v845 = vcvt.s32.f32 %v837
      %v846 = vcvt.s32.f32 %v838
      %v847 = vcvt.s32.f32 %v839
      %v848 = vcvt.s32.f32 %v840
      %v849 = vcvt.s32.f32 %v841
      %v850 = vcvt.s32.f32 %v842
      %v851 = vcvt.s32.f32 %v843
      %v852 = vcvt.s32.f32 %v844
      %v853 = vld [vmem:[%s596] sm:$0xff]
      %v854 = vld [vmem:[%s596 + $0x8] sm:$0xff]
      %v855 = vpack.c.bf16 %v853, %v853
      %v856 = vpack.c.bf16 %v854, %v854
      %v857 = vld [vmem:[%s3] sm:$0xff]
      %v858 = vld [vmem:[%s3 + $0x8] sm:$0xff]
      %v859 = vld [vmem:[%s3 + $0x10] sm:$0xff]
      %v860 = vld [vmem:[%s3 + $0x18] sm:$0xff]
      %v861 = vld [vmem:[%s3 + $0x20] sm:$0xff]
      %v862 = vld [vmem:[%s3 + $0x28] sm:$0xff]
      %v863 = vld [vmem:[%s3 + $0x30] sm:$0xff]
      %v864 = vld [vmem:[%s3 + $0x38] sm:$0xff]
      %v865 = vld [vmem:[%s3 + $0x40] sm:$0xff]
      %v866 = vld [vmem:[%s3 + $0x48] sm:$0xff]
      %v867 = vld [vmem:[%s3 + $0x50] sm:$0xff]
      %v868 = vld [vmem:[%s3 + $0x58] sm:$0xff]
      %v869 = vld [vmem:[%s3 + $0x60] sm:$0xff]
      %v870 = vld [vmem:[%s3 + $0x68] sm:$0xff]
      %v871 = vld [vmem:[%s3 + $0x70] sm:$0xff]
      %v872 = vld [vmem:[%s3 + $0x78] sm:$0xff]
      %v873 = vld [vmem:[%s3 + $0x80] sm:$0xff]
      %v874 = vld [vmem:[%s3 + $0x88] sm:$0xff]
      %v875 = vld [vmem:[%s3 + $0x90] sm:$0xff]
      %v876 = vld [vmem:[%s3 + $0x98] sm:$0xff]
      %v877 = vld [vmem:[%s3 + $0xa0] sm:$0xff]
      %v878 = vld [vmem:[%s3 + $0xa8] sm:$0xff]
      %v879 = vld [vmem:[%s3 + $0xb0] sm:$0xff]
      %v880 = vld [vmem:[%s3 + $0xb8] sm:$0xff]
      %v881 = vld [vmem:[%s3 + $0xc0] sm:$0xff]
      %v882 = vld [vmem:[%s3 + $0xc8] sm:$0xff]
      %v883 = vld [vmem:[%s3 + $0xd0] sm:$0xff]
      %v884 = vld [vmem:[%s3 + $0xd8] sm:$0xff]
      %v885 = vld [vmem:[%s3 + $0xe0] sm:$0xff]
      %v886 = vld [vmem:[%s3 + $0xe8] sm:$0xff]
      %v887 = vld [vmem:[%s3 + $0xf0] sm:$0xff]
      %v888 = vld [vmem:[%s3 + $0xf8] sm:$0xff]
      %v889 = vld [vmem:[%s3 + $0x100] sm:$0xff]
      %v890 = vld [vmem:[%s3 + $0x108] sm:$0xff]
      %v891 = vld [vmem:[%s3 + $0x110] sm:$0xff]
      %v892 = vld [vmem:[%s3 + $0x118] sm:$0xff]
      %v893 = vld [vmem:[%s3 + $0x120] sm:$0xff]
      %v894 = vld [vmem:[%s3 + $0x128] sm:$0xff]
      %v895 = vld [vmem:[%s3 + $0x130] sm:$0xff]
      %v896 = vld [vmem:[%s3 + $0x138] sm:$0xff]
      %v897 = vld [vmem:[%s3 + $0x140] sm:$0xff]
      %v898 = vld [vmem:[%s3 + $0x148] sm:$0xff]
      %v899 = vld [vmem:[%s3 + $0x150] sm:$0xff]
      %v900 = vld [vmem:[%s3 + $0x158] sm:$0xff]
      %v901 = vld [vmem:[%s3 + $0x160] sm:$0xff]
      %v902 = vld [vmem:[%s3 + $0x168] sm:$0xff]
      %v903 = vld [vmem:[%s3 + $0x170] sm:$0xff]
      %v904 = vld [vmem:[%s3 + $0x178] sm:$0xff]
      %v905 = vld [vmem:[%s3 + $0x180] sm:$0xff]
      %v906 = vld [vmem:[%s3 + $0x188] sm:$0xff]
      %v907 = vld [vmem:[%s3 + $0x190] sm:$0xff]
      %v908 = vld [vmem:[%s3 + $0x198] sm:$0xff]
      %v909 = vld [vmem:[%s3 + $0x1a0] sm:$0xff]
      %v910 = vld [vmem:[%s3 + $0x1a8] sm:$0xff]
      %v911 = vld [vmem:[%s3 + $0x1b0] sm:$0xff]
      %v912 = vld [vmem:[%s3 + $0x1b8] sm:$0xff]
      %v913 = vld [vmem:[%s3 + $0x1c0] sm:$0xff]
      %v914 = vld [vmem:[%s3 + $0x1c8] sm:$0xff]
      %v915 = vld [vmem:[%s3 + $0x1d0] sm:$0xff]
      %v916 = vld [vmem:[%s3 + $0x1d8] sm:$0xff]
      %v917 = vld [vmem:[%s3 + $0x1e0] sm:$0xff]
      %v918 = vld [vmem:[%s3 + $0x1e8] sm:$0xff]
      %v919 = vld [vmem:[%s3 + $0x1f0] sm:$0xff]
      %v920 = vld [vmem:[%s3 + $0x1f8] sm:$0xff]
      %v921 = vld [vmem:[%s3 + $0x200] sm:$0xff]
      %v922 = vld [vmem:[%s3 + $0x208] sm:$0xff]
      %v923 = vld [vmem:[%s3 + $0x210] sm:$0xff]
      %v924 = vld [vmem:[%s3 + $0x218] sm:$0xff]
      %v925 = vld [vmem:[%s3 + $0x220] sm:$0xff]
      %v926 = vld [vmem:[%s3 + $0x228] sm:$0xff]
      %v927 = vld [vmem:[%s3 + $0x230] sm:$0xff]
      %v928 = vld [vmem:[%s3 + $0x238] sm:$0xff]
      %v929 = vld [vmem:[%s3 + $0x240] sm:$0xff]
      %v930 = vld [vmem:[%s3 + $0x248] sm:$0xff]
      %v931 = vld [vmem:[%s3 + $0x250] sm:$0xff]
      %v932 = vld [vmem:[%s3 + $0x258] sm:$0xff]
      %v933 = vld [vmem:[%s3 + $0x260] sm:$0xff]
      %v934 = vld [vmem:[%s3 + $0x268] sm:$0xff]
      %v935 = vld [vmem:[%s3 + $0x270] sm:$0xff]
      %v936 = vld [vmem:[%s3 + $0x278] sm:$0xff]
      %v937 = vld [vmem:[%s3 + $0x280] sm:$0xff]
      %v938 = vld [vmem:[%s3 + $0x288] sm:$0xff]
      %v939 = vld [vmem:[%s3 + $0x290] sm:$0xff]
      %v940 = vld [vmem:[%s3 + $0x298] sm:$0xff]
      %v941 = vld [vmem:[%s3 + $0x2a0] sm:$0xff]
      %v942 = vld [vmem:[%s3 + $0x2a8] sm:$0xff]
      %v943 = vld [vmem:[%s3 + $0x2b0] sm:$0xff]
      %v944 = vld [vmem:[%s3 + $0x2b8] sm:$0xff]
      %v945 = vld [vmem:[%s3 + $0x2c0] sm:$0xff]
      %v946 = vld [vmem:[%s3 + $0x2c8] sm:$0xff]
      %v947 = vld [vmem:[%s3 + $0x2d0] sm:$0xff]
      %v948 = vld [vmem:[%s3 + $0x2d8] sm:$0xff]
      %v949 = vld [vmem:[%s3 + $0x2e0] sm:$0xff]
      %v950 = vld [vmem:[%s3 + $0x2e8] sm:$0xff]
      %v951 = vld [vmem:[%s3 + $0x2f0] sm:$0xff]
      %v952 = vld [vmem:[%s3 + $0x2f8] sm:$0xff]
      %v953 = vld [vmem:[%s3 + $0x300] sm:$0xff]
      %v954 = vld [vmem:[%s3 + $0x308] sm:$0xff]
      %v955 = vld [vmem:[%s3 + $0x310] sm:$0xff]
      %v956 = vld [vmem:[%s3 + $0x318] sm:$0xff]
      %v957 = vld [vmem:[%s3 + $0x320] sm:$0xff]
      %v958 = vld [vmem:[%s3 + $0x328] sm:$0xff]
      %v959 = vld [vmem:[%s3 + $0x330] sm:$0xff]
      %v960 = vld [vmem:[%s3 + $0x338] sm:$0xff]
      %v961 = vld [vmem:[%s3 + $0x340] sm:$0xff]
      %v962 = vld [vmem:[%s3 + $0x348] sm:$0xff]
      %v963 = vld [vmem:[%s3 + $0x350] sm:$0xff]
      %v964 = vld [vmem:[%s3 + $0x358] sm:$0xff]
      %v965 = vld [vmem:[%s3 + $0x360] sm:$0xff]
      %v966 = vld [vmem:[%s3 + $0x368] sm:$0xff]
      %v967 = vld [vmem:[%s3 + $0x370] sm:$0xff]
      %v968 = vld [vmem:[%s3 + $0x378] sm:$0xff]
      %v969 = vld [vmem:[%s3 + $0x380] sm:$0xff]
      %v970 = vld [vmem:[%s3 + $0x388] sm:$0xff]
      %v971 = vld [vmem:[%s3 + $0x390] sm:$0xff]
      %v972 = vld [vmem:[%s3 + $0x398] sm:$0xff]
      %v973 = vld [vmem:[%s3 + $0x3a0] sm:$0xff]
      %v974 = vld [vmem:[%s3 + $0x3a8] sm:$0xff]
      %v975 = vld [vmem:[%s3 + $0x3b0] sm:$0xff]
      %v976 = vld [vmem:[%s3 + $0x3b8] sm:$0xff]
      %v977 = vld [vmem:[%s3 + $0x3c0] sm:$0xff]
      %v978 = vld [vmem:[%s3 + $0x3c8] sm:$0xff]
      %v979 = vld [vmem:[%s3 + $0x3d0] sm:$0xff]
      %v980 = vld [vmem:[%s3 + $0x3d8] sm:$0xff]
      %v981 = vld [vmem:[%s3 + $0x3e0] sm:$0xff]
      %v982 = vld [vmem:[%s3 + $0x3e8] sm:$0xff]
      %v983 = vld [vmem:[%s3 + $0x3f0] sm:$0xff]
      %v984 = vld [vmem:[%s3 + $0x3f8] sm:$0xff]
      %v1113 = vunpack.c.l.b16 %v857
      %v1114 = vunpack.c.h.b16 %v857
      %v1115 = vunpack.c.l.b16 %v858
      %v1116 = vunpack.c.h.b16 %v858
      %v1117 = vunpack.c.l.b16 %v859
      %v1118 = vunpack.c.h.b16 %v859
      %v1119 = vunpack.c.l.b16 %v860
      %v1120 = vunpack.c.h.b16 %v860
      %v1121 = vunpack.c.l.b16 %v861
      %v1122 = vunpack.c.h.b16 %v861
      %v1123 = vunpack.c.l.b16 %v862
      %v1124 = vunpack.c.h.b16 %v862
      %v1125 = vunpack.c.l.b16 %v863
      %v1126 = vunpack.c.h.b16 %v863
      %v1127 = vunpack.c.l.b16 %v864
      %v1128 = vunpack.c.h.b16 %v864
      %v1129 = vunpack.c.l.b16 %v865
      %v1130 = vunpack.c.h.b16 %v865
      %v1131 = vunpack.c.l.b16 %v866
      %v1132 = vunpack.c.h.b16 %v866
      %v1133 = vunpack.c.l.b16 %v867
      %v1134 = vunpack.c.h.b16 %v867
      %v1135 = vunpack.c.l.b16 %v868
      %v1136 = vunpack.c.h.b16 %v868
      %v1137 = vunpack.c.l.b16 %v869
      %v1138 = vunpack.c.h.b16 %v869
      %v1139 = vunpack.c.l.b16 %v870
      %v1140 = vunpack.c.h.b16 %v870
      %v1141 = vunpack.c.l.b16 %v871
      %v1142 = vunpack.c.h.b16 %v871
      %v1143 = vunpack.c.l.b16 %v872
      %v1144 = vunpack.c.h.b16 %v872
      %v1145 = vunpack.c.l.b16 %v873
      %v1146 = vunpack.c.h.b16 %v873
      %v1147 = vunpack.c.l.b16 %v874
      %v1148 = vunpack.c.h.b16 %v874
      %v1149 = vunpack.c.l.b16 %v875
      %v1150 = vunpack.c.h.b16 %v875
      %v1151 = vunpack.c.l.b16 %v876
      %v1152 = vunpack.c.h.b16 %v876
      %v1153 = vunpack.c.l.b16 %v877
      %v1154 = vunpack.c.h.b16 %v877
      %v1155 = vunpack.c.l.b16 %v878
      %v1156 = vunpack.c.h.b16 %v878
      %v1157 = vunpack.c.l.b16 %v879
      %v1158 = vunpack.c.h.b16 %v879
      %v1159 = vunpack.c.l.b16 %v880
      %v1160 = vunpack.c.h.b16 %v880
      %v1161 = vunpack.c.l.b16 %v881
      %v1162 = vunpack.c.h.b16 %v881
      %v1163 = vunpack.c.l.b16 %v882
      %v1164 = vunpack.c.h.b16 %v882
      %v1165 = vunpack.c.l.b16 %v883
      %v1166 = vunpack.c.h.b16 %v883
      %v1167 = vunpack.c.l.b16 %v884
      %v1168 = vunpack.c.h.b16 %v884
      %v1169 = vunpack.c.l.b16 %v885
      %v1170 = vunpack.c.h.b16 %v885
      %v1171 = vunpack.c.l.b16 %v886
      %v1172 = vunpack.c.h.b16 %v886
      %v1173 = vunpack.c.l.b16 %v887
      %v1174 = vunpack.c.h.b16 %v887
      %v1175 = vunpack.c.l.b16 %v888
      %v1176 = vunpack.c.h.b16 %v888
      %v1177 = vunpack.c.l.b16 %v889
      %v1178 = vunpack.c.h.b16 %v889
      %v1179 = vunpack.c.l.b16 %v890
      %v1180 = vunpack.c.h.b16 %v890
      %v1181 = vunpack.c.l.b16 %v891
      %v1182 = vunpack.c.h.b16 %v891
      %v1183 = vunpack.c.l.b16 %v892
      %v1184 = vunpack.c.h.b16 %v892
      %v1185 = vunpack.c.l.b16 %v893
      %v1186 = vunpack.c.h.b16 %v893
      %v1187 = vunpack.c.l.b16 %v894
      %v1188 = vunpack.c.h.b16 %v894
      %v1189 = vunpack.c.l.b16 %v895
      %v1190 = vunpack.c.h.b16 %v895
      %v1191 = vunpack.c.l.b16 %v896
      %v1192 = vunpack.c.h.b16 %v896
      %v1193 = vunpack.c.l.b16 %v897
      %v1194 = vunpack.c.h.b16 %v897
      %v1195 = vunpack.c.l.b16 %v898
      %v1196 = vunpack.c.h.b16 %v898
      %v1197 = vunpack.c.l.b16 %v899
      %v1198 = vunpack.c.h.b16 %v899
      %v1199 = vunpack.c.l.b16 %v900
      %v1200 = vunpack.c.h.b16 %v900
      %v1201 = vunpack.c.l.b16 %v901
      %v1202 = vunpack.c.h.b16 %v901
      %v1203 = vunpack.c.l.b16 %v902
      %v1204 = vunpack.c.h.b16 %v902
      %v1205 = vunpack.c.l.b16 %v903
      %v1206 = vunpack.c.h.b16 %v903
      %v1207 = vunpack.c.l.b16 %v904
      %v1208 = vunpack.c.h.b16 %v904
      %v1209 = vunpack.c.l.b16 %v905
      %v1210 = vunpack.c.h.b16 %v905
      %v1211 = vunpack.c.l.b16 %v906
      %v1212 = vunpack.c.h.b16 %v906
      %v1213 = vunpack.c.l.b16 %v907
      %v1214 = vunpack.c.h.b16 %v907
      %v1215 = vunpack.c.l.b16 %v908
      %v1216 = vunpack.c.h.b16 %v908
      %v1217 = vunpack.c.l.b16 %v909
      %v1218 = vunpack.c.h.b16 %v909
      %v1219 = vunpack.c.l.b16 %v910
      %v1220 = vunpack.c.h.b16 %v910
      %v1221 = vunpack.c.l.b16 %v911
      %v1222 = vunpack.c.h.b16 %v911
      %v1223 = vunpack.c.l.b16 %v912
      %v1224 = vunpack.c.h.b16 %v912
      %v1225 = vunpack.c.l.b16 %v913
      %v1226 = vunpack.c.h.b16 %v913
      %v1227 = vunpack.c.l.b16 %v914
      %v1228 = vunpack.c.h.b16 %v914
      %v1229 = vunpack.c.l.b16 %v915
      %v1230 = vunpack.c.h.b16 %v915
      %v1231 = vunpack.c.l.b16 %v916
      %v1232 = vunpack.c.h.b16 %v916
      %v1233 = vunpack.c.l.b16 %v917
      %v1234 = vunpack.c.h.b16 %v917
      %v1235 = vunpack.c.l.b16 %v918
      %v1236 = vunpack.c.h.b16 %v918
      %v1237 = vunpack.c.l.b16 %v919
      %v1238 = vunpack.c.h.b16 %v919
      %v1239 = vunpack.c.l.b16 %v920
      %v1240 = vunpack.c.h.b16 %v920
      %v1241 = vunpack.c.l.b16 %v921
      %v1242 = vunpack.c.h.b16 %v921
      %v1243 = vunpack.c.l.b16 %v922
      %v1244 = vunpack.c.h.b16 %v922
      %v1245 = vunpack.c.l.b16 %v923
      %v1246 = vunpack.c.h.b16 %v923
      %v1247 = vunpack.c.l.b16 %v924
      %v1248 = vunpack.c.h.b16 %v924
      %v1249 = vunpack.c.l.b16 %v925
      %v1250 = vunpack.c.h.b16 %v925
      %v1251 = vunpack.c.l.b16 %v926
      %v1252 = vunpack.c.h.b16 %v926
      %v1253 = vunpack.c.l.b16 %v927
      %v1254 = vunpack.c.h.b16 %v927
      %v1255 = vunpack.c.l.b16 %v928
      %v1256 = vunpack.c.h.b16 %v928
      %v1257 = vunpack.c.l.b16 %v929
      %v1258 = vunpack.c.h.b16 %v929
      %v1259 = vunpack.c.l.b16 %v930
      %v1260 = vunpack.c.h.b16 %v930
      %v1261 = vunpack.c.l.b16 %v931
      %v1262 = vunpack.c.h.b16 %v931
      %v1263 = vunpack.c.l.b16 %v932
      %v1264 = vunpack.c.h.b16 %v932
      %v1265 = vunpack.c.l.b16 %v933
      %v1266 = vunpack.c.h.b16 %v933
      %v1267 = vunpack.c.l.b16 %v934
      %v1268 = vunpack.c.h.b16 %v934
      %v1269 = vunpack.c.l.b16 %v935
      %v1270 = vunpack.c.h.b16 %v935
      %v1271 = vunpack.c.l.b16 %v936
      %v1272 = vunpack.c.h.b16 %v936
      %v1273 = vunpack.c.l.b16 %v937
      %v1274 = vunpack.c.h.b16 %v937
      %v1275 = vunpack.c.l.b16 %v938
      %v1276 = vunpack.c.h.b16 %v938
      %v1277 = vunpack.c.l.b16 %v939
      %v1278 = vunpack.c.h.b16 %v939
      %v1279 = vunpack.c.l.b16 %v940
      %v1280 = vunpack.c.h.b16 %v940
      %v1281 = vunpack.c.l.b16 %v941
      %v1282 = vunpack.c.h.b16 %v941
      %v1283 = vunpack.c.l.b16 %v942
      %v1284 = vunpack.c.h.b16 %v942
      %v1285 = vunpack.c.l.b16 %v943
      %v1286 = vunpack.c.h.b16 %v943
      %v1287 = vunpack.c.l.b16 %v944
      %v1288 = vunpack.c.h.b16 %v944
      %v1289 = vunpack.c.l.b16 %v945
      %v1290 = vunpack.c.h.b16 %v945
      %v1291 = vunpack.c.l.b16 %v946
      %v1292 = vunpack.c.h.b16 %v946
      %v1293 = vunpack.c.l.b16 %v947
      %v1294 = vunpack.c.h.b16 %v947
      %v1295 = vunpack.c.l.b16 %v948
      %v1296 = vunpack.c.h.b16 %v948
      %v1297 = vunpack.c.l.b16 %v949
      %v1298 = vunpack.c.h.b16 %v949
      %v1299 = vunpack.c.l.b16 %v950
      %v1300 = vunpack.c.h.b16 %v950
      %v1301 = vunpack.c.l.b16 %v951
      %v1302 = vunpack.c.h.b16 %v951
      %v1303 = vunpack.c.l.b16 %v952
      %v1304 = vunpack.c.h.b16 %v952
      %v1305 = vunpack.c.l.b16 %v953
      %v1306 = vunpack.c.h.b16 %v953
      %v1307 = vunpack.c.l.b16 %v954
      %v1308 = vunpack.c.h.b16 %v954
      %v1309 = vunpack.c.l.b16 %v955
      %v1310 = vunpack.c.h.b16 %v955
      %v1311 = vunpack.c.l.b16 %v956
      %v1312 = vunpack.c.h.b16 %v956
      %v1313 = vunpack.c.l.b16 %v957
      %v1314 = vunpack.c.h.b16 %v957
      %v1315 = vunpack.c.l.b16 %v958
      %v1316 = vunpack.c.h.b16 %v958
      %v1317 = vunpack.c.l.b16 %v959
      %v1318 = vunpack.c.h.b16 %v959
      %v1319 = vunpack.c.l.b16 %v960
      %v1320 = vunpack.c.h.b16 %v960
      %v1321 = vunpack.c.l.b16 %v961
      %v1322 = vunpack.c.h.b16 %v961
      %v1323 = vunpack.c.l.b16 %v962
      %v1324 = vunpack.c.h.b16 %v962
      %v1325 = vunpack.c.l.b16 %v963
      %v1326 = vunpack.c.h.b16 %v963
      %v1327 = vunpack.c.l.b16 %v964
      %v1328 = vunpack.c.h.b16 %v964
      %v1329 = vunpack.c.l.b16 %v965
      %v1330 = vunpack.c.h.b16 %v965
      %v1331 = vunpack.c.l.b16 %v966
      %v1332 = vunpack.c.h.b16 %v966
      %v1333 = vunpack.c.l.b16 %v967
      %v1334 = vunpack.c.h.b16 %v967
      %v1335 = vunpack.c.l.b16 %v968
      %v1336 = vunpack.c.h.b16 %v968
      %v1337 = vunpack.c.l.b16 %v969
      %v1338 = vunpack.c.h.b16 %v969
      %v1339 = vunpack.c.l.b16 %v970
      %v1340 = vunpack.c.h.b16 %v970
      %v1341 = vunpack.c.l.b16 %v971
      %v1342 = vunpack.c.h.b16 %v971
      %v1343 = vunpack.c.l.b16 %v972
      %v1344 = vunpack.c.h.b16 %v972
      %v1345 = vunpack.c.l.b16 %v973
      %v1346 = vunpack.c.h.b16 %v973
      %v1347 = vunpack.c.l.b16 %v974
      %v1348 = vunpack.c.h.b16 %v974
      %v1349 = vunpack.c.l.b16 %v975
      %v1350 = vunpack.c.h.b16 %v975
      %v1351 = vunpack.c.l.b16 %v976
      %v1352 = vunpack.c.h.b16 %v976
      %v1353 = vunpack.c.l.b16 %v977
      %v1354 = vunpack.c.h.b16 %v977
      %v1355 = vunpack.c.l.b16 %v978
      %v1356 = vunpack.c.h.b16 %v978
      %v1357 = vunpack.c.l.b16 %v979
      %v1358 = vunpack.c.h.b16 %v979
      %v1359 = vunpack.c.l.b16 %v980
      %v1360 = vunpack.c.h.b16 %v980
      %v1361 = vunpack.c.l.b16 %v981
      %v1362 = vunpack.c.h.b16 %v981
      %v1363 = vunpack.c.l.b16 %v982
      %v1364 = vunpack.c.h.b16 %v982
      %v1365 = vunpack.c.l.b16 %v983
      %v1366 = vunpack.c.h.b16 %v983
      %v1367 = vunpack.c.l.b16 %v984
      %v1368 = vunpack.c.h.b16 %v984
      %v1369 = vpack.c.b16 %v1121, %v1113
      %v1370 = vpack.c.b16 %v1122, %v1114
      %v1371 = vpack.c.b16 %v1123, %v1115
      %v1372 = vpack.c.b16 %v1124, %v1116
      %v1373 = vpack.c.b16 %v1125, %v1117
      %v1374 = vpack.c.b16 %v1126, %v1118
      %v1375 = vpack.c.b16 %v1127, %v1119
      %v1376 = vpack.c.b16 %v1128, %v1120
      %v1377 = vpack.c.b16 %v1137, %v1129
      %v1378 = vpack.c.b16 %v1138, %v1130
      %v1379 = vpack.c.b16 %v1139, %v1131
      %v1380 = vpack.c.b16 %v1140, %v1132
      %v1381 = vpack.c.b16 %v1141, %v1133
      %v1382 = vpack.c.b16 %v1142, %v1134
      %v1383 = vpack.c.b16 %v1143, %v1135
      %v1384 = vpack.c.b16 %v1144, %v1136
      %v1385 = vpack.c.b16 %v1153, %v1145
      %v1386 = vpack.c.b16 %v1154, %v1146
      %v1387 = vpack.c.b16 %v1155, %v1147
      %v1388 = vpack.c.b16 %v1156, %v1148
      %v1389 = vpack.c.b16 %v1157, %v1149
      %v1390 = vpack.c.b16 %v1158, %v1150
      %v1391 = vpack.c.b16 %v1159, %v1151
      %v1392 = vpack.c.b16 %v1160, %v1152
      %v1393 = vpack.c.b16 %v1169, %v1161
      %v1394 = vpack.c.b16 %v1170, %v1162
      %v1395 = vpack.c.b16 %v1171, %v1163
      %v1396 = vpack.c.b16 %v1172, %v1164
      %v1397 = vpack.c.b16 %v1173, %v1165
      %v1398 = vpack.c.b16 %v1174, %v1166
      %v1399 = vpack.c.b16 %v1175, %v1167
      %v1400 = vpack.c.b16 %v1176, %v1168
      %v1401 = vpack.c.b16 %v1185, %v1177
      %v1402 = vpack.c.b16 %v1186, %v1178
      %v1403 = vpack.c.b16 %v1187, %v1179
      %v1404 = vpack.c.b16 %v1188, %v1180
      %v1405 = vpack.c.b16 %v1189, %v1181
      %v1406 = vpack.c.b16 %v1190, %v1182
      %v1407 = vpack.c.b16 %v1191, %v1183
      %v1408 = vpack.c.b16 %v1192, %v1184
      %v1409 = vpack.c.b16 %v1201, %v1193
      %v1410 = vpack.c.b16 %v1202, %v1194
      %v1411 = vpack.c.b16 %v1203, %v1195
      %v1412 = vpack.c.b16 %v1204, %v1196
      %v1413 = vpack.c.b16 %v1205, %v1197
      %v1414 = vpack.c.b16 %v1206, %v1198
      %v1415 = vpack.c.b16 %v1207, %v1199
      %v1416 = vpack.c.b16 %v1208, %v1200
      %v1417 = vpack.c.b16 %v1217, %v1209
      %v1418 = vpack.c.b16 %v1218, %v1210
      %v1419 = vpack.c.b16 %v1219, %v1211
      %v1420 = vpack.c.b16 %v1220, %v1212
      %v1421 = vpack.c.b16 %v1221, %v1213
      %v1422 = vpack.c.b16 %v1222, %v1214
      %v1423 = vpack.c.b16 %v1223, %v1215
      %v1424 = vpack.c.b16 %v1224, %v1216
      %v1425 = vpack.c.b16 %v1233, %v1225
      %v1426 = vpack.c.b16 %v1234, %v1226
      %v1427 = vpack.c.b16 %v1235, %v1227
      %v1428 = vpack.c.b16 %v1236, %v1228
      %v1429 = vpack.c.b16 %v1237, %v1229
      %v1430 = vpack.c.b16 %v1238, %v1230
      %v1431 = vpack.c.b16 %v1239, %v1231
      %v1432 = vpack.c.b16 %v1240, %v1232
      %v1433 = vpack.c.b16 %v1249, %v1241
      %v1434 = vpack.c.b16 %v1250, %v1242
      %v1435 = vpack.c.b16 %v1251, %v1243
      %v1436 = vpack.c.b16 %v1252, %v1244
      %v1437 = vpack.c.b16 %v1253, %v1245
      %v1438 = vpack.c.b16 %v1254, %v1246
      %v1439 = vpack.c.b16 %v1255, %v1247
      %v1440 = vpack.c.b16 %v1256, %v1248
      %v1441 = vpack.c.b16 %v1265, %v1257
      %v1442 = vpack.c.b16 %v1266, %v1258
      %v1443 = vpack.c.b16 %v1267, %v1259
      %v1444 = vpack.c.b16 %v1268, %v1260
      %v1445 = vpack.c.b16 %v1269, %v1261
      %v1446 = vpack.c.b16 %v1270, %v1262
      %v1447 = vpack.c.b16 %v1271, %v1263
      %v1448 = vpack.c.b16 %v1272, %v1264
      %v1449 = vpack.c.b16 %v1281, %v1273
      %v1450 = vpack.c.b16 %v1282, %v1274
      %v1451 = vpack.c.b16 %v1283, %v1275
      %v1452 = vpack.c.b16 %v1284, %v1276
      %v1453 = vpack.c.b16 %v1285, %v1277
      %v1454 = vpack.c.b16 %v1286, %v1278
      %v1455 = vpack.c.b16 %v1287, %v1279
      %v1456 = vpack.c.b16 %v1288, %v1280
      %v1457 = vpack.c.b16 %v1297, %v1289
      %v1458 = vpack.c.b16 %v1298, %v1290
      %v1459 = vpack.c.b16 %v1299, %v1291
      %v1460 = vpack.c.b16 %v1300, %v1292
      %v1461 = vpack.c.b16 %v1301, %v1293
      %v1462 = vpack.c.b16 %v1302, %v1294
      %v1463 = vpack.c.b16 %v1303, %v1295
      %v1464 = vpack.c.b16 %v1304, %v1296
      %v1465 = vpack.c.b16 %v1313, %v1305
      %v1466 = vpack.c.b16 %v1314, %v1306
      %v1467 = vpack.c.b16 %v1315, %v1307
      %v1468 = vpack.c.b16 %v1316, %v1308
      %v1469 = vpack.c.b16 %v1317, %v1309
      %v1470 = vpack.c.b16 %v1318, %v1310
      %v1471 = vpack.c.b16 %v1319, %v1311
      %v1472 = vpack.c.b16 %v1320, %v1312
      %v1473 = vpack.c.b16 %v1329, %v1321
      %v1474 = vpack.c.b16 %v1330, %v1322
      %v1475 = vpack.c.b16 %v1331, %v1323
      %v1476 = vpack.c.b16 %v1332, %v1324
      %v1477 = vpack.c.b16 %v1333, %v1325
      %v1478 = vpack.c.b16 %v1334, %v1326
      %v1479 = vpack.c.b16 %v1335, %v1327
      %v1480 = vpack.c.b16 %v1336, %v1328
      %v1481 = vpack.c.b16 %v1345, %v1337
      %v1482 = vpack.c.b16 %v1346, %v1338
      %v1483 = vpack.c.b16 %v1347, %v1339
      %v1484 = vpack.c.b16 %v1348, %v1340
      %v1485 = vpack.c.b16 %v1349, %v1341
      %v1486 = vpack.c.b16 %v1350, %v1342
      %v1487 = vpack.c.b16 %v1351, %v1343
      %v1488 = vpack.c.b16 %v1352, %v1344
      %v1489 = vpack.c.b16 %v1361, %v1353
      %v1490 = vpack.c.b16 %v1362, %v1354
      %v1491 = vpack.c.b16 %v1363, %v1355
      %v1492 = vpack.c.b16 %v1364, %v1356
      %v1493 = vpack.c.b16 %v1365, %v1357
      %v1494 = vpack.c.b16 %v1366, %v1358
      %v1495 = vpack.c.b16 %v1367, %v1359
      %v1496 = vpack.c.b16 %v1368, %v1360
      %1625 = vmatprep.subr.bf16.mxu0 %v1426
      %1626 = vmatpush1.bf16.msra.mxu0 %v1425
      %1627 = vmatprep.subr.bf16.mxu0 %v1418
      %1628 = vmatpush1.bf16.msra.mxu0 %v1417
      %1629 = vmatprep.subr.bf16.mxu0 %v1410
      %1630 = vmatpush1.bf16.msra.mxu0 %v1409
      %1631 = vmatprep.subr.bf16.mxu0 %v1402
      %1632 = vmatpush1.bf16.msra.mxu0 %v1401
      %1633 = vmatprep.subr.bf16.mxu0 %v1394
      %1634 = vmatpush1.bf16.msra.mxu0 %v1393
      %1635 = vmatprep.subr.bf16.mxu0 %v1386
      %1636 = vmatpush1.bf16.msra.mxu0 %v1385
      %1637 = vmatprep.subr.bf16.mxu0 %v1378
      %1638 = vmatpush1.bf16.msra.mxu0 %v1377
      %1639 = vmatprep.subr.bf16.mxu0 %v1370
      %1640 = vmatpush1.bf16.msra.mxu0 %v1369
      %1641 = vmatprep.subr.bf16.mxu0 %v1490
      %1642 = vmatpush2.bf16.msra.mxu0 %v1489
      %1643 = vmatprep.subr.bf16.mxu0 %v1482
      %1644 = vmatpush2.bf16.msra.mxu0 %v1481
      %1645 = vmatprep.subr.bf16.mxu0 %v1474
      %1646 = vmatpush2.bf16.msra.mxu0 %v1473
      %1647 = vmatprep.subr.bf16.mxu0 %v1466
      %1648 = vmatpush2.bf16.msra.mxu0 %v1465
      %1649 = vmatprep.subr.bf16.mxu0 %v1458
      %1650 = vmatpush2.bf16.msra.mxu0 %v1457
      %1651 = vmatprep.subr.bf16.mxu0 %v1450
      %1652 = vmatpush2.bf16.msra.mxu0 %v1449
      %1653 = vmatprep.subr.bf16.mxu0 %v1442
      %1654 = vmatpush2.bf16.msra.mxu0 %v1441
      %1655 = vmatprep.subr.bf16.mxu0 %v1434
      %1656 = vmatpush2.bf16.msra.mxu0 %v1433
      %1657 = vmatprep.mubr.bf16.mxu0 %v856
      %1658 = vmatmul.mubr.bf16.gmra.mxu0 %v855
      %v1659 = vpop.f32.mrf.mxu0
      %v1660 = vadd.f32 0.0, %v1659
      %v1661 = vpop.f32.mrf.mxu0
      %v1662 = vadd.f32 0.0, %v1661
      %v1663 = vpop.f32.mrf.mxu0
      %v1664 = vpop.f32.mrf.mxu0
      %1665 = vdwg.mxu0
      %1666 = vmatprep.subr.bf16.mxu0 %v1428
      %1667 = vmatpush1.bf16.msra.mxu0 %v1427
      %1668 = vmatprep.subr.bf16.mxu0 %v1420
      %1669 = vmatpush1.bf16.msra.mxu0 %v1419
      %1670 = vmatprep.subr.bf16.mxu0 %v1412
      %1671 = vmatpush1.bf16.msra.mxu0 %v1411
      %1672 = vmatprep.subr.bf16.mxu0 %v1404
      %1673 = vmatpush1.bf16.msra.mxu0 %v1403
      %1674 = vmatprep.subr.bf16.mxu0 %v1396
      %1675 = vmatpush1.bf16.msra.mxu0 %v1395
      %1676 = vmatprep.subr.bf16.mxu0 %v1388
      %1677 = vmatpush1.bf16.msra.mxu0 %v1387
      %1678 = vmatprep.subr.bf16.mxu0 %v1380
      %1679 = vmatpush1.bf16.msra.mxu0 %v1379
      %1680 = vmatprep.subr.bf16.mxu0 %v1372
      %1681 = vmatpush1.bf16.msra.mxu0 %v1371
      %1682 = vmatprep.subr.bf16.mxu0 %v1492
      %1683 = vmatpush2.bf16.msra.mxu0 %v1491
      %1684 = vmatprep.subr.bf16.mxu0 %v1484
      %1685 = vmatpush2.bf16.msra.mxu0 %v1483
      %1686 = vmatprep.subr.bf16.mxu0 %v1476
      %1687 = vmatpush2.bf16.msra.mxu0 %v1475
      %1688 = vmatprep.subr.bf16.mxu0 %v1468
      %1689 = vmatpush2.bf16.msra.mxu0 %v1467
      %1690 = vmatprep.subr.bf16.mxu0 %v1460
      %1691 = vmatpush2.bf16.msra.mxu0 %v1459
      %1692 = vmatprep.subr.bf16.mxu0 %v1452
      %1693 = vmatpush2.bf16.msra.mxu0 %v1451
      %1694 = vmatprep.subr.bf16.mxu0 %v1444
      %1695 = vmatpush2.bf16.msra.mxu0 %v1443
      %1696 = vmatprep.subr.bf16.mxu0 %v1436
      %1697 = vmatpush2.bf16.msra.mxu0 %v1435
      %1698 = vmatprep.mubr.bf16.mxu0 %v856
      %1699 = vmatmul.mubr.bf16.gmra.mxu0 %v855
      %v1700 = vpop.f32.mrf.mxu0
      %v1701 = vadd.f32 0.0, %v1700
      %v1702 = vpop.f32.mrf.mxu0
      %v1703 = vadd.f32 0.0, %v1702
      %v1704 = vpop.f32.mrf.mxu0
      %v1705 = vpop.f32.mrf.mxu0
      %1706 = vdwg.mxu0
      %1707 = vmatprep.subr.bf16.mxu0 %v1430
      %1708 = vmatpush1.bf16.msra.mxu0 %v1429
      %1709 = vmatprep.subr.bf16.mxu0 %v1422
      %1710 = vmatpush1.bf16.msra.mxu0 %v1421
      %1711 = vmatprep.subr.bf16.mxu0 %v1414
      %1712 = vmatpush1.bf16.msra.mxu0 %v1413
      %1713 = vmatprep.subr.bf16.mxu0 %v1406
      %1714 = vmatpush1.bf16.msra.mxu0 %v1405
      %1715 = vmatprep.subr.bf16.mxu0 %v1398
      %1716 = vmatpush1.bf16.msra.mxu0 %v1397
      %1717 = vmatprep.subr.bf16.mxu0 %v1390
      %1718 = vmatpush1.bf16.msra.mxu0 %v1389
      %1719 = vmatprep.subr.bf16.mxu0 %v1382
      %1720 = vmatpush1.bf16.msra.mxu0 %v1381
      %1721 = vmatprep.subr.bf16.mxu0 %v1374
      %1722 = vmatpush1.bf16.msra.mxu0 %v1373
      %1723 = vmatprep.subr.bf16.mxu0 %v1494
      %1724 = vmatpush2.bf16.msra.mxu0 %v1493
      %1725 = vmatprep.subr.bf16.mxu0 %v1486
      %1726 = vmatpush2.bf16.msra.mxu0 %v1485
      %1727 = vmatprep.subr.bf16.mxu0 %v1478
      %1728 = vmatpush2.bf16.msra.mxu0 %v1477
      %1729 = vmatprep.subr.bf16.mxu0 %v1470
      %1730 = vmatpush2.bf16.msra.mxu0 %v1469
      %1731 = vmatprep.subr.bf16.mxu0 %v1462
      %1732 = vmatpush2.bf16.msra.mxu0 %v1461
      %1733 = vmatprep.subr.bf16.mxu0 %v1454
      %1734 = vmatpush2.bf16.msra.mxu0 %v1453
      %1735 = vmatprep.subr.bf16.mxu0 %v1446
      %1736 = vmatpush2.bf16.msra.mxu0 %v1445
      %1737 = vmatprep.subr.bf16.mxu0 %v1438
      %1738 = vmatpush2.bf16.msra.mxu0 %v1437
      %1739 = vmatprep.mubr.bf16.mxu0 %v856
      %1740 = vmatmul.mubr.bf16.gmra.mxu0 %v855
      %v1741 = vpop.f32.mrf.mxu0
      %v1742 = vadd.f32 0.0, %v1741
      %v1743 = vpop.f32.mrf.mxu0
      %v1744 = vadd.f32 0.0, %v1743
      %v1745 = vpop.f32.mrf.mxu0
      %v1746 = vpop.f32.mrf.mxu0
      %1747 = vdwg.mxu0
      %1748 = vmatprep.subr.bf16.mxu0 %v1432
      %1749 = vmatpush1.bf16.msra.mxu0 %v1431
      %1750 = vmatprep.subr.bf16.mxu0 %v1424
      %1751 = vmatpush1.bf16.msra.mxu0 %v1423
      %1752 = vmatprep.subr.bf16.mxu0 %v1416
      %1753 = vmatpush1.bf16.msra.mxu0 %v1415
      %1754 = vmatprep.subr.bf16.mxu0 %v1408
      %1755 = vmatpush1.bf16.msra.mxu0 %v1407
      %1756 = vmatprep.subr.bf16.mxu0 %v1400
      %1757 = vmatpush1.bf16.msra.mxu0 %v1399
      %1758 = vmatprep.subr.bf16.mxu0 %v1392
      %1759 = vmatpush1.bf16.msra.mxu0 %v1391
      %1760 = vmatprep.subr.bf16.mxu0 %v1384
      %1761 = vmatpush1.bf16.msra.mxu0 %v1383
      %1762 = vmatprep.subr.bf16.mxu0 %v1376
      %1763 = vmatpush1.bf16.msra.mxu0 %v1375
      %1764 = vmatprep.subr.bf16.mxu0 %v1496
      %1765 = vmatpush2.bf16.msra.mxu0 %v1495
      %1766 = vmatprep.subr.bf16.mxu0 %v1488
      %1767 = vmatpush2.bf16.msra.mxu0 %v1487
      %1768 = vmatprep.subr.bf16.mxu0 %v1480
      %1769 = vmatpush2.bf16.msra.mxu0 %v1479
      %1770 = vmatprep.subr.bf16.mxu0 %v1472
      %1771 = vmatpush2.bf16.msra.mxu0 %v1471
      %1772 = vmatprep.subr.bf16.mxu0 %v1464
      %1773 = vmatpush2.bf16.msra.mxu0 %v1463
      %1774 = vmatprep.subr.bf16.mxu0 %v1456
      %1775 = vmatpush2.bf16.msra.mxu0 %v1455
      %1776 = vmatprep.subr.bf16.mxu0 %v1448
      %1777 = vmatpush2.bf16.msra.mxu0 %v1447
      %1778 = vmatprep.subr.bf16.mxu0 %v1440
      %1779 = vmatpush2.bf16.msra.mxu0 %v1439
      %1780 = vmatprep.mubr.bf16.mxu0 %v856
      %1781 = vmatmul.mubr.bf16.gmra.mxu0 %v855
      %v1782 = vpop.f32.mrf.mxu0
      %v1783 = vadd.f32 0.0, %v1782
      %v1784 = vpop.f32.mrf.mxu0
      %v1785 = vadd.f32 0.0, %v1784
      %v1786 = vpop.f32.mrf.mxu0
      %v1787 = vpop.f32.mrf.mxu0
      %1788 = vdwg.mxu0
      %v1789 = vld [vmem:[%s601] sm:$0xff]
      %v1790 = vld [vmem:[%s601 + $0x8] sm:$0xff]
      %v1791 = vld [vmem:[%s601 + $0x10] sm:$0xff]
      %v1792 = vld [vmem:[%s601 + $0x18] sm:$0xff]
      %v1793 = vld [vmem:[%s601 + $0x20] sm:$0xff]
      %v1794 = vld [vmem:[%s601 + $0x28] sm:$0xff]
      %v1795 = vld [vmem:[%s601 + $0x30] sm:$0xff]
      %v1796 = vld [vmem:[%s601 + $0x38] sm:$0xff]
      %1797 = vrot.lane.b32.xlu0 %v1789, 33
      %v1798 = vpop.permute.xlu0 %1797
      %1799 = vrot.lane.b32.xlu0 %v1660, 33
      %v1800 = vpop.permute.xlu0 %1799
      %1801 = vrot.lane.b32.xlu0 %v1790, 33
      %v1802 = vpop.permute.xlu0 %1801
      %1803 = vrot.lane.b32.xlu0 %v1662, 33
      %v1804 = vpop.permute.xlu0 %1803
      %1805 = vrot.lane.b32.xlu0 %v1791, 33
      %v1806 = vpop.permute.xlu0 %1805
      %1807 = vrot.lane.b32.xlu0 %v1701, 33
      %v1808 = vpop.permute.xlu0 %1807
      %1809 = vrot.lane.b32.xlu0 %v1792, 33
      %v1810 = vpop.permute.xlu0 %1809
      %1811 = vrot.lane.b32.xlu0 %v1703, 33
      %v1812 = vpop.permute.xlu0 %1811
      %1813 = vrot.lane.b32.xlu0 %v1793, 33
      %v1814 = vpop.permute.xlu0 %1813
      %1815 = vrot.lane.b32.xlu0 %v1742, 33
      %v1816 = vpop.permute.xlu0 %1815
      %1817 = vrot.lane.b32.xlu0 %v1794, 33
      %v1818 = vpop.permute.xlu0 %1817
      %1819 = vrot.lane.b32.xlu0 %v1744, 33
      %v1820 = vpop.permute.xlu0 %1819
      %1821 = vrot.lane.b32.xlu0 %v1795, 33
      %v1822 = vpop.permute.xlu0 %1821
      %1823 = vrot.lane.b32.xlu0 %v1783, 33
      %v1824 = vpop.permute.xlu0 %1823
      %1825 = vrot.lane.b32.xlu0 %v1796, 33
      %v1826 = vpop.permute.xlu0 %1825
      %1827 = vrot.lane.b32.xlu0 %v1785, 33
      %v1828 = vpop.permute.xlu0 %1827
      %vm1829 = vcmp.lt.s32.totalorder %v612, 33
      %v1830 = vsel %vm1829, %v1822, %v1826
      %v1831 = vsel %vm1829, %v1824, %v1828
      %v1832 = vsel %vm1829, %v1818, %v1822
      %v1833 = vsel %vm1829, %v1820, %v1824
      %v1834 = vsel %vm1829, %v1814, %v1818
      %v1835 = vsel %vm1829, %v1816, %v1820
      %v1836 = vsel %vm1829, %v1810, %v1814
      %v1837 = vsel %vm1829, %v1812, %v1816
      %v1838 = vsel %vm1829, %v1806, %v1810
      %v1839 = vsel %vm1829, %v1808, %v1812
      %v1840 = vsel %vm1829, %v1802, %v1806
      %v1841 = vsel %vm1829, %v1804, %v1808
      %v1842 = vsel %vm1829, %v1798, %v1802
      %v1843 = vsel %vm1829, %v1800, %v1804
      %v1844 = vsel %vm1829, %v1826, %v1798
      %v1845 = vsel %vm1829, %v1828, %v1800
      %v1846 = vmul.f32 %v1844, %v693
      %v1847 = vmul.f32 %v1842, %v694
      %v1848 = vmul.f32 %v1840, %v695
      %v1849 = vmul.f32 %v1838, %v696
      %v1850 = vmul.f32 %v1836, %v697
      %v1851 = vmul.f32 %v1834, %v698
      %v1852 = vmul.f32 %v1832, %v699
      %v1853 = vmul.f32 %v1830, %v700
      %v1854 = vmul.f32 %v1845, %v693
      %v1855 = vmul.f32 %v1843, %v694
      %v1856 = vmul.f32 %v1841, %v695
      %v1857 = vmul.f32 %v1839, %v696
      %v1858 = vmul.f32 %v1837, %v697
      %v1859 = vmul.f32 %v1835, %v698
      %v1860 = vmul.f32 %v1833, %v699
      %v1861 = vmul.f32 %v1831, %v700
      %1862 = vrot.lane.b32.xlu0 %v1789, 32
      %v1863 = vpop.permute.xlu0 %1862
      %1864 = vrot.lane.b32.xlu0 %v1660, 32
      %v1865 = vpop.permute.xlu0 %1864
      %1866 = vrot.lane.b32.xlu0 %v1790, 32
      %v1867 = vpop.permute.xlu0 %1866
      %1868 = vrot.lane.b32.xlu0 %v1662, 32
      %v1869 = vpop.permute.xlu0 %1868
      %1870 = vrot.lane.b32.xlu0 %v1791, 32
      %v1871 = vpop.permute.xlu0 %1870
      %1872 = vrot.lane.b32.xlu0 %v1701, 32
      %v1873 = vpop.permute.xlu0 %1872
      %1874 = vrot.lane.b32.xlu0 %v1792, 32
      %v1875 = vpop.permute.xlu0 %1874
      %1876 = vrot.lane.b32.xlu0 %v1703, 32
      %v1877 = vpop.permute.xlu0 %1876
      %1878 = vrot.lane.b32.xlu0 %v1793, 32
      %v1879 = vpop.permute.xlu0 %1878
      %1880 = vrot.lane.b32.xlu0 %v1742, 32
      %v1881 = vpop.permute.xlu0 %1880
      %1882 = vrot.lane.b32.xlu0 %v1794, 32
      %v1883 = vpop.permute.xlu0 %1882
      %1884 = vrot.lane.b32.xlu0 %v1744, 32
      %v1885 = vpop.permute.xlu0 %1884
      %1886 = vrot.lane.b32.xlu0 %v1795, 32
      %v1887 = vpop.permute.xlu0 %1886
      %1888 = vrot.lane.b32.xlu0 %v1783, 32
      %v1889 = vpop.permute.xlu0 %1888
      %1890 = vrot.lane.b32.xlu0 %v1796, 32
      %v1891 = vpop.permute.xlu0 %1890
      %1892 = vrot.lane.b32.xlu0 %v1785, 32
      %v1893 = vpop.permute.xlu0 %1892
      %vm1894 = vcmp.lt.s32.totalorder %v612, 32
      %v1895 = vsel %vm1894, %v1887, %v1891
      %v1896 = vsel %vm1894, %v1889, %v1893
      %v1897 = vsel %vm1894, %v1883, %v1887
      %v1898 = vsel %vm1894, %v1885, %v1889
      %v1899 = vsel %vm1894, %v1879, %v1883
      %v1900 = vsel %vm1894, %v1881, %v1885
      %v1901 = vsel %vm1894, %v1875, %v1879
      %v1902 = vsel %vm1894, %v1877, %v1881
      %v1903 = vsel %vm1894, %v1871, %v1875
      %v1904 = vsel %vm1894, %v1873, %v1877
      %v1905 = vsel %vm1894, %v1867, %v1871
      %v1906 = vsel %vm1894, %v1869, %v1873
      %v1907 = vsel %vm1894, %v1863, %v1867
      %v1908 = vsel %vm1894, %v1865, %v1869
      %v1909 = vsel %vm1894, %v1891, %v1863
      %v1910 = vsel %vm1894, %v1893, %v1865
      %v1911 = vmul.f32 %v1909, %v709
      %v1912 = vmul.f32 %v1907, %v710
      %v1913 = vmul.f32 %v1905, %v711
      %v1914 = vmul.f32 %v1903, %v712
      %v1915 = vmul.f32 %v1901, %v713
      %v1916 = vmul.f32 %v1899, %v714
      %v1917 = vmul.f32 %v1897, %v715
      %v1918 = vmul.f32 %v1895, %v716
      %v1919 = vmul.f32 %v1910, %v709
      %v1920 = vmul.f32 %v1908, %v710
      %v1921 = vmul.f32 %v1906, %v711
      %v1922 = vmul.f32 %v1904, %v712
      %v1923 = vmul.f32 %v1902, %v713
      %v1924 = vmul.f32 %v1900, %v714
      %v1925 = vmul.f32 %v1898, %v715
      %v1926 = vmul.f32 %v1896, %v716
      %1927 = vrot.lane.b32.xlu0 %v1789, 31
      %v1928 = vpop.permute.xlu0 %1927
      %1929 = vrot.lane.b32.xlu0 %v1660, 31
      %v1930 = vpop.permute.xlu0 %1929
      %1931 = vrot.lane.b32.xlu0 %v1790, 31
      %v1932 = vpop.permute.xlu0 %1931
      %1933 = vrot.lane.b32.xlu0 %v1662, 31
      %v1934 = vpop.permute.xlu0 %1933
      %1935 = vrot.lane.b32.xlu0 %v1791, 31
      %v1936 = vpop.permute.xlu0 %1935
      %1937 = vrot.lane.b32.xlu0 %v1701, 31
      %v1938 = vpop.permute.xlu0 %1937
      %1939 = vrot.lane.b32.xlu0 %v1792, 31
      %v1940 = vpop.permute.xlu0 %1939
      %1941 = vrot.lane.b32.xlu0 %v1703, 31
      %v1942 = vpop.permute.xlu0 %1941
      %1943 = vrot.lane.b32.xlu0 %v1793, 31
      %v1944 = vpop.permute.xlu0 %1943
      %1945 = vrot.lane.b32.xlu0 %v1742, 31
      %v1946 = vpop.permute.xlu0 %1945
      %1947 = vrot.lane.b32.xlu0 %v1794, 31
      %v1948 = vpop.permute.xlu0 %1947
      %1949 = vrot.lane.b32.xlu0 %v1744, 31
      %v1950 = vpop.permute.xlu0 %1949
      %1951 = vrot.lane.b32.xlu0 %v1795, 31
      %v1952 = vpop.permute.xlu0 %1951
      %1953 = vrot.lane.b32.xlu0 %v1783, 31
      %v1954 = vpop.permute.xlu0 %1953
      %1955 = vrot.lane.b32.xlu0 %v1796, 31
      %v1956 = vpop.permute.xlu0 %1955
      %1957 = vrot.lane.b32.xlu0 %v1785, 31
      %v1958 = vpop.permute.xlu0 %1957
      %vm1959 = vcmp.lt.s32.totalorder %v612, 31
      %v1960 = vsel %vm1959, %v1952, %v1956
      %v1961 = vsel %vm1959, %v1954, %v1958
      %v1962 = vsel %vm1959, %v1948, %v1952
      %v1963 = vsel %vm1959, %v1950, %v1954
      %v1964 = vsel %vm1959, %v1944, %v1948
      %v1965 = vsel %vm1959, %v1946, %v1950
      %v1966 = vsel %vm1959, %v1940, %v1944
      %v1967 = vsel %vm1959, %v1942, %v1946
      %v1968 = vsel %vm1959, %v1936, %v1940
      %v1969 = vsel %vm1959, %v1938, %v1942
      %v1970 = vsel %vm1959, %v1932, %v1936
      %v1971 = vsel %vm1959, %v1934, %v1938
      %v1972 = vsel %vm1959, %v1928, %v1932
      %v1973 = vsel %vm1959, %v1930, %v1934
      %v1974 = vsel %vm1959, %v1956, %v1928
      %v1975 = vsel %vm1959, %v1958, %v1930
      %v1976 = vmul.f32 %v1974, %v741
      %v1977 = vmul.f32 %v1972, %v742
      %v1978 = vmul.f32 %v1970, %v743
      %v1979 = vmul.f32 %v1968, %v744
      %v1980 = vmul.f32 %v1966, %v745
      %v1981 = vmul.f32 %v1964, %v746
      %v1982 = vmul.f32 %v1962, %v747
      %v1983 = vmul.f32 %v1960, %v748
      %v1984 = vmul.f32 %v1975, %v741
      %v1985 = vmul.f32 %v1973, %v742
      %v1986 = vmul.f32 %v1971, %v743
      %v1987 = vmul.f32 %v1969, %v744
      %v1988 = vmul.f32 %v1967, %v745
      %v1989 = vmul.f32 %v1965, %v746
      %v1990 = vmul.f32 %v1963, %v747
      %v1991 = vmul.f32 %v1961, %v748
      %1992 = vrot.lane.b32.xlu0 %v1789, 1
      %v1993 = vpop.permute.xlu0 %1992
      %1994 = vrot.lane.b32.xlu0 %v1660, 1
      %v1995 = vpop.permute.xlu0 %1994
      %1996 = vrot.lane.b32.xlu0 %v1790, 1
      %v1997 = vpop.permute.xlu0 %1996
      %1998 = vrot.lane.b32.xlu0 %v1662, 1
      %v1999 = vpop.permute.xlu0 %1998
      %2000 = vrot.lane.b32.xlu0 %v1791, 1
      %v2001 = vpop.permute.xlu0 %2000
      %2002 = vrot.lane.b32.xlu0 %v1701, 1
      %v2003 = vpop.permute.xlu0 %2002
      %2004 = vrot.lane.b32.xlu0 %v1792, 1
      %v2005 = vpop.permute.xlu0 %2004
      %2006 = vrot.lane.b32.xlu0 %v1703, 1
      %v2007 = vpop.permute.xlu0 %2006
      %2008 = vrot.lane.b32.xlu0 %v1793, 1
      %v2009 = vpop.permute.xlu0 %2008
      %2010 = vrot.lane.b32.xlu0 %v1742, 1
      %v2011 = vpop.permute.xlu0 %2010
      %2012 = vrot.lane.b32.xlu0 %v1794, 1
      %v2013 = vpop.permute.xlu0 %2012
      %2014 = vrot.lane.b32.xlu0 %v1744, 1
      %v2015 = vpop.permute.xlu0 %2014
      %2016 = vrot.lane.b32.xlu0 %v1795, 1
      %v2017 = vpop.permute.xlu0 %2016
      %2018 = vrot.lane.b32.xlu0 %v1783, 1
      %v2019 = vpop.permute.xlu0 %2018
      %2020 = vrot.lane.b32.xlu0 %v1796, 1
      %v2021 = vpop.permute.xlu0 %2020
      %2022 = vrot.lane.b32.xlu0 %v1785, 1
      %v2023 = vpop.permute.xlu0 %2022
      %vm2024 = vcmp.lt.s32.totalorder %v612, 1
      %v2025 = vsel %vm2024, %v2017, %v2021
      %v2026 = vsel %vm2024, %v2019, %v2023
      %v2027 = vsel %vm2024, %v2013, %v2017
      %v2028 = vsel %vm2024, %v2015, %v2019
      %v2029 = vsel %vm2024, %v2009, %v2013
      %v2030 = vsel %vm2024, %v2011, %v2015
      %v2031 = vsel %vm2024, %v2005, %v2009
      %v2032 = vsel %vm2024, %v2007, %v2011
      %v2033 = vsel %vm2024, %v2001, %v2005
      %v2034 = vsel %vm2024, %v2003, %v2007
      %v2035 = vsel %vm2024, %v1997, %v2001
      %v2036 = vsel %vm2024, %v1999, %v2003
      %v2037 = vsel %vm2024, %v1993, %v1997
      %v2038 = vsel %vm2024, %v1995, %v1999
      %v2039 = vsel %vm2024, %v2021, %v1993
      %v2040 = vsel %vm2024, %v2023, %v1995
      %v2041 = vmul.f32 %v2039, %v757
      %v2042 = vmul.f32 %v2037, %v758
      %v2043 = vmul.f32 %v2035, %v759
      %v2044 = vmul.f32 %v2033, %v760
      %v2045 = vmul.f32 %v2031, %v761
      %v2046 = vmul.f32 %v2029, %v762
      %v2047 = vmul.f32 %v2027, %v763
      %v2048 = vmul.f32 %v2025, %v764
      %v2049 = vmul.f32 %v2040, %v757
      %v2050 = vmul.f32 %v2038, %v758
      %v2051 = vmul.f32 %v2036, %v759
      %v2052 = vmul.f32 %v2034, %v760
      %v2053 = vmul.f32 %v2032, %v761
      %v2054 = vmul.f32 %v2030, %v762
      %v2055 = vmul.f32 %v2028, %v763
      %v2056 = vmul.f32 %v2026, %v764
      %2057 = vrot.lane.b32.xlu0 %v1789, 127
      %v2058 = vpop.permute.xlu0 %2057
      %2059 = vrot.lane.b32.xlu0 %v1660, 127
      %v2060 = vpop.permute.xlu0 %2059
      %2061 = vrot.lane.b32.xlu0 %v1790, 127
      %v2062 = vpop.permute.xlu0 %2061
      %2063 = vrot.lane.b32.xlu0 %v1662, 127
      %v2064 = vpop.permute.xlu0 %2063
      %2065 = vrot.lane.b32.xlu0 %v1791, 127
      %v2066 = vpop.permute.xlu0 %2065
      %2067 = vrot.lane.b32.xlu0 %v1701, 127
      %v2068 = vpop.permute.xlu0 %2067
      %2069 = vrot.lane.b32.xlu0 %v1792, 127
      %v2070 = vpop.permute.xlu0 %2069
      %2071 = vrot.lane.b32.xlu0 %v1703, 127
      %v2072 = vpop.permute.xlu0 %2071
      %2073 = vrot.lane.b32.xlu0 %v1793, 127
      %v2074 = vpop.permute.xlu0 %2073
      %2075 = vrot.lane.b32.xlu0 %v1742, 127
      %v2076 = vpop.permute.xlu0 %2075
      %2077 = vrot.lane.b32.xlu0 %v1794, 127
      %v2078 = vpop.permute.xlu0 %2077
      %2079 = vrot.lane.b32.xlu0 %v1744, 127
      %v2080 = vpop.permute.xlu0 %2079
      %2081 = vrot.lane.b32.xlu0 %v1795, 127
      %v2082 = vpop.permute.xlu0 %2081
      %2083 = vrot.lane.b32.xlu0 %v1783, 127
      %v2084 = vpop.permute.xlu0 %2083
      %2085 = vrot.lane.b32.xlu0 %v1796, 127
      %v2086 = vpop.permute.xlu0 %2085
      %2087 = vrot.lane.b32.xlu0 %v1785, 127
      %v2088 = vpop.permute.xlu0 %2087
      %vm2089 = vcmp.lt.s32.totalorder %v612, 127
      %v2090 = vsel %vm2089, %v2082, %v2086
      %v2091 = vsel %vm2089, %v2084, %v2088
      %v2092 = vsel %vm2089, %v2078, %v2082
      %v2093 = vsel %vm2089, %v2080, %v2084
      %v2094 = vsel %vm2089, %v2074, %v2078
      %v2095 = vsel %vm2089, %v2076, %v2080
      %v2096 = vsel %vm2089, %v2070, %v2074
      %v2097 = vsel %vm2089, %v2072, %v2076
      %v2098 = vsel %vm2089, %v2066, %v2070
      %v2099 = vsel %vm2089, %v2068, %v2072
      %v2100 = vsel %vm2089, %v2062, %v2066
      %v2101 = vsel %vm2089, %v2064, %v2068
      %v2102 = vsel %vm2089, %v2058, %v2062
      %v2103 = vsel %vm2089, %v2060, %v2064
      %v2104 = vsel %vm2089, %v2086, %v2058
      %v2105 = vsel %vm2089, %v2088, %v2060
      %v2106 = vmul.f32 %v2102, %v773
      %v2107 = vmul.f32 %v2100, %v774
      %v2108 = vmul.f32 %v2098, %v775
      %v2109 = vmul.f32 %v2096, %v776
      %v2110 = vmul.f32 %v2094, %v777
      %v2111 = vmul.f32 %v2092, %v778
      %v2112 = vmul.f32 %v2090, %v779
      %v2113 = vmul.f32 %v2104, %v780
      %v2114 = vmul.f32 %v2103, %v773
      %v2115 = vmul.f32 %v2101, %v774
      %v2116 = vmul.f32 %v2099, %v775
      %v2117 = vmul.f32 %v2097, %v776
      %v2118 = vmul.f32 %v2095, %v777
      %v2119 = vmul.f32 %v2093, %v778
      %v2120 = vmul.f32 %v2091, %v779
      %v2121 = vmul.f32 %v2105, %v780
      %2122 = vrot.lane.b32.xlu0 %v1789, 97
      %v2123 = vpop.permute.xlu0 %2122
      %2124 = vrot.lane.b32.xlu0 %v1660, 97
      %v2125 = vpop.permute.xlu0 %2124
      %2126 = vrot.lane.b32.xlu0 %v1790, 97
      %v2127 = vpop.permute.xlu0 %2126
      %2128 = vrot.lane.b32.xlu0 %v1662, 97
      %v2129 = vpop.permute.xlu0 %2128
      %2130 = vrot.lane.b32.xlu0 %v1791, 97
      %v2131 = vpop.permute.xlu0 %2130
      %2132 = vrot.lane.b32.xlu0 %v1701, 97
      %v2133 = vpop.permute.xlu0 %2132
      %2134 = vrot.lane.b32.xlu0 %v1792, 97
      %v2135 = vpop.permute.xlu0 %2134
      %2136 = vrot.lane.b32.xlu0 %v1703, 97
      %v2137 = vpop.permute.xlu0 %2136
      %2138 = vrot.lane.b32.xlu0 %v1793, 97
      %v2139 = vpop.permute.xlu0 %2138
      %2140 = vrot.lane.b32.xlu0 %v1742, 97
      %v2141 = vpop.permute.xlu0 %2140
      %2142 = vrot.lane.b32.xlu0 %v1794, 97
      %v2143 = vpop.permute.xlu0 %2142
      %2144 = vrot.lane.b32.xlu0 %v1744, 97
      %v2145 = vpop.permute.xlu0 %2144
      %2146 = vrot.lane.b32.xlu0 %v1795, 97
      %v2147 = vpop.permute.xlu0 %2146
      %2148 = vrot.lane.b32.xlu0 %v1783, 97
      %v2149 = vpop.permute.xlu0 %2148
      %2150 = vrot.lane.b32.xlu0 %v1796, 97
      %v2151 = vpop.permute.xlu0 %2150
      %2152 = vrot.lane.b32.xlu0 %v1785, 97
      %v2153 = vpop.permute.xlu0 %2152
      %vm2154 = vcmp.lt.s32.totalorder %v612, 97
      %v2155 = vsel %vm2154, %v2147, %v2151
      %v2156 = vsel %vm2154, %v2149, %v2153
      %v2157 = vsel %vm2154, %v2143, %v2147
      %v2158 = vsel %vm2154, %v2145, %v2149
      %v2159 = vsel %vm2154, %v2139, %v2143
      %v2160 = vsel %vm2154, %v2141, %v2145
      %v2161 = vsel %vm2154, %v2135, %v2139
      %v2162 = vsel %vm2154, %v2137, %v2141
      %v2163 = vsel %vm2154, %v2131, %v2135
      %v2164 = vsel %vm2154, %v2133, %v2137
      %v2165 = vsel %vm2154, %v2127, %v2131
      %v2166 = vsel %vm2154, %v2129, %v2133
      %v2167 = vsel %vm2154, %v2123, %v2127
      %v2168 = vsel %vm2154, %v2125, %v2129
      %v2169 = vsel %vm2154, %v2151, %v2123
      %v2170 = vsel %vm2154, %v2153, %v2125
      %v2171 = vmul.f32 %v2167, %v805
      %v2172 = vmul.f32 %v2165, %v806
      %v2173 = vmul.f32 %v2163, %v807
      %v2174 = vmul.f32 %v2161, %v808
      %v2175 = vmul.f32 %v2159, %v809
      %v2176 = vmul.f32 %v2157, %v810
      %v2177 = vmul.f32 %v2155, %v811
      %v2178 = vmul.f32 %v2169, %v812
      %v2179 = vmul.f32 %v2168, %v805
      %v2180 = vmul.f32 %v2166, %v806
      %v2181 = vmul.f32 %v2164, %v807
      %v2182 = vmul.f32 %v2162, %v808
      %v2183 = vmul.f32 %v2160, %v809
      %v2184 = vmul.f32 %v2158, %v810
      %v2185 = vmul.f32 %v2156, %v811
      %v2186 = vmul.f32 %v2170, %v812
      %2187 = vrot.lane.b32.xlu0 %v1789, 96
      %v2188 = vpop.permute.xlu0 %2187
      %2189 = vrot.lane.b32.xlu0 %v1660, 96
      %v2190 = vpop.permute.xlu0 %2189
      %2191 = vrot.lane.b32.xlu0 %v1790, 96
      %v2192 = vpop.permute.xlu0 %2191
      %2193 = vrot.lane.b32.xlu0 %v1662, 96
      %v2194 = vpop.permute.xlu0 %2193
      %2195 = vrot.lane.b32.xlu0 %v1791, 96
      %v2196 = vpop.permute.xlu0 %2195
      %2197 = vrot.lane.b32.xlu0 %v1701, 96
      %v2198 = vpop.permute.xlu0 %2197
      %2199 = vrot.lane.b32.xlu0 %v1792, 96
      %v2200 = vpop.permute.xlu0 %2199
      %2201 = vrot.lane.b32.xlu0 %v1703, 96
      %v2202 = vpop.permute.xlu0 %2201
      %2203 = vrot.lane.b32.xlu0 %v1793, 96
      %v2204 = vpop.permute.xlu0 %2203
      %2205 = vrot.lane.b32.xlu0 %v1742, 96
      %v2206 = vpop.permute.xlu0 %2205
      %2207 = vrot.lane.b32.xlu0 %v1794, 96
      %v2208 = vpop.permute.xlu0 %2207
      %2209 = vrot.lane.b32.xlu0 %v1744, 96
      %v2210 = vpop.permute.xlu0 %2209
      %2211 = vrot.lane.b32.xlu0 %v1795, 96
      %v2212 = vpop.permute.xlu0 %2211
      %2213 = vrot.lane.b32.xlu0 %v1783, 96
      %v2214 = vpop.permute.xlu0 %2213
      %2215 = vrot.lane.b32.xlu0 %v1796, 96
      %v2216 = vpop.permute.xlu0 %2215
      %2217 = vrot.lane.b32.xlu0 %v1785, 96
      %v2218 = vpop.permute.xlu0 %2217
      %vm2219 = vcmp.lt.s32.totalorder %v612, 96
      %v2220 = vsel %vm2219, %v2212, %v2216
      %v2221 = vsel %vm2219, %v2214, %v2218
      %v2222 = vsel %vm2219, %v2208, %v2212
      %v2223 = vsel %vm2219, %v2210, %v2214
      %v2224 = vsel %vm2219, %v2204, %v2208
      %v2225 = vsel %vm2219, %v2206, %v2210
      %v2226 = vsel %vm2219, %v2200, %v2204
      %v2227 = vsel %vm2219, %v2202, %v2206
      %v2228 = vsel %vm2219, %v2196, %v2200
      %v2229 = vsel %vm2219, %v2198, %v2202
      %v2230 = vsel %vm2219, %v2192, %v2196
      %v2231 = vsel %vm2219, %v2194, %v2198
      %v2232 = vsel %vm2219, %v2188, %v2192
      %v2233 = vsel %vm2219, %v2190, %v2194
      %v2234 = vsel %vm2219, %v2216, %v2188
      %v2235 = vsel %vm2219, %v2218, %v2190
      %v2236 = vmul.f32 %v2232, %v821
      %v2237 = vmul.f32 %v2230, %v822
      %v2238 = vmul.f32 %v2228, %v823
      %v2239 = vmul.f32 %v2226, %v824
      %v2240 = vmul.f32 %v2224, %v825
      %v2241 = vmul.f32 %v2222, %v826
      %v2242 = vmul.f32 %v2220, %v827
      %v2243 = vmul.f32 %v2234, %v828
      %v2244 = vmul.f32 %v2233, %v821
      %v2245 = vmul.f32 %v2231, %v822
      %v2246 = vmul.f32 %v2229, %v823
      %v2247 = vmul.f32 %v2227, %v824
      %v2248 = vmul.f32 %v2225, %v825
      %v2249 = vmul.f32 %v2223, %v826
      %v2250 = vmul.f32 %v2221, %v827
      %v2251 = vmul.f32 %v2235, %v828
      %2252 = vrot.lane.b32.xlu0 %v1789, 95
      %v2253 = vpop.permute.xlu0 %2252
      %2254 = vrot.lane.b32.xlu0 %v1660, 95
      %v2255 = vpop.permute.xlu0 %2254
      %2256 = vrot.lane.b32.xlu0 %v1790, 95
      %v2257 = vpop.permute.xlu0 %2256
      %2258 = vrot.lane.b32.xlu0 %v1662, 95
      %v2259 = vpop.permute.xlu0 %2258
      %2260 = vrot.lane.b32.xlu0 %v1791, 95
      %v2261 = vpop.permute.xlu0 %2260
      %2262 = vrot.lane.b32.xlu0 %v1701, 95
      %v2263 = vpop.permute.xlu0 %2262
      %2264 = vrot.lane.b32.xlu0 %v1792, 95
      %v2265 = vpop.permute.xlu0 %2264
      %2266 = vrot.lane.b32.xlu0 %v1703, 95
      %v2267 = vpop.permute.xlu0 %2266
      %2268 = vrot.lane.b32.xlu0 %v1793, 95
      %v2269 = vpop.permute.xlu0 %2268
      %2270 = vrot.lane.b32.xlu0 %v1742, 95
      %v2271 = vpop.permute.xlu0 %2270
      %2272 = vrot.lane.b32.xlu0 %v1794, 95
      %v2273 = vpop.permute.xlu0 %2272
      %2274 = vrot.lane.b32.xlu0 %v1744, 95
      %v2275 = vpop.permute.xlu0 %2274
      %2276 = vrot.lane.b32.xlu0 %v1795, 95
      %v2277 = vpop.permute.xlu0 %2276
      %2278 = vrot.lane.b32.xlu0 %v1783, 95
      %v2279 = vpop.permute.xlu0 %2278
      %2280 = vrot.lane.b32.xlu0 %v1796, 95
      %v2281 = vpop.permute.xlu0 %2280
      %2282 = vrot.lane.b32.xlu0 %v1785, 95
      %v2283 = vpop.permute.xlu0 %2282
      %vm2284 = vcmp.lt.s32.totalorder %v612, 95
      %v2285 = vsel %vm2284, %v2277, %v2281
      %v2286 = vsel %vm2284, %v2279, %v2283
      %v2287 = vsel %vm2284, %v2273, %v2277
      %v2288 = vsel %vm2284, %v2275, %v2279
      %v2289 = vsel %vm2284, %v2269, %v2273
      %v2290 = vsel %vm2284, %v2271, %v2275
      %v2291 = vsel %vm2284, %v2265, %v2269
      %v2292 = vsel %vm2284, %v2267, %v2271
      %v2293 = vsel %vm2284, %v2261, %v2265
      %v2294 = vsel %vm2284, %v2263, %v2267
      %v2295 = vsel %vm2284, %v2257, %v2261
      %v2296 = vsel %vm2284, %v2259, %v2263
      %v2297 = vsel %vm2284, %v2253, %v2257
      %v2298 = vsel %vm2284, %v2255, %v2259
      %v2299 = vsel %vm2284, %v2281, %v2253
      %v2300 = vsel %vm2284, %v2283, %v2255
      %v2301 = vmul.f32 %v2297, %v845
      %v2302 = vmul.f32 %v2295, %v846
      %v2303 = vmul.f32 %v2293, %v847
      %v2304 = vmul.f32 %v2291, %v848
      %v2305 = vmul.f32 %v2289, %v849
      %v2306 = vmul.f32 %v2287, %v850
      %v2307 = vmul.f32 %v2285, %v851
      %v2308 = vmul.f32 %v2299, %v852
      %v2309 = vmul.f32 %v2298, %v845
      %v2310 = vmul.f32 %v2296, %v846
      %v2311 = vmul.f32 %v2294, %v847
      %v2312 = vmul.f32 %v2292, %v848
      %v2313 = vmul.f32 %v2290, %v849
      %v2314 = vmul.f32 %v2288, %v850
      %v2315 = vmul.f32 %v2286, %v851
      %v2316 = vmul.f32 %v2300, %v852
      %v2317 = vld [vmem:[%s4] sm:$0xff]
      %v2318 = vld [vmem:[%s4 + $0x8] sm:$0xff]
      %v2319 = vpack.c.bf16 %v1854, %v1846
      %v2320 = vpack.c.bf16 %v1855, %v1847
      %v2321 = vpack.c.bf16 %v1856, %v1848
      %v2322 = vpack.c.bf16 %v1857, %v1849
      %v2323 = vpack.c.bf16 %v1858, %v1850
      %v2324 = vpack.c.bf16 %v1859, %v1851
      %v2325 = vpack.c.bf16 %v1860, %v1852
      %v2326 = vpack.c.bf16 %v1861, %v1853
      %v2327 = vpack.c.bf16 %v1919, %v1911
      %v2328 = vpack.c.bf16 %v1920, %v1912
      %v2329 = vpack.c.bf16 %v1921, %v1913
      %v2330 = vpack.c.bf16 %v1922, %v1914
      %v2331 = vpack.c.bf16 %v1923, %v1915
      %v2332 = vpack.c.bf16 %v1924, %v1916
      %v2333 = vpack.c.bf16 %v1925, %v1917
      %v2334 = vpack.c.bf16 %v1926, %v1918
      %v2335 = vpack.c.bf16 %v1984, %v1976
      %v2336 = vpack.c.bf16 %v1985, %v1977
      %v2337 = vpack.c.bf16 %v1986, %v1978
      %v2338 = vpack.c.bf16 %v1987, %v1979
      %v2339 = vpack.c.bf16 %v1988, %v1980
      %v2340 = vpack.c.bf16 %v1989, %v1981
      %v2341 = vpack.c.bf16 %v1990, %v1982
      %v2342 = vpack.c.bf16 %v1991, %v1983
      %v2343 = vpack.c.bf16 %v2049, %v2041
      %v2344 = vpack.c.bf16 %v2050, %v2042
      %v2345 = vpack.c.bf16 %v2051, %v2043
      %v2346 = vpack.c.bf16 %v2052, %v2044
      %v2347 = vpack.c.bf16 %v2053, %v2045
      %v2348 = vpack.c.bf16 %v2054, %v2046
      %v2349 = vpack.c.bf16 %v2055, %v2047
      %v2350 = vpack.c.bf16 %v2056, %v2048
      %v2351 = vpack.c.bf16 %v1660, %v1789
      %v2352 = vpack.c.bf16 %v1662, %v1790
      %v2353 = vpack.c.bf16 %v1701, %v1791
      %v2354 = vpack.c.bf16 %v1703, %v1792
      %v2355 = vpack.c.bf16 %v1742, %v1793
      %v2356 = vpack.c.bf16 %v1744, %v1794
      %v2357 = vpack.c.bf16 %v1783, %v1795
      %v2358 = vpack.c.bf16 %v1785, %v1796
      %v2359 = vpack.c.bf16 %v2114, %v2106
      %v2360 = vpack.c.bf16 %v2115, %v2107
      %v2361 = vpack.c.bf16 %v2116, %v2108
      %v2362 = vpack.c.bf16 %v2117, %v2109
      %v2363 = vpack.c.bf16 %v2118, %v2110
      %v2364 = vpack.c.bf16 %v2119, %v2111
      %v2365 = vpack.c.bf16 %v2120, %v2112
      %v2366 = vpack.c.bf16 %v2121, %v2113
      %v2367 = vpack.c.bf16 %v2179, %v2171
      %v2368 = vpack.c.bf16 %v2180, %v2172
      %v2369 = vpack.c.bf16 %v2181, %v2173
      %v2370 = vpack.c.bf16 %v2182, %v2174
      %v2371 = vpack.c.bf16 %v2183, %v2175
      %v2372 = vpack.c.bf16 %v2184, %v2176
      %v2373 = vpack.c.bf16 %v2185, %v2177
      %v2374 = vpack.c.bf16 %v2186, %v2178
      %v2375 = vpack.c.bf16 %v2244, %v2236
      %v2376 = vpack.c.bf16 %v2245, %v2237
      %v2377 = vpack.c.bf16 %v2246, %v2238
      %v2378 = vpack.c.bf16 %v2247, %v2239
      %v2379 = vpack.c.bf16 %v2248, %v2240
      %v2380 = vpack.c.bf16 %v2249, %v2241
      %v2381 = vpack.c.bf16 %v2250, %v2242
      %v2382 = vpack.c.bf16 %v2251, %v2243
      %v2383 = vpack.c.bf16 %v2309, %v2301
      %v2384 = vpack.c.bf16 %v2310, %v2302
      %v2385 = vpack.c.bf16 %v2311, %v2303
      %v2386 = vpack.c.bf16 %v2312, %v2304
      %v2387 = vpack.c.bf16 %v2313, %v2305
      %v2388 = vpack.c.bf16 %v2314, %v2306
      %v2389 = vpack.c.bf16 %v2315, %v2307
      %v2390 = vpack.c.bf16 %v2316, %v2308
      %v2393 = vunpack.c.l.b16 %v2317
      %v2394 = vunpack.c.h.b16 %v2317
      %v2395 = vunpack.c.l.b16 %v2318
      %v2396 = vunpack.c.h.b16 %v2318
      %v2397 = vpack.c.b16 %v2395, %v2393
      %v2398 = vpack.c.b16 %v2396, %v2394
      %vm2400 = vcmask 130048
      %v2402 = vsel %vm2400, %v2398, 0
      %2404 = vmatprep.subr.bf16.mxu0 %v2376
      %2405 = vmatpush1.bf16.msra.mxu0 %v2375
      %2406 = vmatprep.subr.bf16.mxu0 %v2368
      %2407 = vmatpush1.bf16.msra.mxu0 %v2367
      %2408 = vmatprep.subr.bf16.mxu0 %v2360
      %2409 = vmatpush1.bf16.msra.mxu0 %v2359
      %2410 = vmatprep.subr.bf16.mxu0 %v2352
      %2411 = vmatpush1.bf16.msra.mxu0 %v2351
      %2412 = vmatprep.subr.bf16.mxu0 %v2344
      %2413 = vmatpush1.bf16.msra.mxu0 %v2343
      %2414 = vmatprep.subr.bf16.mxu0 %v2336
      %2415 = vmatpush1.bf16.msra.mxu0 %v2335
      %2416 = vmatprep.subr.bf16.mxu0 %v2328
      %2417 = vmatpush1.bf16.msra.mxu0 %v2327
      %2418 = vmatprep.subr.bf16.mxu0 %v2320
      %2419 = vmatpush1.bf16.msra.mxu0 %v2319
      %2420 = vmatprep.subr.bf16.mxu0 0
      %2421 = vmatpush2.bf16.msra.mxu0 0
      %2422 = vmatprep.subr.bf16.mxu0 0
      %2423 = vmatpush2.bf16.msra.mxu0 0
      %2424 = vmatprep.subr.bf16.mxu0 0
      %2425 = vmatpush2.bf16.msra.mxu0 0
      %2426 = vmatprep.subr.bf16.mxu0 0
      %2427 = vmatpush2.bf16.msra.mxu0 0
      %2428 = vmatprep.subr.bf16.mxu0 0
      %2429 = vmatpush2.bf16.msra.mxu0 0
      %2430 = vmatprep.subr.bf16.mxu0 0
      %2431 = vmatpush2.bf16.msra.mxu0 0
      %2432 = vmatprep.subr.bf16.mxu0 0
      %2433 = vmatpush2.bf16.msra.mxu0 0
      %2434 = vmatprep.subr.bf16.mxu0 %v2384
      %2435 = vmatpush2.bf16.msra.mxu0 %v2383
      %2436 = vmatprep.mubr.bf16.mxu0 %v2402
      %2437 = vmatmul.mubr.bf16.gmra.mxu0 %v2397
      %v2438 = vpop.f32.mrf.mxu0
      %v2439 = vadd.f32 0.0, %v2438
      %v2440 = vpop.f32.mrf.mxu0
      %v2441 = vadd.f32 0.0, %v2440
      %v2442 = vpop.f32.mrf.mxu0
      %v2443 = vadd.f32 0.0, %v2442
      %v2444 = vpop.f32.mrf.mxu0
      %v2445 = vadd.f32 0.0, %v2444
      %2446 = vdwg.mxu0
      %2447 = vmatprep.subr.bf16.mxu0 %v2378
      %2448 = vmatpush1.bf16.msra.mxu0 %v2377
      %2449 = vmatprep.subr.bf16.mxu0 %v2370
      %2450 = vmatpush1.bf16.msra.mxu0 %v2369
      %2451 = vmatprep.subr.bf16.mxu0 %v2362
      %2452 = vmatpush1.bf16.msra.mxu0 %v2361
      %2453 = vmatprep.subr.bf16.mxu0 %v2354
      %2454 = vmatpush1.bf16.msra.mxu0 %v2353
      %2455 = vmatprep.subr.bf16.mxu0 %v2346
      %2456 = vmatpush1.bf16.msra.mxu0 %v2345
      %2457 = vmatprep.subr.bf16.mxu0 %v2338
      %2458 = vmatpush1.bf16.msra.mxu0 %v2337
      %2459 = vmatprep.subr.bf16.mxu0 %v2330
      %2460 = vmatpush1.bf16.msra.mxu0 %v2329
      %2461 = vmatprep.subr.bf16.mxu0 %v2322
      %2462 = vmatpush1.bf16.msra.mxu0 %v2321
      %2463 = vmatprep.subr.bf16.mxu0 0
      %2464 = vmatpush2.bf16.msra.mxu0 0
      %2465 = vmatprep.subr.bf16.mxu0 0
      %2466 = vmatpush2.bf16.msra.mxu0 0
      %2467 = vmatprep.subr.bf16.mxu0 0
      %2468 = vmatpush2.bf16.msra.mxu0 0
      %2469 = vmatprep.subr.bf16.mxu0 0
      %2470 = vmatpush2.bf16.msra.mxu0 0
      %2471 = vmatprep.subr.bf16.mxu0 0
      %2472 = vmatpush2.bf16.msra.mxu0 0
      %2473 = vmatprep.subr.bf16.mxu0 0
      %2474 = vmatpush2.bf16.msra.mxu0 0
      %2475 = vmatprep.subr.bf16.mxu0 0
      %2476 = vmatpush2.bf16.msra.mxu0 0
      %2477 = vmatprep.subr.bf16.mxu0 %v2386
      %2478 = vmatpush2.bf16.msra.mxu0 %v2385
      %2479 = vmatprep.mubr.bf16.mxu0 %v2402
      %2480 = vmatmul.mubr.bf16.gmra.mxu0 %v2397
      %v2481 = vpop.f32.mrf.mxu0
      %v2482 = vadd.f32 0.0, %v2481
      %v2483 = vpop.f32.mrf.mxu0
      %v2484 = vadd.f32 0.0, %v2483
      %v2485 = vpop.f32.mrf.mxu0
      %v2486 = vadd.f32 0.0, %v2485
      %v2487 = vpop.f32.mrf.mxu0
      %v2488 = vadd.f32 0.0, %v2487
      %2489 = vdwg.mxu0
      %2490 = vmatprep.subr.bf16.mxu0 %v2380
      %2491 = vmatpush1.bf16.msra.mxu0 %v2379
      %2492 = vmatprep.subr.bf16.mxu0 %v2372
      %2493 = vmatpush1.bf16.msra.mxu0 %v2371
      %2494 = vmatprep.subr.bf16.mxu0 %v2364
      %2495 = vmatpush1.bf16.msra.mxu0 %v2363
      %2496 = vmatprep.subr.bf16.mxu0 %v2356
      %2497 = vmatpush1.bf16.msra.mxu0 %v2355
      %2498 = vmatprep.subr.bf16.mxu0 %v2348
      %2499 = vmatpush1.bf16.msra.mxu0 %v2347
      %2500 = vmatprep.subr.bf16.mxu0 %v2340
      %2501 = vmatpush1.bf16.msra.mxu0 %v2339
      %2502 = vmatprep.subr.bf16.mxu0 %v2332
      %2503 = vmatpush1.bf16.msra.mxu0 %v2331
      %2504 = vmatprep.subr.bf16.mxu0 %v2324
      %2505 = vmatpush1.bf16.msra.mxu0 %v2323
      %2506 = vmatprep.subr.bf16.mxu0 0
      %2507 = vmatpush2.bf16.msra.mxu0 0
      %2508 = vmatprep.subr.bf16.mxu0 0
      %2509 = vmatpush2.bf16.msra.mxu0 0
      %2510 = vmatprep.subr.bf16.mxu0 0
      %2511 = vmatpush2.bf16.msra.mxu0 0
      %2512 = vmatprep.subr.bf16.mxu0 0
      %2513 = vmatpush2.bf16.msra.mxu0 0
      %2514 = vmatprep.subr.bf16.mxu0 0
      %2515 = vmatpush2.bf16.msra.mxu0 0
      %2516 = vmatprep.subr.bf16.mxu0 0
      %2517 = vmatpush2.bf16.msra.mxu0 0
      %2518 = vmatprep.subr.bf16.mxu0 0
      %2519 = vmatpush2.bf16.msra.mxu0 0
      %2520 = vmatprep.subr.bf16.mxu0 %v2388
      %2521 = vmatpush2.bf16.msra.mxu0 %v2387
      %2522 = vmatprep.mubr.bf16.mxu0 %v2402
      %2523 = vmatmul.mubr.bf16.gmra.mxu0 %v2397
      %v2524 = vpop.f32.mrf.mxu0
      %v2525 = vadd.f32 0.0, %v2524
      %v2526 = vpop.f32.mrf.mxu0
      %v2527 = vadd.f32 0.0, %v2526
      %v2528 = vpop.f32.mrf.mxu0
      %v2529 = vadd.f32 0.0, %v2528
      %v2530 = vpop.f32.mrf.mxu0
      %v2531 = vadd.f32 0.0, %v2530
      %2532 = vdwg.mxu0
      %2533 = vmatprep.subr.bf16.mxu0 %v2382
      %2534 = vmatpush1.bf16.msra.mxu0 %v2381
      %2535 = vmatprep.subr.bf16.mxu0 %v2374
      %2536 = vmatpush1.bf16.msra.mxu0 %v2373
      %2537 = vmatprep.subr.bf16.mxu0 %v2366
      %2538 = vmatpush1.bf16.msra.mxu0 %v2365
      %2539 = vmatprep.subr.bf16.mxu0 %v2358
      %2540 = vmatpush1.bf16.msra.mxu0 %v2357
      %2541 = vmatprep.subr.bf16.mxu0 %v2350
      %2542 = vmatpush1.bf16.msra.mxu0 %v2349
      %2543 = vmatprep.subr.bf16.mxu0 %v2342
      %2544 = vmatpush1.bf16.msra.mxu0 %v2341
      %2545 = vmatprep.subr.bf16.mxu0 %v2334
      %2546 = vmatpush1.bf16.msra.mxu0 %v2333
      %2547 = vmatprep.subr.bf16.mxu0 %v2326
      %2548 = vmatpush1.bf16.msra.mxu0 %v2325
      %2549 = vmatprep.subr.bf16.mxu0 0
      %2550 = vmatpush2.bf16.msra.mxu0 0
      %2551 = vmatprep.subr.bf16.mxu0 0
      %2552 = vmatpush2.bf16.msra.mxu0 0
      %2553 = vmatprep.subr.bf16.mxu0 0
      %2554 = vmatpush2.bf16.msra.mxu0 0
      %2555 = vmatprep.subr.bf16.mxu0 0
      %2556 = vmatpush2.bf16.msra.mxu0 0
      %2557 = vmatprep.subr.bf16.mxu0 0
      %2558 = vmatpush2.bf16.msra.mxu0 0
      %2559 = vmatprep.subr.bf16.mxu0 0
      %2560 = vmatpush2.bf16.msra.mxu0 0
      %2561 = vmatprep.subr.bf16.mxu0 0
      %2562 = vmatpush2.bf16.msra.mxu0 0
      %2563 = vmatprep.subr.bf16.mxu0 %v2390
      %2564 = vmatpush2.bf16.msra.mxu0 %v2389
      %2565 = vmatprep.mubr.bf16.mxu0 %v2402
      %2566 = vmatmul.mubr.bf16.gmra.mxu0 %v2397
      %v2567 = vpop.f32.mrf.mxu0
      %v2568 = vadd.f32 0.0, %v2567
      %v2569 = vpop.f32.mrf.mxu0
      %v2570 = vadd.f32 0.0, %v2569
      %v2571 = vpop.f32.mrf.mxu0
      %v2572 = vadd.f32 0.0, %v2571
      %v2573 = vpop.f32.mrf.mxu0
      %v2574 = vadd.f32 0.0, %v2573
      %2575 = vdwg.mxu0
      %v2576 = vadd.f32 %v2439, %v2441
      %v2577 = vadd.f32 %v2576, %v2482
      %v2578 = vadd.f32 %v2577, %v2484
      %v2579 = vadd.f32 %v2578, %v2525
      %v2580 = vadd.f32 %v2579, %v2527
      %v2581 = vadd.f32 %v2580, %v2568
      %v2582 = vadd.f32 %v2581, %v2570
      %v2583 = vadd.f32 %v2582, %v2443
      %v2584 = vadd.f32 %v2583, %v2445
      %v2585 = vadd.f32 %v2584, %v2486
      %v2586 = vadd.f32 %v2585, %v2488
      %v2587 = vadd.f32 %v2586, %v2529
      %v2588 = vadd.f32 %v2587, %v2531
      %v2589 = vadd.f32 %v2588, %v2572
      %v2590 = vadd.f32 %v2589, %v2574
      %2591 = vadd.xlane.f32.xlu0 %v2590
      %v2592 = vpop.xlane.xlu0 %2591
      %v2593 = vrot.slane %v2592, 4
      %v2594 = vadd.f32 %v2592, %v2593
      %v2595 = vrot.slane %v2594, 2
      %v2596 = vadd.f32 %v2594, %v2595
      %v2597 = vrot.slane %v2596, 1
      %v2598 = vadd.f32 %v2596, %v2597
      %s2599 = vtos %v2598
      %v2600 = vrcp.pop 16384.0
      %s2601 = vtos %v2600
      %s2602 = smul.f32 %s2599, %s2601
      %v2603 = vstv %s2602
      %v2604 = vsub.f32 %v2439, %v2603
      %v2605 = vsub.f32 %v2441, %v2603
      %v2606 = vsub.f32 %v2482, %v2603
      %v2607 = vsub.f32 %v2484, %v2603
      %v2608 = vsub.f32 %v2525, %v2603
      %v2609 = vsub.f32 %v2527, %v2603
      %v2610 = vsub.f32 %v2568, %v2603
      %v2611 = vsub.f32 %v2570, %v2603
      %v2612 = vsub.f32 %v2443, %v2603
      %v2613 = vsub.f32 %v2445, %v2603
      %v2614 = vsub.f32 %v2486, %v2603
      %v2615 = vsub.f32 %v2488, %v2603
      %v2616 = vsub.f32 %v2529, %v2603
      %v2617 = vsub.f32 %v2531, %v2603
      %v2618 = vsub.f32 %v2572, %v2603
      %v2619 = vsub.f32 %v2574, %v2603
      %v2620 = vmul.f32 %v2604, %v2604
      %v2621 = vmul.f32 %v2605, %v2605
      %v2622 = vmul.f32 %v2606, %v2606
      %v2623 = vmul.f32 %v2607, %v2607
      %v2624 = vmul.f32 %v2608, %v2608
      %v2625 = vmul.f32 %v2609, %v2609
      %v2626 = vmul.f32 %v2610, %v2610
      %v2627 = vmul.f32 %v2611, %v2611
      %v2628 = vmul.f32 %v2612, %v2612
      %v2629 = vmul.f32 %v2613, %v2613
      %v2630 = vmul.f32 %v2614, %v2614
      %v2631 = vmul.f32 %v2615, %v2615
      %v2632 = vmul.f32 %v2616, %v2616
      %v2633 = vmul.f32 %v2617, %v2617
      %v2634 = vmul.f32 %v2618, %v2618
      %v2635 = vmul.f32 %v2619, %v2619
      %v2636 = vadd.f32 %v2620, %v2621
      %v2637 = vadd.f32 %v2636, %v2622
      %v2638 = vadd.f32 %v2637, %v2623
      %v2639 = vadd.f32 %v2638, %v2624
      %v2640 = vadd.f32 %v2639, %v2625
      %v2641 = vadd.f32 %v2640, %v2626
      %v2642 = vadd.f32 %v2641, %v2627
      %v2643 = vadd.f32 %v2642, %v2628
      %v2644 = vadd.f32 %v2643, %v2629
      %v2645 = vadd.f32 %v2644, %v2630
      %v2646 = vadd.f32 %v2645, %v2631
      %v2647 = vadd.f32 %v2646, %v2632
      %v2648 = vadd.f32 %v2647, %v2633
      %v2649 = vadd.f32 %v2648, %v2634
      %v2650 = vadd.f32 %v2649, %v2635
      %2651 = vadd.xlane.f32.xlu0 %v2650
      %v2652 = vpop.xlane.xlu0 %2651
      %v2653 = vrot.slane %v2652, 4
      %v2654 = vadd.f32 %v2652, %v2653
      %v2655 = vrot.slane %v2654, 2
      %v2656 = vadd.f32 %v2654, %v2655
      %v2657 = vrot.slane %v2656, 1
      %v2658 = vadd.f32 %v2656, %v2657
      %s2659 = vtos %v2658
      %v2660 = vrcp.pop 16384.0
      %s2661 = vtos %v2660
      %s2662 = smul.f32 %s2659, %s2661
      %s2663 = sadd.f32 %s2662, 1e-05
      %v2664 = vstv %s2663
      %v2665 = vrsqrt.pop %v2664
      %s2666 = vtos %v2665
      %v2667 = vstv %s2666
      %v2668 = vmul.f32 %v2604, %v2667
      %v2669 = vmul.f32 %v2605, %v2667
      %v2670 = vmul.f32 %v2606, %v2667
      %v2671 = vmul.f32 %v2607, %v2667
      %v2672 = vmul.f32 %v2608, %v2667
      %v2673 = vmul.f32 %v2609, %v2667
      %v2674 = vmul.f32 %v2610, %v2667
      %v2675 = vmul.f32 %v2611, %v2667
      %v2676 = vmul.f32 %v2612, %v2667
      %v2677 = vmul.f32 %v2613, %v2667
      %v2678 = vmul.f32 %v2614, %v2667
      %v2679 = vmul.f32 %v2615, %v2667
      %v2680 = vmul.f32 %v2616, %v2667
      %v2681 = vmul.f32 %v2617, %v2667
      %v2682 = vmul.f32 %v2618, %v2667
      %v2683 = vmul.f32 %v2619, %v2667
      %v2684 = vld [vmem:[%s5] sm:$0xff]
      %v2685 = vld [vmem:[%s5 + $0x8] sm:$0xff]
      %2687 = vset.pattern.permute.xlu0 0
      %2688 = vperm.xlu0 %2687, %v2684
      %v2689 = vpop.permute.xlu0 %2688
      %2692 = vset.pattern.permute.xlu0 0
      %2693 = vperm.xlu0 %2692, %v2685
      %v2694 = vpop.permute.xlu0 %2693
      %v2696 = vmul.f32 %v2668, %v2689
      %v2697 = vmul.f32 %v2669, %v2689
      %v2698 = vmul.f32 %v2670, %v2689
      %v2699 = vmul.f32 %v2671, %v2689
      %v2700 = vmul.f32 %v2672, %v2689
      %v2701 = vmul.f32 %v2673, %v2689
      %v2702 = vmul.f32 %v2674, %v2689
      %v2703 = vmul.f32 %v2675, %v2689
      %v2704 = vmul.f32 %v2676, %v2694
      %v2705 = vmul.f32 %v2677, %v2694
      %v2706 = vmul.f32 %v2678, %v2694
      %v2707 = vmul.f32 %v2679, %v2694
      %v2708 = vmul.f32 %v2680, %v2694
      %v2709 = vmul.f32 %v2681, %v2694
      %v2710 = vmul.f32 %v2682, %v2694
      %v2711 = vmul.f32 %v2683, %v2694
      %v2712 = vld [vmem:[%s6] sm:$0xff]
      %v2713 = vld [vmem:[%s6 + $0x8] sm:$0xff]
      %2715 = vset.pattern.permute.xlu0 0
      %2716 = vperm.xlu0 %2715, %v2712
      %v2717 = vpop.permute.xlu0 %2716
      %2720 = vset.pattern.permute.xlu0 0
      %2721 = vperm.xlu0 %2720, %v2713
      %v2722 = vpop.permute.xlu0 %2721
      %v2724 = vadd.f32 %v2696, %v2717
      %v2725 = vadd.f32 %v2697, %v2717
      %v2726 = vadd.f32 %v2698, %v2717
      %v2727 = vadd.f32 %v2699, %v2717
      %v2728 = vadd.f32 %v2700, %v2717
      %v2729 = vadd.f32 %v2701, %v2717
      %v2730 = vadd.f32 %v2702, %v2717
      %v2731 = vadd.f32 %v2703, %v2717
      %v2732 = vadd.f32 %v2704, %v2722
      %v2733 = vadd.f32 %v2705, %v2722
      %v2734 = vadd.f32 %v2706, %v2722
      %v2735 = vadd.f32 %v2707, %v2722
      %v2736 = vadd.f32 %v2708, %v2722
      %v2737 = vadd.f32 %v2709, %v2722
      %v2738 = vadd.f32 %v2710, %v2722
      %v2739 = vadd.f32 %v2711, %v2722
      %v2740 = vxor.u32 %v2724, 2147483648
      %v2741 = vxor.u32 %v2725, 2147483648
      %v2742 = vxor.u32 %v2726, 2147483648
      %v2743 = vxor.u32 %v2727, 2147483648
      %v2744 = vxor.u32 %v2728, 2147483648
      %v2745 = vxor.u32 %v2729, 2147483648
      %v2746 = vxor.u32 %v2730, 2147483648
      %v2747 = vxor.u32 %v2731, 2147483648
      %v2748 = vxor.u32 %v2732, 2147483648
      %v2749 = vxor.u32 %v2733, 2147483648
      %v2750 = vxor.u32 %v2734, 2147483648
      %v2751 = vxor.u32 %v2735, 2147483648
      %v2752 = vxor.u32 %v2736, 2147483648
      %v2753 = vxor.u32 %v2737, 2147483648
      %v2754 = vxor.u32 %v2738, 2147483648
      %v2755 = vxor.u32 %v2739, 2147483648
      %v2756 = vmul.f32 %v2740, 1.442695
      %v2757 = vpow.pop %v2756
      %v2758 = vmul.f32 %v2741, 1.442695
      %v2759 = vpow.pop %v2758
      %v2760 = vmul.f32 %v2742, 1.442695
      %v2761 = vpow.pop %v2760
      %v2762 = vmul.f32 %v2743, 1.442695
      %v2763 = vpow.pop %v2762
      %v2764 = vmul.f32 %v2744, 1.442695
      %v2765 = vpow.pop %v2764
      %v2766 = vmul.f32 %v2745, 1.442695
      %v2767 = vpow.pop %v2766
      %v2768 = vmul.f32 %v2746, 1.442695
      %v2769 = vpow.pop %v2768
      %v2770 = vmul.f32 %v2747, 1.442695
      %v2771 = vpow.pop %v2770
      %v2772 = vmul.f32 %v2748, 1.442695
      %v2773 = vpow.pop %v2772
      %v2774 = vmul.f32 %v2749, 1.442695
      %v2775 = vpow.pop %v2774
      %v2776 = vmul.f32 %v2750, 1.442695
      %v2777 = vpow.pop %v2776
      %v2778 = vmul.f32 %v2751, 1.442695
      %v2779 = vpow.pop %v2778
      %v2780 = vmul.f32 %v2752, 1.442695
      %v2781 = vpow.pop %v2780
      %v2782 = vmul.f32 %v2753, 1.442695
      %v2783 = vpow.pop %v2782
      %v2784 = vmul.f32 %v2754, 1.442695
      %v2785 = vpow.pop %v2784
      %v2786 = vmul.f32 %v2755, 1.442695
      %v2787 = vpow.pop %v2786
      %v2788 = vadd.f32 %v2757, 1.0
      %v2789 = vadd.f32 %v2759, 1.0
      %v2790 = vadd.f32 %v2761, 1.0
      %v2791 = vadd.f32 %v2763, 1.0
      %v2792 = vadd.f32 %v2765, 1.0
      %v2793 = vadd.f32 %v2767, 1.0
      %v2794 = vadd.f32 %v2769, 1.0
      %v2795 = vadd.f32 %v2771, 1.0
      %v2796 = vadd.f32 %v2773, 1.0
      %v2797 = vadd.f32 %v2775, 1.0
      %v2798 = vadd.f32 %v2777, 1.0
      %v2799 = vadd.f32 %v2779, 1.0
      %v2800 = vadd.f32 %v2781, 1.0
      %v2801 = vadd.f32 %v2783, 1.0
      %v2802 = vadd.f32 %v2785, 1.0
      %v2803 = vadd.f32 %v2787, 1.0
      %v2804 = vrcp.pop %v2788
      %v2805 = vmul.f32 1.0, %v2804
      %v2806 = vrcp.pop %v2789
      %v2807 = vmul.f32 1.0, %v2806
      %v2808 = vrcp.pop %v2790
      %v2809 = vmul.f32 1.0, %v2808
      %v2810 = vrcp.pop %v2791
      %v2811 = vmul.f32 1.0, %v2810
      %v2812 = vrcp.pop %v2792
      %v2813 = vmul.f32 1.0, %v2812
      %v2814 = vrcp.pop %v2793
      %v2815 = vmul.f32 1.0, %v2814
      %v2816 = vrcp.pop %v2794
      %v2817 = vmul.f32 1.0, %v2816
      %v2818 = vrcp.pop %v2795
      %v2819 = vmul.f32 1.0, %v2818
      %v2820 = vrcp.pop %v2796
      %v2821 = vmul.f32 1.0, %v2820
      %v2822 = vrcp.pop %v2797
      %v2823 = vmul.f32 1.0, %v2822
      %v2824 = vrcp.pop %v2798
      %v2825 = vmul.f32 1.0, %v2824
      %v2826 = vrcp.pop %v2799
      %v2827 = vmul.f32 1.0, %v2826
      %v2828 = vrcp.pop %v2800
      %v2829 = vmul.f32 1.0, %v2828
      %v2830 = vrcp.pop %v2801
      %v2831 = vmul.f32 1.0, %v2830
      %v2832 = vrcp.pop %v2802
      %v2833 = vmul.f32 1.0, %v2832
      %v2834 = vrcp.pop %v2803
      %v2835 = vmul.f32 1.0, %v2834
      %v2836 = vmul.f32 %v2724, %v2805
      %v2837 = vmul.f32 %v2725, %v2807
      %v2838 = vmul.f32 %v2726, %v2809
      %v2839 = vmul.f32 %v2727, %v2811
      %v2840 = vmul.f32 %v2728, %v2813
      %v2841 = vmul.f32 %v2729, %v2815
      %v2842 = vmul.f32 %v2730, %v2817
      %v2843 = vmul.f32 %v2731, %v2819
      %v2844 = vmul.f32 %v2732, %v2821
      %v2845 = vmul.f32 %v2733, %v2823
      %v2846 = vmul.f32 %v2734, %v2825
      %v2847 = vmul.f32 %v2735, %v2827
      %v2848 = vmul.f32 %v2736, %v2829
      %v2849 = vmul.f32 %v2737, %v2831
      %v2850 = vmul.f32 %v2738, %v2833
      %v2851 = vmul.f32 %v2739, %v2835
      %2852 = vrot.lane.b32.xlu0 %v2836, 33
      %v2853 = vpop.permute.xlu0 %2852
      %2854 = vrot.lane.b32.xlu0 %v2844, 33
      %v2855 = vpop.permute.xlu0 %2854
      %2856 = vrot.lane.b32.xlu0 %v2837, 33
      %v2857 = vpop.permute.xlu0 %2856
      %2858 = vrot.lane.b32.xlu0 %v2845, 33
      %v2859 = vpop.permute.xlu0 %2858
      %2860 = vrot.lane.b32.xlu0 %v2838, 33
      %v2861 = vpop.permute.xlu0 %2860
      %2862 = vrot.lane.b32.xlu0 %v2846, 33
      %v2863 = vpop.permute.xlu0 %2862
      %2864 = vrot.lane.b32.xlu0 %v2839, 33
      %v2865 = vpop.permute.xlu0 %2864
      %2866 = vrot.lane.b32.xlu0 %v2847, 33
      %v2867 = vpop.permute.xlu0 %2866
      %2868 = vrot.lane.b32.xlu0 %v2840, 33
      %v2869 = vpop.permute.xlu0 %2868
      %2870 = vrot.lane.b32.xlu0 %v2848, 33
      %v2871 = vpop.permute.xlu0 %2870
      %2872 = vrot.lane.b32.xlu0 %v2841, 33
      %v2873 = vpop.permute.xlu0 %2872
      %2874 = vrot.lane.b32.xlu0 %v2849, 33
      %v2875 = vpop.permute.xlu0 %2874
      %2876 = vrot.lane.b32.xlu0 %v2842, 33
      %v2877 = vpop.permute.xlu0 %2876
      %2878 = vrot.lane.b32.xlu0 %v2850, 33
      %v2879 = vpop.permute.xlu0 %2878
      %2880 = vrot.lane.b32.xlu0 %v2843, 33
      %v2881 = vpop.permute.xlu0 %2880
      %2882 = vrot.lane.b32.xlu0 %v2851, 33
      %v2883 = vpop.permute.xlu0 %2882
      %v2884 = vsel %vm1829, %v2877, %v2881
      %v2885 = vsel %vm1829, %v2879, %v2883
      %v2886 = vsel %vm1829, %v2873, %v2877
      %v2887 = vsel %vm1829, %v2875, %v2879
      %v2888 = vsel %vm1829, %v2869, %v2873
      %v2889 = vsel %vm1829, %v2871, %v2875
      %v2890 = vsel %vm1829, %v2865, %v2869
      %v2891 = vsel %vm1829, %v2867, %v2871
      %v2892 = vsel %vm1829, %v2861, %v2865
      %v2893 = vsel %vm1829, %v2863, %v2867
      %v2894 = vsel %vm1829, %v2857, %v2861
      %v2895 = vsel %vm1829, %v2859, %v2863
      %v2896 = vsel %vm1829, %v2853, %v2857
      %v2897 = vsel %vm1829, %v2855, %v2859
      %v2898 = vsel %vm1829, %v2881, %v2853
      %v2899 = vsel %vm1829, %v2883, %v2855
      %v2900 = vmul.f32 %v2898, %v693
      %v2901 = vmul.f32 %v2896, %v694
      %v2902 = vmul.f32 %v2894, %v695
      %v2903 = vmul.f32 %v2892, %v696
      %v2904 = vmul.f32 %v2890, %v697
      %v2905 = vmul.f32 %v2888, %v698
      %v2906 = vmul.f32 %v2886, %v699
      %v2907 = vmul.f32 %v2884, %v700
      %v2908 = vmul.f32 %v2899, %v693
      %v2909 = vmul.f32 %v2897, %v694
      %v2910 = vmul.f32 %v2895, %v695
      %v2911 = vmul.f32 %v2893, %v696
      %v2912 = vmul.f32 %v2891, %v697
      %v2913 = vmul.f32 %v2889, %v698
      %v2914 = vmul.f32 %v2887, %v699
      %v2915 = vmul.f32 %v2885, %v700
      %2916 = vrot.lane.b32.xlu0 %v2836, 32
      %v2917 = vpop.permute.xlu0 %2916
      %2918 = vrot.lane.b32.xlu0 %v2844, 32
      %v2919 = vpop.permute.xlu0 %2918
      %2920 = vrot.lane.b32.xlu0 %v2837, 32
      %v2921 = vpop.permute.xlu0 %2920
      %2922 = vrot.lane.b32.xlu0 %v2845, 32
      %v2923 = vpop.permute.xlu0 %2922
      %2924 = vrot.lane.b32.xlu0 %v2838, 32
      %v2925 = vpop.permute.xlu0 %2924
      %2926 = vrot.lane.b32.xlu0 %v2846, 32
      %v2927 = vpop.permute.xlu0 %2926
      %2928 = vrot.lane.b32.xlu0 %v2839, 32
      %v2929 = vpop.permute.xlu0 %2928
      %2930 = vrot.lane.b32.xlu0 %v2847, 32
      %v2931 = vpop.permute.xlu0 %2930
      %2932 = vrot.lane.b32.xlu0 %v2840, 32
      %v2933 = vpop.permute.xlu0 %2932
      %2934 = vrot.lane.b32.xlu0 %v2848, 32
      %v2935 = vpop.permute.xlu0 %2934
      %2936 = vrot.lane.b32.xlu0 %v2841, 32
      %v2937 = vpop.permute.xlu0 %2936
      %2938 = vrot.lane.b32.xlu0 %v2849, 32
      %v2939 = vpop.permute.xlu0 %2938
      %2940 = vrot.lane.b32.xlu0 %v2842, 32
      %v2941 = vpop.permute.xlu0 %2940
      %2942 = vrot.lane.b32.xlu0 %v2850, 32
      %v2943 = vpop.permute.xlu0 %2942
      %2944 = vrot.lane.b32.xlu0 %v2843, 32
      %v2945 = vpop.permute.xlu0 %2944
      %2946 = vrot.lane.b32.xlu0 %v2851, 32
      %v2947 = vpop.permute.xlu0 %2946
      %v2948 = vsel %vm1894, %v2941, %v2945
      %v2949 = vsel %vm1894, %v2943, %v2947
      %v2950 = vsel %vm1894, %v2937, %v2941
      %v2951 = vsel %vm1894, %v2939, %v2943
      %v2952 = vsel %vm1894, %v2933, %v2937
      %v2953 = vsel %vm1894, %v2935, %v2939
      %v2954 = vsel %vm1894, %v2929, %v2933
      %v2955 = vsel %vm1894, %v2931, %v2935
      %v2956 = vsel %vm1894, %v2925, %v2929
      %v2957 = vsel %vm1894, %v2927, %v2931
      %v2958 = vsel %vm1894, %v2921, %v2925
      %v2959 = vsel %vm1894, %v2923, %v2927
      %v2960 = vsel %vm1894, %v2917, %v2921
      %v2961 = vsel %vm1894, %v2919, %v2923
      %v2962 = vsel %vm1894, %v2945, %v2917
      %v2963 = vsel %vm1894, %v2947, %v2919
      %v2964 = vmul.f32 %v2962, %v709
      %v2965 = vmul.f32 %v2960, %v710
      %v2966 = vmul.f32 %v2958, %v711
      %v2967 = vmul.f32 %v2956, %v712
      %v2968 = vmul.f32 %v2954, %v713
      %v2969 = vmul.f32 %v2952, %v714
      %v2970 = vmul.f32 %v2950, %v715
      %v2971 = vmul.f32 %v2948, %v716
      %v2972 = vmul.f32 %v2963, %v709
      %v2973 = vmul.f32 %v2961, %v710
      %v2974 = vmul.f32 %v2959, %v711
      %v2975 = vmul.f32 %v2957, %v712
      %v2976 = vmul.f32 %v2955, %v713
      %v2977 = vmul.f32 %v2953, %v714
      %v2978 = vmul.f32 %v2951, %v715
      %v2979 = vmul.f32 %v2949, %v716
      %2980 = vrot.lane.b32.xlu0 %v2836, 31
      %v2981 = vpop.permute.xlu0 %2980
      %2982 = vrot.lane.b32.xlu0 %v2844, 31
      %v2983 = vpop.permute.xlu0 %2982
      %2984 = vrot.lane.b32.xlu0 %v2837, 31
      %v2985 = vpop.permute.xlu0 %2984
      %2986 = vrot.lane.b32.xlu0 %v2845, 31
      %v2987 = vpop.permute.xlu0 %2986
      %2988 = vrot.lane.b32.xlu0 %v2838, 31
      %v2989 = vpop.permute.xlu0 %2988
      %2990 = vrot.lane.b32.xlu0 %v2846, 31
      %v2991 = vpop.permute.xlu0 %2990
      %2992 = vrot.lane.b32.xlu0 %v2839, 31
      %v2993 = vpop.permute.xlu0 %2992
      %2994 = vrot.lane.b32.xlu0 %v2847, 31
      %v2995 = vpop.permute.xlu0 %2994
      %2996 = vrot.lane.b32.xlu0 %v2840, 31
      %v2997 = vpop.permute.xlu0 %2996
      %2998 = vrot.lane.b32.xlu0 %v2848, 31
      %v2999 = vpop.permute.xlu0 %2998
      %3000 = vrot.lane.b32.xlu0 %v2841, 31
      %v3001 = vpop.permute.xlu0 %3000
      %3002 = vrot.lane.b32.xlu0 %v2849, 31
      %v3003 = vpop.permute.xlu0 %3002
      %3004 = vrot.lane.b32.xlu0 %v2842, 31
      %v3005 = vpop.permute.xlu0 %3004
      %3006 = vrot.lane.b32.xlu0 %v2850, 31
      %v3007 = vpop.permute.xlu0 %3006
      %3008 = vrot.lane.b32.xlu0 %v2843, 31
      %v3009 = vpop.permute.xlu0 %3008
      %3010 = vrot.lane.b32.xlu0 %v2851, 31
      %v3011 = vpop.permute.xlu0 %3010
      %v3012 = vsel %vm1959, %v3005, %v3009
      %v3013 = vsel %vm1959, %v3007, %v3011
      %v3014 = vsel %vm1959, %v3001, %v3005
      %v3015 = vsel %vm1959, %v3003, %v3007
      %v3016 = vsel %vm1959, %v2997, %v3001
      %v3017 = vsel %vm1959, %v2999, %v3003
      %v3018 = vsel %vm1959, %v2993, %v2997
      %v3019 = vsel %vm1959, %v2995, %v2999
      %v3020 = vsel %vm1959, %v2989, %v2993
      %v3021 = vsel %vm1959, %v2991, %v2995
      %v3022 = vsel %vm1959, %v2985, %v2989
      %v3023 = vsel %vm1959, %v2987, %v2991
      %v3024 = vsel %vm1959, %v2981, %v2985
      %v3025 = vsel %vm1959, %v2983, %v2987
      %v3026 = vsel %vm1959, %v3009, %v2981
      %v3027 = vsel %vm1959, %v3011, %v2983
      %v3028 = vmul.f32 %v3026, %v741
      %v3029 = vmul.f32 %v3024, %v742
      %v3030 = vmul.f32 %v3022, %v743
      %v3031 = vmul.f32 %v3020, %v744
      %v3032 = vmul.f32 %v3018, %v745
      %v3033 = vmul.f32 %v3016, %v746
      %v3034 = vmul.f32 %v3014, %v747
      %v3035 = vmul.f32 %v3012, %v748
      %v3036 = vmul.f32 %v3027, %v741
      %v3037 = vmul.f32 %v3025, %v742
      %v3038 = vmul.f32 %v3023, %v743
      %v3039 = vmul.f32 %v3021, %v744
      %v3040 = vmul.f32 %v3019, %v745
      %v3041 = vmul.f32 %v3017, %v746
      %v3042 = vmul.f32 %v3015, %v747
      %v3043 = vmul.f32 %v3013, %v748
      %3044 = vrot.lane.b32.xlu0 %v2836, 1
      %v3045 = vpop.permute.xlu0 %3044
      %3046 = vrot.lane.b32.xlu0 %v2844, 1
      %v3047 = vpop.permute.xlu0 %3046
      %3048 = vrot.lane.b32.xlu0 %v2837, 1
      %v3049 = vpop.permute.xlu0 %3048
      %3050 = vrot.lane.b32.xlu0 %v2845, 1
      %v3051 = vpop.permute.xlu0 %3050
      %3052 = vrot.lane.b32.xlu0 %v2838, 1
      %v3053 = vpop.permute.xlu0 %3052
      %3054 = vrot.lane.b32.xlu0 %v2846, 1
      %v3055 = vpop.permute.xlu0 %3054
      %3056 = vrot.lane.b32.xlu0 %v2839, 1
      %v3057 = vpop.permute.xlu0 %3056
      %3058 = vrot.lane.b32.xlu0 %v2847, 1
      %v3059 = vpop.permute.xlu0 %3058
      %3060 = vrot.lane.b32.xlu0 %v2840, 1
      %v3061 = vpop.permute.xlu0 %3060
      %3062 = vrot.lane.b32.xlu0 %v2848, 1
      %v3063 = vpop.permute.xlu0 %3062
      %3064 = vrot.lane.b32.xlu0 %v2841, 1
      %v3065 = vpop.permute.xlu0 %3064
      %3066 = vrot.lane.b32.xlu0 %v2849, 1
      %v3067 = vpop.permute.xlu0 %3066
      %3068 = vrot.lane.b32.xlu0 %v2842, 1
      %v3069 = vpop.permute.xlu0 %3068
      %3070 = vrot.lane.b32.xlu0 %v2850, 1
      %v3071 = vpop.permute.xlu0 %3070
      %3072 = vrot.lane.b32.xlu0 %v2843, 1
      %v3073 = vpop.permute.xlu0 %3072
      %3074 = vrot.lane.b32.xlu0 %v2851, 1
      %v3075 = vpop.permute.xlu0 %3074
      %v3076 = vsel %vm2024, %v3069, %v3073
      %v3077 = vsel %vm2024, %v3071, %v3075
      %v3078 = vsel %vm2024, %v3065, %v3069
      %v3079 = vsel %vm2024, %v3067, %v3071
      %v3080 = vsel %vm2024, %v3061, %v3065
      %v3081 = vsel %vm2024, %v3063, %v3067
      %v3082 = vsel %vm2024, %v3057, %v3061
      %v3083 = vsel %vm2024, %v3059, %v3063
      %v3084 = vsel %vm2024, %v3053, %v3057
      %v3085 = vsel %vm2024, %v3055, %v3059
      %v3086 = vsel %vm2024, %v3049, %v3053
      %v3087 = vsel %vm2024, %v3051, %v3055
      %v3088 = vsel %vm2024, %v3045, %v3049
      %v3089 = vsel %vm2024, %v3047, %v3051
      %v3090 = vsel %vm2024, %v3073, %v3045
      %v3091 = vsel %vm2024, %v3075, %v3047
      %v3092 = vmul.f32 %v3090, %v757
      %v3093 = vmul.f32 %v3088, %v758
      %v3094 = vmul.f32 %v3086, %v759
      %v3095 = vmul.f32 %v3084, %v760
      %v3096 = vmul.f32 %v3082, %v761
      %v3097 = vmul.f32 %v3080, %v762
      %v3098 = vmul.f32 %v3078, %v763
      %v3099 = vmul.f32 %v3076, %v764
      %v3100 = vmul.f32 %v3091, %v757
      %v3101 = vmul.f32 %v3089, %v758
      %v3102 = vmul.f32 %v3087, %v759
      %v3103 = vmul.f32 %v3085, %v760
      %v3104 = vmul.f32 %v3083, %v761
      %v3105 = vmul.f32 %v3081, %v762
      %v3106 = vmul.f32 %v3079, %v763
      %v3107 = vmul.f32 %v3077, %v764
      %3108 = vrot.lane.b32.xlu0 %v2836, 127
      %v3109 = vpop.permute.xlu0 %3108
      %3110 = vrot.lane.b32.xlu0 %v2844, 127
      %v3111 = vpop.permute.xlu0 %3110
      %3112 = vrot.lane.b32.xlu0 %v2837, 127
      %v3113 = vpop.permute.xlu0 %3112
      %3114 = vrot.lane.b32.xlu0 %v2845, 127
      %v3115 = vpop.permute.xlu0 %3114
      %3116 = vrot.lane.b32.xlu0 %v2838, 127
      %v3117 = vpop.permute.xlu0 %3116
      %3118 = vrot.lane.b32.xlu0 %v2846, 127
      %v3119 = vpop.permute.xlu0 %3118
      %3120 = vrot.lane.b32.xlu0 %v2839, 127
      %v3121 = vpop.permute.xlu0 %3120
      %3122 = vrot.lane.b32.xlu0 %v2847, 127
      %v3123 = vpop.permute.xlu0 %3122
      %3124 = vrot.lane.b32.xlu0 %v2840, 127
      %v3125 = vpop.permute.xlu0 %3124
      %3126 = vrot.lane.b32.xlu0 %v2848, 127
      %v3127 = vpop.permute.xlu0 %3126
      %3128 = vrot.lane.b32.xlu0 %v2841, 127
      %v3129 = vpop.permute.xlu0 %3128
      %3130 = vrot.lane.b32.xlu0 %v2849, 127
      %v3131 = vpop.permute.xlu0 %3130
      %3132 = vrot.lane.b32.xlu0 %v2842, 127
      %v3133 = vpop.permute.xlu0 %3132
      %3134 = vrot.lane.b32.xlu0 %v2850, 127
      %v3135 = vpop.permute.xlu0 %3134
      %3136 = vrot.lane.b32.xlu0 %v2843, 127
      %v3137 = vpop.permute.xlu0 %3136
      %3138 = vrot.lane.b32.xlu0 %v2851, 127
      %v3139 = vpop.permute.xlu0 %3138
      %v3140 = vsel %vm2089, %v3133, %v3137
      %v3141 = vsel %vm2089, %v3135, %v3139
      %v3142 = vsel %vm2089, %v3129, %v3133
      %v3143 = vsel %vm2089, %v3131, %v3135
      %v3144 = vsel %vm2089, %v3125, %v3129
      %v3145 = vsel %vm2089, %v3127, %v3131
      %v3146 = vsel %vm2089, %v3121, %v3125
      %v3147 = vsel %vm2089, %v3123, %v3127
      %v3148 = vsel %vm2089, %v3117, %v3121
      %v3149 = vsel %vm2089, %v3119, %v3123
      %v3150 = vsel %vm2089, %v3113, %v3117
      %v3151 = vsel %vm2089, %v3115, %v3119
      %v3152 = vsel %vm2089, %v3109, %v3113
      %v3153 = vsel %vm2089, %v3111, %v3115
      %v3154 = vsel %vm2089, %v3137, %v3109
      %v3155 = vsel %vm2089, %v3139, %v3111
      %v3156 = vmul.f32 %v3152, %v773
      %v3157 = vmul.f32 %v3150, %v774
      %v3158 = vmul.f32 %v3148, %v775
      %v3159 = vmul.f32 %v3146, %v776
      %v3160 = vmul.f32 %v3144, %v777
      %v3161 = vmul.f32 %v3142, %v778
      %v3162 = vmul.f32 %v3140, %v779
      %v3163 = vmul.f32 %v3154, %v780
      %v3164 = vmul.f32 %v3153, %v773
      %v3165 = vmul.f32 %v3151, %v774
      %v3166 = vmul.f32 %v3149, %v775
      %v3167 = vmul.f32 %v3147, %v776
      %v3168 = vmul.f32 %v3145, %v777
      %v3169 = vmul.f32 %v3143, %v778
      %v3170 = vmul.f32 %v3141, %v779
      %v3171 = vmul.f32 %v3155, %v780
      %3172 = vrot.lane.b32.xlu0 %v2836, 97
      %v3173 = vpop.permute.xlu0 %3172
      %3174 = vrot.lane.b32.xlu0 %v2844, 97
      %v3175 = vpop.permute.xlu0 %3174
      %3176 = vrot.lane.b32.xlu0 %v2837, 97
      %v3177 = vpop.permute.xlu0 %3176
      %3178 = vrot.lane.b32.xlu0 %v2845, 97
      %v3179 = vpop.permute.xlu0 %3178
      %3180 = vrot.lane.b32.xlu0 %v2838, 97
      %v3181 = vpop.permute.xlu0 %3180
      %3182 = vrot.lane.b32.xlu0 %v2846, 97
      %v3183 = vpop.permute.xlu0 %3182
      %3184 = vrot.lane.b32.xlu0 %v2839, 97
      %v3185 = vpop.permute.xlu0 %3184
      %3186 = vrot.lane.b32.xlu0 %v2847, 97
      %v3187 = vpop.permute.xlu0 %3186
      %3188 = vrot.lane.b32.xlu0 %v2840, 97
      %v3189 = vpop.permute.xlu0 %3188
      %3190 = vrot.lane.b32.xlu0 %v2848, 97
      %v3191 = vpop.permute.xlu0 %3190
      %3192 = vrot.lane.b32.xlu0 %v2841, 97
      %v3193 = vpop.permute.xlu0 %3192
      %3194 = vrot.lane.b32.xlu0 %v2849, 97
      %v3195 = vpop.permute.xlu0 %3194
      %3196 = vrot.lane.b32.xlu0 %v2842, 97
      %v3197 = vpop.permute.xlu0 %3196
      %3198 = vrot.lane.b32.xlu0 %v2850, 97
      %v3199 = vpop.permute.xlu0 %3198
      %3200 = vrot.lane.b32.xlu0 %v2843, 97
      %v3201 = vpop.permute.xlu0 %3200
      %3202 = vrot.lane.b32.xlu0 %v2851, 97
      %v3203 = vpop.permute.xlu0 %3202
      %v3204 = vsel %vm2154, %v3197, %v3201
      %v3205 = vsel %vm2154, %v3199, %v3203
      %v3206 = vsel %vm2154, %v3193, %v3197
      %v3207 = vsel %vm2154, %v3195, %v3199
      %v3208 = vsel %vm2154, %v3189, %v3193
      %v3209 = vsel %vm2154, %v3191, %v3195
      %v3210 = vsel %vm2154, %v3185, %v3189
      %v3211 = vsel %vm2154, %v3187, %v3191
      %v3212 = vsel %vm2154, %v3181, %v3185
      %v3213 = vsel %vm2154, %v3183, %v3187
      %v3214 = vsel %vm2154, %v3177, %v3181
      %v3215 = vsel %vm2154, %v3179, %v3183
      %v3216 = vsel %vm2154, %v3173, %v3177
      %v3217 = vsel %vm2154, %v3175, %v3179
      %v3218 = vsel %vm2154, %v3201, %v3173
      %v3219 = vsel %vm2154, %v3203, %v3175
      %v3220 = vmul.f32 %v3216, %v805
      %v3221 = vmul.f32 %v3214, %v806
      %v3222 = vmul.f32 %v3212, %v807
      %v3223 = vmul.f32 %v3210, %v808
      %v3224 = vmul.f32 %v3208, %v809
      %v3225 = vmul.f32 %v3206, %v810
      %v3226 = vmul.f32 %v3204, %v811
      %v3227 = vmul.f32 %v3218, %v812
      %v3228 = vmul.f32 %v3217, %v805
      %v3229 = vmul.f32 %v3215, %v806
      %v3230 = vmul.f32 %v3213, %v807
      %v3231 = vmul.f32 %v3211, %v808
      %v3232 = vmul.f32 %v3209, %v809
      %v3233 = vmul.f32 %v3207, %v810
      %v3234 = vmul.f32 %v3205, %v811
      %v3235 = vmul.f32 %v3219, %v812
      %3236 = vrot.lane.b32.xlu0 %v2836, 96
      %v3237 = vpop.permute.xlu0 %3236
      %3238 = vrot.lane.b32.xlu0 %v2844, 96
      %v3239 = vpop.permute.xlu0 %3238
      %3240 = vrot.lane.b32.xlu0 %v2837, 96
      %v3241 = vpop.permute.xlu0 %3240
      %3242 = vrot.lane.b32.xlu0 %v2845, 96
      %v3243 = vpop.permute.xlu0 %3242
      %3244 = vrot.lane.b32.xlu0 %v2838, 96
      %v3245 = vpop.permute.xlu0 %3244
      %3246 = vrot.lane.b32.xlu0 %v2846, 96
      %v3247 = vpop.permute.xlu0 %3246
      %3248 = vrot.lane.b32.xlu0 %v2839, 96
      %v3249 = vpop.permute.xlu0 %3248
      %3250 = vrot.lane.b32.xlu0 %v2847, 96
      %v3251 = vpop.permute.xlu0 %3250
      %3252 = vrot.lane.b32.xlu0 %v2840, 96
      %v3253 = vpop.permute.xlu0 %3252
      %3254 = vrot.lane.b32.xlu0 %v2848, 96
      %v3255 = vpop.permute.xlu0 %3254
      %3256 = vrot.lane.b32.xlu0 %v2841, 96
      %v3257 = vpop.permute.xlu0 %3256
      %3258 = vrot.lane.b32.xlu0 %v2849, 96
      %v3259 = vpop.permute.xlu0 %3258
      %3260 = vrot.lane.b32.xlu0 %v2842, 96
      %v3261 = vpop.permute.xlu0 %3260
      %3262 = vrot.lane.b32.xlu0 %v2850, 96
      %v3263 = vpop.permute.xlu0 %3262
      %3264 = vrot.lane.b32.xlu0 %v2843, 96
      %v3265 = vpop.permute.xlu0 %3264
      %3266 = vrot.lane.b32.xlu0 %v2851, 96
      %v3267 = vpop.permute.xlu0 %3266
      %v3268 = vsel %vm2219, %v3261, %v3265
      %v3269 = vsel %vm2219, %v3263, %v3267
      %v3270 = vsel %vm2219, %v3257, %v3261
      %v3271 = vsel %vm2219, %v3259, %v3263
      %v3272 = vsel %vm2219, %v3253, %v3257
      %v3273 = vsel %vm2219, %v3255, %v3259
      %v3274 = vsel %vm2219, %v3249, %v3253
      %v3275 = vsel %vm2219, %v3251, %v3255
      %v3276 = vsel %vm2219, %v3245, %v3249
      %v3277 = vsel %vm2219, %v3247, %v3251
      %v3278 = vsel %vm2219, %v3241, %v3245
      %v3279 = vsel %vm2219, %v3243, %v3247
      %v3280 = vsel %vm2219, %v3237, %v3241
      %v3281 = vsel %vm2219, %v3239, %v3243
      %v3282 = vsel %vm2219, %v3265, %v3237
      %v3283 = vsel %vm2219, %v3267, %v3239
      %v3284 = vmul.f32 %v3280, %v821
      %v3285 = vmul.f32 %v3278, %v822
      %v3286 = vmul.f32 %v3276, %v823
      %v3287 = vmul.f32 %v3274, %v824
      %v3288 = vmul.f32 %v3272, %v825
      %v3289 = vmul.f32 %v3270, %v826
      %v3290 = vmul.f32 %v3268, %v827
      %v3291 = vmul.f32 %v3282, %v828
      %v3292 = vmul.f32 %v3281, %v821
      %v3293 = vmul.f32 %v3279, %v822
      %v3294 = vmul.f32 %v3277, %v823
      %v3295 = vmul.f32 %v3275, %v824
      %v3296 = vmul.f32 %v3273, %v825
      %v3297 = vmul.f32 %v3271, %v826
      %v3298 = vmul.f32 %v3269, %v827
      %v3299 = vmul.f32 %v3283, %v828
      %3300 = vrot.lane.b32.xlu0 %v2836, 95
      %v3301 = vpop.permute.xlu0 %3300
      %3302 = vrot.lane.b32.xlu0 %v2844, 95
      %v3303 = vpop.permute.xlu0 %3302
      %3304 = vrot.lane.b32.xlu0 %v2837, 95
      %v3305 = vpop.permute.xlu0 %3304
      %3306 = vrot.lane.b32.xlu0 %v2845, 95
      %v3307 = vpop.permute.xlu0 %3306
      %3308 = vrot.lane.b32.xlu0 %v2838, 95
      %v3309 = vpop.permute.xlu0 %3308
      %3310 = vrot.lane.b32.xlu0 %v2846, 95
      %v3311 = vpop.permute.xlu0 %3310
      %3312 = vrot.lane.b32.xlu0 %v2839, 95
      %v3313 = vpop.permute.xlu0 %3312
      %3314 = vrot.lane.b32.xlu0 %v2847, 95
      %v3315 = vpop.permute.xlu0 %3314
      %3316 = vrot.lane.b32.xlu0 %v2840, 95
      %v3317 = vpop.permute.xlu0 %3316
      %3318 = vrot.lane.b32.xlu0 %v2848, 95
      %v3319 = vpop.permute.xlu0 %3318
      %3320 = vrot.lane.b32.xlu0 %v2841, 95
      %v3321 = vpop.permute.xlu0 %3320
      %3322 = vrot.lane.b32.xlu0 %v2849, 95
      %v3323 = vpop.permute.xlu0 %3322
      %3324 = vrot.lane.b32.xlu0 %v2842, 95
      %v3325 = vpop.permute.xlu0 %3324
      %3326 = vrot.lane.b32.xlu0 %v2850, 95
      %v3327 = vpop.permute.xlu0 %3326
      %3328 = vrot.lane.b32.xlu0 %v2843, 95
      %v3329 = vpop.permute.xlu0 %3328
      %3330 = vrot.lane.b32.xlu0 %v2851, 95
      %v3331 = vpop.permute.xlu0 %3330
      %v3332 = vsel %vm2284, %v3325, %v3329
      %v3333 = vsel %vm2284, %v3327, %v3331
      %v3334 = vsel %vm2284, %v3321, %v3325
      %v3335 = vsel %vm2284, %v3323, %v3327
      %v3336 = vsel %vm2284, %v3317, %v3321
      %v3337 = vsel %vm2284, %v3319, %v3323
      %v3338 = vsel %vm2284, %v3313, %v3317
      %v3339 = vsel %vm2284, %v3315, %v3319
      %v3340 = vsel %vm2284, %v3309, %v3313
      %v3341 = vsel %vm2284, %v3311, %v3315
      %v3342 = vsel %vm2284, %v3305, %v3309
      %v3343 = vsel %vm2284, %v3307, %v3311
      %v3344 = vsel %vm2284, %v3301, %v3305
      %v3345 = vsel %vm2284, %v3303, %v3307
      %v3346 = vsel %vm2284, %v3329, %v3301
      %v3347 = vsel %vm2284, %v3331, %v3303
      %v3348 = vmul.f32 %v3344, %v845
      %v3349 = vmul.f32 %v3342, %v846
      %v3350 = vmul.f32 %v3340, %v847
      %v3351 = vmul.f32 %v3338, %v848
      %v3352 = vmul.f32 %v3336, %v849
      %v3353 = vmul.f32 %v3334, %v850
      %v3354 = vmul.f32 %v3332, %v851
      %v3355 = vmul.f32 %v3346, %v852
      %v3356 = vmul.f32 %v3345, %v845
      %v3357 = vmul.f32 %v3343, %v846
      %v3358 = vmul.f32 %v3341, %v847
      %v3359 = vmul.f32 %v3339, %v848
      %v3360 = vmul.f32 %v3337, %v849
      %v3361 = vmul.f32 %v3335, %v850
      %v3362 = vmul.f32 %v3333, %v851
      %v3363 = vmul.f32 %v3347, %v852
      %v3364 = vld [vmem:[%s7] sm:$0xff]
      %v3365 = vld [vmem:[%s7 + $0x8] sm:$0xff]
      %v3366 = vpack.c.bf16 %v2908, %v2900
      %v3367 = vpack.c.bf16 %v2909, %v2901
      %v3368 = vpack.c.bf16 %v2910, %v2902
      %v3369 = vpack.c.bf16 %v2911, %v2903
      %v3370 = vpack.c.bf16 %v2912, %v2904
      %v3371 = vpack.c.bf16 %v2913, %v2905
      %v3372 = vpack.c.bf16 %v2914, %v2906
      %v3373 = vpack.c.bf16 %v2915, %v2907
      %v3374 = vpack.c.bf16 %v2972, %v2964
      %v3375 = vpack.c.bf16 %v2973, %v2965
      %v3376 = vpack.c.bf16 %v2974, %v2966
      %v3377 = vpack.c.bf16 %v2975, %v2967
      %v3378 = vpack.c.bf16 %v2976, %v2968
      %v3379 = vpack.c.bf16 %v2977, %v2969
      %v3380 = vpack.c.bf16 %v2978, %v2970
      %v3381 = vpack.c.bf16 %v2979, %v2971
      %v3382 = vpack.c.bf16 %v3036, %v3028
      %v3383 = vpack.c.bf16 %v3037, %v3029
      %v3384 = vpack.c.bf16 %v3038, %v3030
      %v3385 = vpack.c.bf16 %v3039, %v3031
      %v3386 = vpack.c.bf16 %v3040, %v3032
      %v3387 = vpack.c.bf16 %v3041, %v3033
      %v3388 = vpack.c.bf16 %v3042, %v3034
      %v3389 = vpack.c.bf16 %v3043, %v3035
      %v3390 = vpack.c.bf16 %v3100, %v3092
      %v3391 = vpack.c.bf16 %v3101, %v3093
      %v3392 = vpack.c.bf16 %v3102, %v3094
      %v3393 = vpack.c.bf16 %v3103, %v3095
      %v3394 = vpack.c.bf16 %v3104, %v3096
      %v3395 = vpack.c.bf16 %v3105, %v3097
      %v3396 = vpack.c.bf16 %v3106, %v3098
      %v3397 = vpack.c.bf16 %v3107, %v3099
      %v3398 = vpack.c.bf16 %v2844, %v2836
      %v3399 = vpack.c.bf16 %v2845, %v2837
      %v3400 = vpack.c.bf16 %v2846, %v2838
      %v3401 = vpack.c.bf16 %v2847, %v2839
      %v3402 = vpack.c.bf16 %v2848, %v2840
      %v3403 = vpack.c.bf16 %v2849, %v2841
      %v3404 = vpack.c.bf16 %v2850, %v2842
      %v3405 = vpack.c.bf16 %v2851, %v2843
      %v3406 = vpack.c.bf16 %v3164, %v3156
      %v3407 = vpack.c.bf16 %v3165, %v3157
      %v3408 = vpack.c.bf16 %v3166, %v3158
      %v3409 = vpack.c.bf16 %v3167, %v3159
      %v3410 = vpack.c.bf16 %v3168, %v3160
      %v3411 = vpack.c.bf16 %v3169, %v3161
      %v3412 = vpack.c.bf16 %v3170, %v3162
      %v3413 = vpack.c.bf16 %v3171, %v3163
      %v3414 = vpack.c.bf16 %v3228, %v3220
      %v3415 = vpack.c.bf16 %v3229, %v3221
      %v3416 = vpack.c.bf16 %v3230, %v3222
      %v3417 = vpack.c.bf16 %v3231, %v3223
      %v3418 = vpack.c.bf16 %v3232, %v3224
      %v3419 = vpack.c.bf16 %v3233, %v3225
      %v3420 = vpack.c.bf16 %v3234, %v3226
      %v3421 = vpack.c.bf16 %v3235, %v3227
      %v3422 = vpack.c.bf16 %v3292, %v3284
      %v3423 = vpack.c.bf16 %v3293, %v3285
      %v3424 = vpack.c.bf16 %v3294, %v3286
      %v3425 = vpack.c.bf16 %v3295, %v3287
      %v3426 = vpack.c.bf16 %v3296, %v3288
      %v3427 = vpack.c.bf16 %v3297, %v3289
      %v3428 = vpack.c.bf16 %v3298, %v3290
      %v3429 = vpack.c.bf16 %v3299, %v3291
      %v3430 = vpack.c.bf16 %v3356, %v3348
      %v3431 = vpack.c.bf16 %v3357, %v3349
      %v3432 = vpack.c.bf16 %v3358, %v3350
      %v3433 = vpack.c.bf16 %v3359, %v3351
      %v3434 = vpack.c.bf16 %v3360, %v3352
      %v3435 = vpack.c.bf16 %v3361, %v3353
      %v3436 = vpack.c.bf16 %v3362, %v3354
      %v3437 = vpack.c.bf16 %v3363, %v3355
      %v3440 = vunpack.c.l.b16 %v3364
      %v3441 = vunpack.c.h.b16 %v3364
      %v3442 = vunpack.c.l.b16 %v3365
      %v3443 = vunpack.c.h.b16 %v3365
      %v3444 = vpack.c.b16 %v3442, %v3440
      %v3445 = vpack.c.b16 %v3443, %v3441
      %v3448 = vsel %vm2400, %v3445, 0
      %3450 = vmatprep.subr.bf16.mxu0 %v3423
      %3451 = vmatpush1.bf16.msra.mxu0 %v3422
      %3452 = vmatprep.subr.bf16.mxu0 %v3415
      %3453 = vmatpush1.bf16.msra.mxu0 %v3414
      %3454 = vmatprep.subr.bf16.mxu0 %v3407
      %3455 = vmatpush1.bf16.msra.mxu0 %v3406
      %3456 = vmatprep.subr.bf16.mxu0 %v3399
      %3457 = vmatpush1.bf16.msra.mxu0 %v3398
      %3458 = vmatprep.subr.bf16.mxu0 %v3391
      %3459 = vmatpush1.bf16.msra.mxu0 %v3390
      %3460 = vmatprep.subr.bf16.mxu0 %v3383
      %3461 = vmatpush1.bf16.msra.mxu0 %v3382
      %3462 = vmatprep.subr.bf16.mxu0 %v3375
      %3463 = vmatpush1.bf16.msra.mxu0 %v3374
      %3464 = vmatprep.subr.bf16.mxu0 %v3367
      %3465 = vmatpush1.bf16.msra.mxu0 %v3366
      %3466 = vmatprep.subr.bf16.mxu0 0
      %3467 = vmatpush2.bf16.msra.mxu0 0
      %3468 = vmatprep.subr.bf16.mxu0 0
      %3469 = vmatpush2.bf16.msra.mxu0 0
      %3470 = vmatprep.subr.bf16.mxu0 0
      %3471 = vmatpush2.bf16.msra.mxu0 0
      %3472 = vmatprep.subr.bf16.mxu0 0
      %3473 = vmatpush2.bf16.msra.mxu0 0
      %3474 = vmatprep.subr.bf16.mxu0 0
      %3475 = vmatpush2.bf16.msra.mxu0 0
      %3476 = vmatprep.subr.bf16.mxu0 0
      %3477 = vmatpush2.bf16.msra.mxu0 0
      %3478 = vmatprep.subr.bf16.mxu0 0
      %3479 = vmatpush2.bf16.msra.mxu0 0
      %3480 = vmatprep.subr.bf16.mxu0 %v3431
      %3481 = vmatpush2.bf16.msra.mxu0 %v3430
      %3482 = vmatprep.mubr.bf16.mxu0 %v3448
      %3483 = vmatmul.mubr.bf16.gmra.mxu0 %v3444
      %v3484 = vpop.f32.mrf.mxu0
      %v3485 = vadd.f32 0.0, %v3484
      %v3486 = vpop.f32.mrf.mxu0
      %v3487 = vadd.f32 0.0, %v3486
      %v3488 = vpop.f32.mrf.mxu0
      %v3489 = vadd.f32 0.0, %v3488
      %v3490 = vpop.f32.mrf.mxu0
      %v3491 = vadd.f32 0.0, %v3490
      %3492 = vdwg.mxu0
      %3493 = vmatprep.subr.bf16.mxu0 %v3425
      %3494 = vmatpush1.bf16.msra.mxu0 %v3424
      %3495 = vmatprep.subr.bf16.mxu0 %v3417
      %3496 = vmatpush1.bf16.msra.mxu0 %v3416
      %3497 = vmatprep.subr.bf16.mxu0 %v3409
      %3498 = vmatpush1.bf16.msra.mxu0 %v3408
      %3499 = vmatprep.subr.bf16.mxu0 %v3401
      %3500 = vmatpush1.bf16.msra.mxu0 %v3400
      %3501 = vmatprep.subr.bf16.mxu0 %v3393
      %3502 = vmatpush1.bf16.msra.mxu0 %v3392
      %3503 = vmatprep.subr.bf16.mxu0 %v3385
      %3504 = vmatpush1.bf16.msra.mxu0 %v3384
      %3505 = vmatprep.subr.bf16.mxu0 %v3377
      %3506 = vmatpush1.bf16.msra.mxu0 %v3376
      %3507 = vmatprep.subr.bf16.mxu0 %v3369
      %3508 = vmatpush1.bf16.msra.mxu0 %v3368
      %3509 = vmatprep.subr.bf16.mxu0 0
      %3510 = vmatpush2.bf16.msra.mxu0 0
      %3511 = vmatprep.subr.bf16.mxu0 0
      %3512 = vmatpush2.bf16.msra.mxu0 0
      %3513 = vmatprep.subr.bf16.mxu0 0
      %3514 = vmatpush2.bf16.msra.mxu0 0
      %3515 = vmatprep.subr.bf16.mxu0 0
      %3516 = vmatpush2.bf16.msra.mxu0 0
      %3517 = vmatprep.subr.bf16.mxu0 0
      %3518 = vmatpush2.bf16.msra.mxu0 0
      %3519 = vmatprep.subr.bf16.mxu0 0
      %3520 = vmatpush2.bf16.msra.mxu0 0
      %3521 = vmatprep.subr.bf16.mxu0 0
      %3522 = vmatpush2.bf16.msra.mxu0 0
      %3523 = vmatprep.subr.bf16.mxu0 %v3433
      %3524 = vmatpush2.bf16.msra.mxu0 %v3432
      %3525 = vmatprep.mubr.bf16.mxu0 %v3448
      %3526 = vmatmul.mubr.bf16.gmra.mxu0 %v3444
      %v3527 = vpop.f32.mrf.mxu0
      %v3528 = vadd.f32 0.0, %v3527
      %v3529 = vpop.f32.mrf.mxu0
      %v3530 = vadd.f32 0.0, %v3529
      %v3531 = vpop.f32.mrf.mxu0
      %v3532 = vadd.f32 0.0, %v3531
      %v3533 = vpop.f32.mrf.mxu0
      %v3534 = vadd.f32 0.0, %v3533
      %3535 = vdwg.mxu0
      %3536 = vmatprep.subr.bf16.mxu0 %v3427
      %3537 = vmatpush1.bf16.msra.mxu0 %v3426
      %3538 = vmatprep.subr.bf16.mxu0 %v3419
      %3539 = vmatpush1.bf16.msra.mxu0 %v3418
      %3540 = vmatprep.subr.bf16.mxu0 %v3411
      %3541 = vmatpush1.bf16.msra.mxu0 %v3410
      %3542 = vmatprep.subr.bf16.mxu0 %v3403
      %3543 = vmatpush1.bf16.msra.mxu0 %v3402
      %3544 = vmatprep.subr.bf16.mxu0 %v3395
      %3545 = vmatpush1.bf16.msra.mxu0 %v3394
      %3546 = vmatprep.subr.bf16.mxu0 %v3387
      %3547 = vmatpush1.bf16.msra.mxu0 %v3386
      %3548 = vmatprep.subr.bf16.mxu0 %v3379
      %3549 = vmatpush1.bf16.msra.mxu0 %v3378
      %3550 = vmatprep.subr.bf16.mxu0 %v3371
      %3551 = vmatpush1.bf16.msra.mxu0 %v3370
      %3552 = vmatprep.subr.bf16.mxu0 0
      %3553 = vmatpush2.bf16.msra.mxu0 0
      %3554 = vmatprep.subr.bf16.mxu0 0
      %3555 = vmatpush2.bf16.msra.mxu0 0
      %3556 = vmatprep.subr.bf16.mxu0 0
      %3557 = vmatpush2.bf16.msra.mxu0 0
      %3558 = vmatprep.subr.bf16.mxu0 0
      %3559 = vmatpush2.bf16.msra.mxu0 0
      %3560 = vmatprep.subr.bf16.mxu0 0
      %3561 = vmatpush2.bf16.msra.mxu0 0
      %3562 = vmatprep.subr.bf16.mxu0 0
      %3563 = vmatpush2.bf16.msra.mxu0 0
      %3564 = vmatprep.subr.bf16.mxu0 0
      %3565 = vmatpush2.bf16.msra.mxu0 0
      %3566 = vmatprep.subr.bf16.mxu0 %v3435
      %3567 = vmatpush2.bf16.msra.mxu0 %v3434
      %3568 = vmatprep.mubr.bf16.mxu0 %v3448
      %3569 = vmatmul.mubr.bf16.gmra.mxu0 %v3444
      %v3570 = vpop.f32.mrf.mxu0
      %v3571 = vadd.f32 0.0, %v3570
      %v3572 = vpop.f32.mrf.mxu0
      %v3573 = vadd.f32 0.0, %v3572
      %v3574 = vpop.f32.mrf.mxu0
      %v3575 = vadd.f32 0.0, %v3574
      %v3576 = vpop.f32.mrf.mxu0
      %v3577 = vadd.f32 0.0, %v3576
      %3578 = vdwg.mxu0
      %3579 = vmatprep.subr.bf16.mxu0 %v3429
      %3580 = vmatpush1.bf16.msra.mxu0 %v3428
      %3581 = vmatprep.subr.bf16.mxu0 %v3421
      %3582 = vmatpush1.bf16.msra.mxu0 %v3420
      %3583 = vmatprep.subr.bf16.mxu0 %v3413
      %3584 = vmatpush1.bf16.msra.mxu0 %v3412
      %3585 = vmatprep.subr.bf16.mxu0 %v3405
      %3586 = vmatpush1.bf16.msra.mxu0 %v3404
      %3587 = vmatprep.subr.bf16.mxu0 %v3397
      %3588 = vmatpush1.bf16.msra.mxu0 %v3396
      %3589 = vmatprep.subr.bf16.mxu0 %v3389
      %3590 = vmatpush1.bf16.msra.mxu0 %v3388
      %3591 = vmatprep.subr.bf16.mxu0 %v3381
      %3592 = vmatpush1.bf16.msra.mxu0 %v3380
      %3593 = vmatprep.subr.bf16.mxu0 %v3373
      %3594 = vmatpush1.bf16.msra.mxu0 %v3372
      %3595 = vmatprep.subr.bf16.mxu0 0
      %3596 = vmatpush2.bf16.msra.mxu0 0
      %3597 = vmatprep.subr.bf16.mxu0 0
      %3598 = vmatpush2.bf16.msra.mxu0 0
      %3599 = vmatprep.subr.bf16.mxu0 0
      %3600 = vmatpush2.bf16.msra.mxu0 0
      %3601 = vmatprep.subr.bf16.mxu0 0
      %3602 = vmatpush2.bf16.msra.mxu0 0
      %3603 = vmatprep.subr.bf16.mxu0 0
      %3604 = vmatpush2.bf16.msra.mxu0 0
      %3605 = vmatprep.subr.bf16.mxu0 0
      %3606 = vmatpush2.bf16.msra.mxu0 0
      %3607 = vmatprep.subr.bf16.mxu0 0
      %3608 = vmatpush2.bf16.msra.mxu0 0
      %3609 = vmatprep.subr.bf16.mxu0 %v3437
      %3610 = vmatpush2.bf16.msra.mxu0 %v3436
      %3611 = vmatprep.mubr.bf16.mxu0 %v3448
      %3612 = vmatmul.mubr.bf16.gmra.mxu0 %v3444
      %v3613 = vpop.f32.mrf.mxu0
      %v3614 = vadd.f32 0.0, %v3613
      %v3615 = vpop.f32.mrf.mxu0
      %v3616 = vadd.f32 0.0, %v3615
      %v3617 = vpop.f32.mrf.mxu0
      %v3618 = vadd.f32 0.0, %v3617
      %v3619 = vpop.f32.mrf.mxu0
      %v3620 = vadd.f32 0.0, %v3619
      %3621 = vdwg.mxu0
      %v3622 = vadd.f32 %v3485, %v3487
      %v3623 = vadd.f32 %v3622, %v3528
      %v3624 = vadd.f32 %v3623, %v3530
      %v3625 = vadd.f32 %v3624, %v3571
      %v3626 = vadd.f32 %v3625, %v3573
      %v3627 = vadd.f32 %v3626, %v3614
      %v3628 = vadd.f32 %v3627, %v3616
      %v3629 = vadd.f32 %v3628, %v3489
      %v3630 = vadd.f32 %v3629, %v3491
      %v3631 = vadd.f32 %v3630, %v3532
      %v3632 = vadd.f32 %v3631, %v3534
      %v3633 = vadd.f32 %v3632, %v3575
      %v3634 = vadd.f32 %v3633, %v3577
      %v3635 = vadd.f32 %v3634, %v3618
      %v3636 = vadd.f32 %v3635, %v3620
      %3637 = vadd.xlane.f32.xlu0 %v3636
      %v3638 = vpop.xlane.xlu0 %3637
      %v3639 = vrot.slane %v3638, 4
      %v3640 = vadd.f32 %v3638, %v3639
      %v3641 = vrot.slane %v3640, 2
      %v3642 = vadd.f32 %v3640, %v3641
      %v3643 = vrot.slane %v3642, 1
      %v3644 = vadd.f32 %v3642, %v3643
      %s3645 = vtos %v3644
      %v3646 = vrcp.pop 16384.0
      %s3647 = vtos %v3646
      %s3648 = smul.f32 %s3645, %s3647
      %v3649 = vstv %s3648
      %v3650 = vsub.f32 %v3485, %v3649
      %v3651 = vsub.f32 %v3487, %v3649
      %v3652 = vsub.f32 %v3528, %v3649
      %v3653 = vsub.f32 %v3530, %v3649
      %v3654 = vsub.f32 %v3571, %v3649
      %v3655 = vsub.f32 %v3573, %v3649
      %v3656 = vsub.f32 %v3614, %v3649
      %v3657 = vsub.f32 %v3616, %v3649
      %v3658 = vsub.f32 %v3489, %v3649
      %v3659 = vsub.f32 %v3491, %v3649
      %v3660 = vsub.f32 %v3532, %v3649
      %v3661 = vsub.f32 %v3534, %v3649
      %v3662 = vsub.f32 %v3575, %v3649
      %v3663 = vsub.f32 %v3577, %v3649
      %v3664 = vsub.f32 %v3618, %v3649
      %v3665 = vsub.f32 %v3620, %v3649
      %v3666 = vmul.f32 %v3650, %v3650
      %v3667 = vmul.f32 %v3651, %v3651
      %v3668 = vmul.f32 %v3652, %v3652
      %v3669 = vmul.f32 %v3653, %v3653
      %v3670 = vmul.f32 %v3654, %v3654
      %v3671 = vmul.f32 %v3655, %v3655
      %v3672 = vmul.f32 %v3656, %v3656
      %v3673 = vmul.f32 %v3657, %v3657
      %v3674 = vmul.f32 %v3658, %v3658
      %v3675 = vmul.f32 %v3659, %v3659
      %v3676 = vmul.f32 %v3660, %v3660
      %v3677 = vmul.f32 %v3661, %v3661
      %v3678 = vmul.f32 %v3662, %v3662
      %v3679 = vmul.f32 %v3663, %v3663
      %v3680 = vmul.f32 %v3664, %v3664
      %v3681 = vmul.f32 %v3665, %v3665
      %v3682 = vadd.f32 %v3666, %v3667
      %v3683 = vadd.f32 %v3682, %v3668
      %v3684 = vadd.f32 %v3683, %v3669
      %v3685 = vadd.f32 %v3684, %v3670
      %v3686 = vadd.f32 %v3685, %v3671
      %v3687 = vadd.f32 %v3686, %v3672
      %v3688 = vadd.f32 %v3687, %v3673
      %v3689 = vadd.f32 %v3688, %v3674
      %v3690 = vadd.f32 %v3689, %v3675
      %v3691 = vadd.f32 %v3690, %v3676
      %v3692 = vadd.f32 %v3691, %v3677
      %v3693 = vadd.f32 %v3692, %v3678
      %v3694 = vadd.f32 %v3693, %v3679
      %v3695 = vadd.f32 %v3694, %v3680
      %v3696 = vadd.f32 %v3695, %v3681
      %3697 = vadd.xlane.f32.xlu0 %v3696
      %v3698 = vpop.xlane.xlu0 %3697
      %v3699 = vrot.slane %v3698, 4
      %v3700 = vadd.f32 %v3698, %v3699
      %v3701 = vrot.slane %v3700, 2
      %v3702 = vadd.f32 %v3700, %v3701
      %v3703 = vrot.slane %v3702, 1
      %v3704 = vadd.f32 %v3702, %v3703
      %s3705 = vtos %v3704
      %v3706 = vrcp.pop 16384.0
      %s3707 = vtos %v3706
      %s3708 = smul.f32 %s3705, %s3707
      %s3709 = sadd.f32 %s3708, 1e-05
      %v3710 = vstv %s3709
      %v3711 = vrsqrt.pop %v3710
      %s3712 = vtos %v3711
      %v3713 = vstv %s3712
      %v3714 = vmul.f32 %v3650, %v3713
      %v3715 = vmul.f32 %v3651, %v3713
      %v3716 = vmul.f32 %v3652, %v3713
      %v3717 = vmul.f32 %v3653, %v3713
      %v3718 = vmul.f32 %v3654, %v3713
      %v3719 = vmul.f32 %v3655, %v3713
      %v3720 = vmul.f32 %v3656, %v3713
      %v3721 = vmul.f32 %v3657, %v3713
      %v3722 = vmul.f32 %v3658, %v3713
      %v3723 = vmul.f32 %v3659, %v3713
      %v3724 = vmul.f32 %v3660, %v3713
      %v3725 = vmul.f32 %v3661, %v3713
      %v3726 = vmul.f32 %v3662, %v3713
      %v3727 = vmul.f32 %v3663, %v3713
      %v3728 = vmul.f32 %v3664, %v3713
      %v3729 = vmul.f32 %v3665, %v3713
      %v3730 = vld [vmem:[%s8] sm:$0xff]
      %v3731 = vld [vmem:[%s8 + $0x8] sm:$0xff]
      %3733 = vset.pattern.permute.xlu0 0
      %3734 = vperm.xlu0 %3733, %v3730
      %v3735 = vpop.permute.xlu0 %3734
      %3738 = vset.pattern.permute.xlu0 0
      %3739 = vperm.xlu0 %3738, %v3731
      %v3740 = vpop.permute.xlu0 %3739
      %v3742 = vmul.f32 %v3714, %v3735
      %v3743 = vmul.f32 %v3715, %v3735
      %v3744 = vmul.f32 %v3716, %v3735
      %v3745 = vmul.f32 %v3717, %v3735
      %v3746 = vmul.f32 %v3718, %v3735
      %v3747 = vmul.f32 %v3719, %v3735
      %v3748 = vmul.f32 %v3720, %v3735
      %v3749 = vmul.f32 %v3721, %v3735
      %v3750 = vmul.f32 %v3722, %v3740
      %v3751 = vmul.f32 %v3723, %v3740
      %v3752 = vmul.f32 %v3724, %v3740
      %v3753 = vmul.f32 %v3725, %v3740
      %v3754 = vmul.f32 %v3726, %v3740
      %v3755 = vmul.f32 %v3727, %v3740
      %v3756 = vmul.f32 %v3728, %v3740
      %v3757 = vmul.f32 %v3729, %v3740
      %v3758 = vld [vmem:[%s9] sm:$0xff]
      %v3759 = vld [vmem:[%s9 + $0x8] sm:$0xff]
      %3761 = vset.pattern.permute.xlu0 0
      %3762 = vperm.xlu0 %3761, %v3758
      %v3763 = vpop.permute.xlu0 %3762
      %3766 = vset.pattern.permute.xlu0 0
      %3767 = vperm.xlu0 %3766, %v3759
      %v3768 = vpop.permute.xlu0 %3767
      %v3770 = vadd.f32 %v3742, %v3763
      %v3771 = vadd.f32 %v3743, %v3763
      %v3772 = vadd.f32 %v3744, %v3763
      %v3773 = vadd.f32 %v3745, %v3763
      %v3774 = vadd.f32 %v3746, %v3763
      %v3775 = vadd.f32 %v3747, %v3763
      %v3776 = vadd.f32 %v3748, %v3763
      %v3777 = vadd.f32 %v3749, %v3763
      %v3778 = vadd.f32 %v3750, %v3768
      %v3779 = vadd.f32 %v3751, %v3768
      %v3780 = vadd.f32 %v3752, %v3768
      %v3781 = vadd.f32 %v3753, %v3768
      %v3782 = vadd.f32 %v3754, %v3768
      %v3783 = vadd.f32 %v3755, %v3768
      %v3784 = vadd.f32 %v3756, %v3768
      %v3785 = vadd.f32 %v3757, %v3768
      %v3786 = vadd.f32 %v1789, %v3770
      %v3787 = vadd.f32 %v1790, %v3771
      %v3788 = vadd.f32 %v1791, %v3772
      %v3789 = vadd.f32 %v1792, %v3773
      %v3790 = vadd.f32 %v1793, %v3774
      %v3791 = vadd.f32 %v1794, %v3775
      %v3792 = vadd.f32 %v1795, %v3776
      %v3793 = vadd.f32 %v1796, %v3777
      %v3794 = vadd.f32 %v1660, %v3778
      %v3795 = vadd.f32 %v1662, %v3779
      %v3796 = vadd.f32 %v1701, %v3780
      %v3797 = vadd.f32 %v1703, %v3781
      %v3798 = vadd.f32 %v1742, %v3782
      %v3799 = vadd.f32 %v1744, %v3783
      %v3800 = vadd.f32 %v1783, %v3784
      %v3801 = vadd.f32 %v1785, %v3785
      %v3802 = vxor.u32 %v3786, 2147483648
      %v3803 = vxor.u32 %v3787, 2147483648
      %v3804 = vxor.u32 %v3788, 2147483648
      %v3805 = vxor.u32 %v3789, 2147483648
      %v3806 = vxor.u32 %v3790, 2147483648
      %v3807 = vxor.u32 %v3791, 2147483648
      %v3808 = vxor.u32 %v3792, 2147483648
      %v3809 = vxor.u32 %v3793, 2147483648
      %v3810 = vxor.u32 %v3794, 2147483648
      %v3811 = vxor.u32 %v3795, 2147483648
      %v3812 = vxor.u32 %v3796, 2147483648
      %v3813 = vxor.u32 %v3797, 2147483648
      %v3814 = vxor.u32 %v3798, 2147483648
      %v3815 = vxor.u32 %v3799, 2147483648
      %v3816 = vxor.u32 %v3800, 2147483648
      %v3817 = vxor.u32 %v3801, 2147483648
      %v3818 = vmul.f32 %v3802, 1.442695
      %v3819 = vpow.pop %v3818
      %v3820 = vmul.f32 %v3803, 1.442695
      %v3821 = vpow.pop %v3820
      %v3822 = vmul.f32 %v3804, 1.442695
      %v3823 = vpow.pop %v3822
      %v3824 = vmul.f32 %v3805, 1.442695
      %v3825 = vpow.pop %v3824
      %v3826 = vmul.f32 %v3806, 1.442695
      %v3827 = vpow.pop %v3826
      %v3828 = vmul.f32 %v3807, 1.442695
      %v3829 = vpow.pop %v3828
      %v3830 = vmul.f32 %v3808, 1.442695
      %v3831 = vpow.pop %v3830
      %v3832 = vmul.f32 %v3809, 1.442695
      %v3833 = vpow.pop %v3832
      %v3834 = vmul.f32 %v3810, 1.442695
      %v3835 = vpow.pop %v3834
      %v3836 = vmul.f32 %v3811, 1.442695
      %v3837 = vpow.pop %v3836
      %v3838 = vmul.f32 %v3812, 1.442695
      %v3839 = vpow.pop %v3838
      %v3840 = vmul.f32 %v3813, 1.442695
      %v3841 = vpow.pop %v3840
      %v3842 = vmul.f32 %v3814, 1.442695
      %v3843 = vpow.pop %v3842
      %v3844 = vmul.f32 %v3815, 1.442695
      %v3845 = vpow.pop %v3844
      %v3846 = vmul.f32 %v3816, 1.442695
      %v3847 = vpow.pop %v3846
      %v3848 = vmul.f32 %v3817, 1.442695
      %v3849 = vpow.pop %v3848
      %v3850 = vadd.f32 %v3819, 1.0
      %v3851 = vadd.f32 %v3821, 1.0
      %v3852 = vadd.f32 %v3823, 1.0
      %v3853 = vadd.f32 %v3825, 1.0
      %v3854 = vadd.f32 %v3827, 1.0
      %v3855 = vadd.f32 %v3829, 1.0
      %v3856 = vadd.f32 %v3831, 1.0
      %v3857 = vadd.f32 %v3833, 1.0
      %v3858 = vadd.f32 %v3835, 1.0
      %v3859 = vadd.f32 %v3837, 1.0
      %v3860 = vadd.f32 %v3839, 1.0
      %v3861 = vadd.f32 %v3841, 1.0
      %v3862 = vadd.f32 %v3843, 1.0
      %v3863 = vadd.f32 %v3845, 1.0
      %v3864 = vadd.f32 %v3847, 1.0
      %v3865 = vadd.f32 %v3849, 1.0
      %v3866 = vrcp.pop %v3850
      %v3867 = vmul.f32 1.0, %v3866
      %v3868 = vrcp.pop %v3851
      %v3869 = vmul.f32 1.0, %v3868
      %v3870 = vrcp.pop %v3852
      %v3871 = vmul.f32 1.0, %v3870
      %v3872 = vrcp.pop %v3853
      %v3873 = vmul.f32 1.0, %v3872
      %v3874 = vrcp.pop %v3854
      %v3875 = vmul.f32 1.0, %v3874
      %v3876 = vrcp.pop %v3855
      %v3877 = vmul.f32 1.0, %v3876
      %v3878 = vrcp.pop %v3856
      %v3879 = vmul.f32 1.0, %v3878
      %v3880 = vrcp.pop %v3857
      %v3881 = vmul.f32 1.0, %v3880
      %v3882 = vrcp.pop %v3858
      %v3883 = vmul.f32 1.0, %v3882
      %v3884 = vrcp.pop %v3859
      %v3885 = vmul.f32 1.0, %v3884
      %v3886 = vrcp.pop %v3860
      %v3887 = vmul.f32 1.0, %v3886
      %v3888 = vrcp.pop %v3861
      %v3889 = vmul.f32 1.0, %v3888
      %v3890 = vrcp.pop %v3862
      %v3891 = vmul.f32 1.0, %v3890
      %v3892 = vrcp.pop %v3863
      %v3893 = vmul.f32 1.0, %v3892
      %v3894 = vrcp.pop %v3864
      %v3895 = vmul.f32 1.0, %v3894
      %v3896 = vrcp.pop %v3865
      %v3897 = vmul.f32 1.0, %v3896
      %v3898 = vmul.f32 %v3786, %v3867
      %v3899 = vmul.f32 %v3787, %v3869
      %v3900 = vmul.f32 %v3788, %v3871
      %v3901 = vmul.f32 %v3789, %v3873
      %v3902 = vmul.f32 %v3790, %v3875
      %v3903 = vmul.f32 %v3791, %v3877
      %v3904 = vmul.f32 %v3792, %v3879
      %v3905 = vmul.f32 %v3793, %v3881
      %v3906 = vmul.f32 %v3794, %v3883
      %v3907 = vmul.f32 %v3795, %v3885
      %v3908 = vmul.f32 %v3796, %v3887
      %v3909 = vmul.f32 %v3797, %v3889
      %v3910 = vmul.f32 %v3798, %v3891
      %v3911 = vmul.f32 %v3799, %v3893
      %v3912 = vmul.f32 %v3800, %v3895
      %v3913 = vmul.f32 %v3801, %v3897
      %3914 = vrot.lane.b32.xlu0 %v3898, 33
      %v3915 = vpop.permute.xlu0 %3914
      %3916 = vrot.lane.b32.xlu0 %v3906, 33
      %v3917 = vpop.permute.xlu0 %3916
      %3918 = vrot.lane.b32.xlu0 %v3899, 33
      %v3919 = vpop.permute.xlu0 %3918
      %3920 = vrot.lane.b32.xlu0 %v3907, 33
      %v3921 = vpop.permute.xlu0 %3920
      %3922 = vrot.lane.b32.xlu0 %v3900, 33
      %v3923 = vpop.permute.xlu0 %3922
      %3924 = vrot.lane.b32.xlu0 %v3908, 33
      %v3925 = vpop.permute.xlu0 %3924
      %3926 = vrot.lane.b32.xlu0 %v3901, 33
      %v3927 = vpop.permute.xlu0 %3926
      %3928 = vrot.lane.b32.xlu0 %v3909, 33
      %v3929 = vpop.permute.xlu0 %3928
      %3930 = vrot.lane.b32.xlu0 %v3902, 33
      %v3931 = vpop.permute.xlu0 %3930
      %3932 = vrot.lane.b32.xlu0 %v3910, 33
      %v3933 = vpop.permute.xlu0 %3932
      %3934 = vrot.lane.b32.xlu0 %v3903, 33
      %v3935 = vpop.permute.xlu0 %3934
      %3936 = vrot.lane.b32.xlu0 %v3911, 33
      %v3937 = vpop.permute.xlu0 %3936
      %3938 = vrot.lane.b32.xlu0 %v3904, 33
      %v3939 = vpop.permute.xlu0 %3938
      %3940 = vrot.lane.b32.xlu0 %v3912, 33
      %v3941 = vpop.permute.xlu0 %3940
      %3942 = vrot.lane.b32.xlu0 %v3905, 33
      %v3943 = vpop.permute.xlu0 %3942
      %3944 = vrot.lane.b32.xlu0 %v3913, 33
      %v3945 = vpop.permute.xlu0 %3944
      %v3946 = vsel %vm1829, %v3939, %v3943
      %v3947 = vsel %vm1829, %v3941, %v3945
      %v3948 = vsel %vm1829, %v3935, %v3939
      %v3949 = vsel %vm1829, %v3937, %v3941
      %v3950 = vsel %vm1829, %v3931, %v3935
      %v3951 = vsel %vm1829, %v3933, %v3937
      %v3952 = vsel %vm1829, %v3927, %v3931
      %v3953 = vsel %vm1829, %v3929, %v3933
      %v3954 = vsel %vm1829, %v3923, %v3927
      %v3955 = vsel %vm1829, %v3925, %v3929
      %v3956 = vsel %vm1829, %v3919, %v3923
      %v3957 = vsel %vm1829, %v3921, %v3925
      %v3958 = vsel %vm1829, %v3915, %v3919
      %v3959 = vsel %vm1829, %v3917, %v3921
      %v3960 = vsel %vm1829, %v3943, %v3915
      %v3961 = vsel %vm1829, %v3945, %v3917
      %v3962 = vmul.f32 %v3960, %v693
      %v3963 = vmul.f32 %v3958, %v694
      %v3964 = vmul.f32 %v3956, %v695
      %v3965 = vmul.f32 %v3954, %v696
      %v3966 = vmul.f32 %v3952, %v697
      %v3967 = vmul.f32 %v3950, %v698
      %v3968 = vmul.f32 %v3948, %v699
      %v3969 = vmul.f32 %v3946, %v700
      %v3970 = vmul.f32 %v3961, %v693
      %v3971 = vmul.f32 %v3959, %v694
      %v3972 = vmul.f32 %v3957, %v695
      %v3973 = vmul.f32 %v3955, %v696
      %v3974 = vmul.f32 %v3953, %v697
      %v3975 = vmul.f32 %v3951, %v698
      %v3976 = vmul.f32 %v3949, %v699
      %v3977 = vmul.f32 %v3947, %v700
      %3978 = vrot.lane.b32.xlu0 %v3898, 32
      %v3979 = vpop.permute.xlu0 %3978
      %3980 = vrot.lane.b32.xlu0 %v3906, 32
      %v3981 = vpop.permute.xlu0 %3980
      %3982 = vrot.lane.b32.xlu0 %v3899, 32
      %v3983 = vpop.permute.xlu0 %3982
      %3984 = vrot.lane.b32.xlu0 %v3907, 32
      %v3985 = vpop.permute.xlu0 %3984
      %3986 = vrot.lane.b32.xlu0 %v3900, 32
      %v3987 = vpop.permute.xlu0 %3986
      %3988 = vrot.lane.b32.xlu0 %v3908, 32
      %v3989 = vpop.permute.xlu0 %3988
      %3990 = vrot.lane.b32.xlu0 %v3901, 32
      %v3991 = vpop.permute.xlu0 %3990
      %3992 = vrot.lane.b32.xlu0 %v3909, 32
      %v3993 = vpop.permute.xlu0 %3992
      %3994 = vrot.lane.b32.xlu0 %v3902, 32
      %v3995 = vpop.permute.xlu0 %3994
      %3996 = vrot.lane.b32.xlu0 %v3910, 32
      %v3997 = vpop.permute.xlu0 %3996
      %3998 = vrot.lane.b32.xlu0 %v3903, 32
      %v3999 = vpop.permute.xlu0 %3998
      %4000 = vrot.lane.b32.xlu0 %v3911, 32
      %v4001 = vpop.permute.xlu0 %4000
      %4002 = vrot.lane.b32.xlu0 %v3904, 32
      %v4003 = vpop.permute.xlu0 %4002
      %4004 = vrot.lane.b32.xlu0 %v3912, 32
      %v4005 = vpop.permute.xlu0 %4004
      %4006 = vrot.lane.b32.xlu0 %v3905, 32
      %v4007 = vpop.permute.xlu0 %4006
      %4008 = vrot.lane.b32.xlu0 %v3913, 32
      %v4009 = vpop.permute.xlu0 %4008
      %v4010 = vsel %vm1894, %v4003, %v4007
      %v4011 = vsel %vm1894, %v4005, %v4009
      %v4012 = vsel %vm1894, %v3999, %v4003
      %v4013 = vsel %vm1894, %v4001, %v4005
      %v4014 = vsel %vm1894, %v3995, %v3999
      %v4015 = vsel %vm1894, %v3997, %v4001
      %v4016 = vsel %vm1894, %v3991, %v3995
      %v4017 = vsel %vm1894, %v3993, %v3997
      %v4018 = vsel %vm1894, %v3987, %v3991
      %v4019 = vsel %vm1894, %v3989, %v3993
      %v4020 = vsel %vm1894, %v3983, %v3987
      %v4021 = vsel %vm1894, %v3985, %v3989
      %v4022 = vsel %vm1894, %v3979, %v3983
      %v4023 = vsel %vm1894, %v3981, %v3985
      %v4024 = vsel %vm1894, %v4007, %v3979
      %v4025 = vsel %vm1894, %v4009, %v3981
      %v4026 = vmul.f32 %v4024, %v709
      %v4027 = vmul.f32 %v4022, %v710
      %v4028 = vmul.f32 %v4020, %v711
      %v4029 = vmul.f32 %v4018, %v712
      %v4030 = vmul.f32 %v4016, %v713
      %v4031 = vmul.f32 %v4014, %v714
      %v4032 = vmul.f32 %v4012, %v715
      %v4033 = vmul.f32 %v4010, %v716
      %v4034 = vmul.f32 %v4025, %v709
      %v4035 = vmul.f32 %v4023, %v710
      %v4036 = vmul.f32 %v4021, %v711
      %v4037 = vmul.f32 %v4019, %v712
      %v4038 = vmul.f32 %v4017, %v713
      %v4039 = vmul.f32 %v4015, %v714
      %v4040 = vmul.f32 %v4013, %v715
      %v4041 = vmul.f32 %v4011, %v716
      %4042 = vrot.lane.b32.xlu0 %v3898, 31
      %v4043 = vpop.permute.xlu0 %4042
      %4044 = vrot.lane.b32.xlu0 %v3906, 31
      %v4045 = vpop.permute.xlu0 %4044
      %4046 = vrot.lane.b32.xlu0 %v3899, 31
      %v4047 = vpop.permute.xlu0 %4046
      %4048 = vrot.lane.b32.xlu0 %v3907, 31
      %v4049 = vpop.permute.xlu0 %4048
      %4050 = vrot.lane.b32.xlu0 %v3900, 31
      %v4051 = vpop.permute.xlu0 %4050
      %4052 = vrot.lane.b32.xlu0 %v3908, 31
      %v4053 = vpop.permute.xlu0 %4052
      %4054 = vrot.lane.b32.xlu0 %v3901, 31
      %v4055 = vpop.permute.xlu0 %4054
      %4056 = vrot.lane.b32.xlu0 %v3909, 31
      %v4057 = vpop.permute.xlu0 %4056
      %4058 = vrot.lane.b32.xlu0 %v3902, 31
      %v4059 = vpop.permute.xlu0 %4058
      %4060 = vrot.lane.b32.xlu0 %v3910, 31
      %v4061 = vpop.permute.xlu0 %4060
      %4062 = vrot.lane.b32.xlu0 %v3903, 31
      %v4063 = vpop.permute.xlu0 %4062
      %4064 = vrot.lane.b32.xlu0 %v3911, 31
      %v4065 = vpop.permute.xlu0 %4064
      %4066 = vrot.lane.b32.xlu0 %v3904, 31
      %v4067 = vpop.permute.xlu0 %4066
      %4068 = vrot.lane.b32.xlu0 %v3912, 31
      %v4069 = vpop.permute.xlu0 %4068
      %4070 = vrot.lane.b32.xlu0 %v3905, 31
      %v4071 = vpop.permute.xlu0 %4070
      %4072 = vrot.lane.b32.xlu0 %v3913, 31
      %v4073 = vpop.permute.xlu0 %4072
      %v4074 = vsel %vm1959, %v4067, %v4071
      %v4075 = vsel %vm1959, %v4069, %v4073
      %v4076 = vsel %vm1959, %v4063, %v4067
      %v4077 = vsel %vm1959, %v4065, %v4069
      %v4078 = vsel %vm1959, %v4059, %v4063
      %v4079 = vsel %vm1959, %v4061, %v4065
      %v4080 = vsel %vm1959, %v4055, %v4059
      %v4081 = vsel %vm1959, %v4057, %v4061
      %v4082 = vsel %vm1959, %v4051, %v4055
      %v4083 = vsel %vm1959, %v4053, %v4057
      %v4084 = vsel %vm1959, %v4047, %v4051
      %v4085 = vsel %vm1959, %v4049, %v4053
      %v4086 = vsel %vm1959, %v4043, %v4047
      %v4087 = vsel %vm1959, %v4045, %v4049
      %v4088 = vsel %vm1959, %v4071, %v4043
      %v4089 = vsel %vm1959, %v4073, %v4045
      %v4090 = vmul.f32 %v4088, %v741
      %v4091 = vmul.f32 %v4086, %v742
      %v4092 = vmul.f32 %v4084, %v743
      %v4093 = vmul.f32 %v4082, %v744
      %v4094 = vmul.f32 %v4080, %v745
      %v4095 = vmul.f32 %v4078, %v746
      %v4096 = vmul.f32 %v4076, %v747
      %v4097 = vmul.f32 %v4074, %v748
      %v4098 = vmul.f32 %v4089, %v741
      %v4099 = vmul.f32 %v4087, %v742
      %v4100 = vmul.f32 %v4085, %v743
      %v4101 = vmul.f32 %v4083, %v744
      %v4102 = vmul.f32 %v4081, %v745
      %v4103 = vmul.f32 %v4079, %v746
      %v4104 = vmul.f32 %v4077, %v747
      %v4105 = vmul.f32 %v4075, %v748
      %4106 = vrot.lane.b32.xlu0 %v3898, 1
      %v4107 = vpop.permute.xlu0 %4106
      %4108 = vrot.lane.b32.xlu0 %v3906, 1
      %v4109 = vpop.permute.xlu0 %4108
      %4110 = vrot.lane.b32.xlu0 %v3899, 1
      %v4111 = vpop.permute.xlu0 %4110
      %4112 = vrot.lane.b32.xlu0 %v3907, 1
      %v4113 = vpop.permute.xlu0 %4112
      %4114 = vrot.lane.b32.xlu0 %v3900, 1
      %v4115 = vpop.permute.xlu0 %4114
      %4116 = vrot.lane.b32.xlu0 %v3908, 1
      %v4117 = vpop.permute.xlu0 %4116
      %4118 = vrot.lane.b32.xlu0 %v3901, 1
      %v4119 = vpop.permute.xlu0 %4118
      %4120 = vrot.lane.b32.xlu0 %v3909, 1
      %v4121 = vpop.permute.xlu0 %4120
      %4122 = vrot.lane.b32.xlu0 %v3902, 1
      %v4123 = vpop.permute.xlu0 %4122
      %4124 = vrot.lane.b32.xlu0 %v3910, 1
      %v4125 = vpop.permute.xlu0 %4124
      %4126 = vrot.lane.b32.xlu0 %v3903, 1
      %v4127 = vpop.permute.xlu0 %4126
      %4128 = vrot.lane.b32.xlu0 %v3911, 1
      %v4129 = vpop.permute.xlu0 %4128
      %4130 = vrot.lane.b32.xlu0 %v3904, 1
      %v4131 = vpop.permute.xlu0 %4130
      %4132 = vrot.lane.b32.xlu0 %v3912, 1
      %v4133 = vpop.permute.xlu0 %4132
      %4134 = vrot.lane.b32.xlu0 %v3905, 1
      %v4135 = vpop.permute.xlu0 %4134
      %4136 = vrot.lane.b32.xlu0 %v3913, 1
      %v4137 = vpop.permute.xlu0 %4136
      %v4138 = vsel %vm2024, %v4131, %v4135
      %v4139 = vsel %vm2024, %v4133, %v4137
      %v4140 = vsel %vm2024, %v4127, %v4131
      %v4141 = vsel %vm2024, %v4129, %v4133
      %v4142 = vsel %vm2024, %v4123, %v4127
      %v4143 = vsel %vm2024, %v4125, %v4129
      %v4144 = vsel %vm2024, %v4119, %v4123
      %v4145 = vsel %vm2024, %v4121, %v4125
      %v4146 = vsel %vm2024, %v4115, %v4119
      %v4147 = vsel %vm2024, %v4117, %v4121
      %v4148 = vsel %vm2024, %v4111, %v4115
      %v4149 = vsel %vm2024, %v4113, %v4117
      %v4150 = vsel %vm2024, %v4107, %v4111
      %v4151 = vsel %vm2024, %v4109, %v4113
      %v4152 = vsel %vm2024, %v4135, %v4107
      %v4153 = vsel %vm2024, %v4137, %v4109
      %v4154 = vmul.f32 %v4152, %v757
      %v4155 = vmul.f32 %v4150, %v758
      %v4156 = vmul.f32 %v4148, %v759
      %v4157 = vmul.f32 %v4146, %v760
      %v4158 = vmul.f32 %v4144, %v761
      %v4159 = vmul.f32 %v4142, %v762
      %v4160 = vmul.f32 %v4140, %v763
      %v4161 = vmul.f32 %v4138, %v764
      %v4162 = vmul.f32 %v4153, %v757
      %v4163 = vmul.f32 %v4151, %v758
      %v4164 = vmul.f32 %v4149, %v759
      %v4165 = vmul.f32 %v4147, %v760
      %v4166 = vmul.f32 %v4145, %v761
      %v4167 = vmul.f32 %v4143, %v762
      %v4168 = vmul.f32 %v4141, %v763
      %v4169 = vmul.f32 %v4139, %v764
      %4170 = vrot.lane.b32.xlu0 %v3898, 127
      %v4171 = vpop.permute.xlu0 %4170
      %4172 = vrot.lane.b32.xlu0 %v3906, 127
      %v4173 = vpop.permute.xlu0 %4172
      %4174 = vrot.lane.b32.xlu0 %v3899, 127
      %v4175 = vpop.permute.xlu0 %4174
      %4176 = vrot.lane.b32.xlu0 %v3907, 127
      %v4177 = vpop.permute.xlu0 %4176
      %4178 = vrot.lane.b32.xlu0 %v3900, 127
      %v4179 = vpop.permute.xlu0 %4178
      %4180 = vrot.lane.b32.xlu0 %v3908, 127
      %v4181 = vpop.permute.xlu0 %4180
      %4182 = vrot.lane.b32.xlu0 %v3901, 127
      %v4183 = vpop.permute.xlu0 %4182
      %4184 = vrot.lane.b32.xlu0 %v3909, 127
      %v4185 = vpop.permute.xlu0 %4184
      %4186 = vrot.lane.b32.xlu0 %v3902, 127
      %v4187 = vpop.permute.xlu0 %4186
      %4188 = vrot.lane.b32.xlu0 %v3910, 127
      %v4189 = vpop.permute.xlu0 %4188
      %4190 = vrot.lane.b32.xlu0 %v3903, 127
      %v4191 = vpop.permute.xlu0 %4190
      %4192 = vrot.lane.b32.xlu0 %v3911, 127
      %v4193 = vpop.permute.xlu0 %4192
      %4194 = vrot.lane.b32.xlu0 %v3904, 127
      %v4195 = vpop.permute.xlu0 %4194
      %4196 = vrot.lane.b32.xlu0 %v3912, 127
      %v4197 = vpop.permute.xlu0 %4196
      %4198 = vrot.lane.b32.xlu0 %v3905, 127
      %v4199 = vpop.permute.xlu0 %4198
      %4200 = vrot.lane.b32.xlu0 %v3913, 127
      %v4201 = vpop.permute.xlu0 %4200
      %v4202 = vsel %vm2089, %v4195, %v4199
      %v4203 = vsel %vm2089, %v4197, %v4201
      %v4204 = vsel %vm2089, %v4191, %v4195
      %v4205 = vsel %vm2089, %v4193, %v4197
      %v4206 = vsel %vm2089, %v4187, %v4191
      %v4207 = vsel %vm2089, %v4189, %v4193
      %v4208 = vsel %vm2089, %v4183, %v4187
      %v4209 = vsel %vm2089, %v4185, %v4189
      %v4210 = vsel %vm2089, %v4179, %v4183
      %v4211 = vsel %vm2089, %v4181, %v4185
      %v4212 = vsel %vm2089, %v4175, %v4179
      %v4213 = vsel %vm2089, %v4177, %v4181
      %v4214 = vsel %vm2089, %v4171, %v4175
      %v4215 = vsel %vm2089, %v4173, %v4177
      %v4216 = vsel %vm2089, %v4199, %v4171
      %v4217 = vsel %vm2089, %v4201, %v4173
      %v4218 = vmul.f32 %v4214, %v773
      %v4219 = vmul.f32 %v4212, %v774
      %v4220 = vmul.f32 %v4210, %v775
      %v4221 = vmul.f32 %v4208, %v776
      %v4222 = vmul.f32 %v4206, %v777
      %v4223 = vmul.f32 %v4204, %v778
      %v4224 = vmul.f32 %v4202, %v779
      %v4225 = vmul.f32 %v4216, %v780
      %v4226 = vmul.f32 %v4215, %v773
      %v4227 = vmul.f32 %v4213, %v774
      %v4228 = vmul.f32 %v4211, %v775
      %v4229 = vmul.f32 %v4209, %v776
      %v4230 = vmul.f32 %v4207, %v777
      %v4231 = vmul.f32 %v4205, %v778
      %v4232 = vmul.f32 %v4203, %v779
      %v4233 = vmul.f32 %v4217, %v780
      %4234 = vrot.lane.b32.xlu0 %v3898, 97
      %v4235 = vpop.permute.xlu0 %4234
      %4236 = vrot.lane.b32.xlu0 %v3906, 97
      %v4237 = vpop.permute.xlu0 %4236
      %4238 = vrot.lane.b32.xlu0 %v3899, 97
      %v4239 = vpop.permute.xlu0 %4238
      %4240 = vrot.lane.b32.xlu0 %v3907, 97
      %v4241 = vpop.permute.xlu0 %4240
      %4242 = vrot.lane.b32.xlu0 %v3900, 97
      %v4243 = vpop.permute.xlu0 %4242
      %4244 = vrot.lane.b32.xlu0 %v3908, 97
      %v4245 = vpop.permute.xlu0 %4244
      %4246 = vrot.lane.b32.xlu0 %v3901, 97
      %v4247 = vpop.permute.xlu0 %4246
      %4248 = vrot.lane.b32.xlu0 %v3909, 97
      %v4249 = vpop.permute.xlu0 %4248
      %4250 = vrot.lane.b32.xlu0 %v3902, 97
      %v4251 = vpop.permute.xlu0 %4250
      %4252 = vrot.lane.b32.xlu0 %v3910, 97
      %v4253 = vpop.permute.xlu0 %4252
      %4254 = vrot.lane.b32.xlu0 %v3903, 97
      %v4255 = vpop.permute.xlu0 %4254
      %4256 = vrot.lane.b32.xlu0 %v3911, 97
      %v4257 = vpop.permute.xlu0 %4256
      %4258 = vrot.lane.b32.xlu0 %v3904, 97
      %v4259 = vpop.permute.xlu0 %4258
      %4260 = vrot.lane.b32.xlu0 %v3912, 97
      %v4261 = vpop.permute.xlu0 %4260
      %4262 = vrot.lane.b32.xlu0 %v3905, 97
      %v4263 = vpop.permute.xlu0 %4262
      %4264 = vrot.lane.b32.xlu0 %v3913, 97
      %v4265 = vpop.permute.xlu0 %4264
      %v4266 = vsel %vm2154, %v4259, %v4263
      %v4267 = vsel %vm2154, %v4261, %v4265
      %v4268 = vsel %vm2154, %v4255, %v4259
      %v4269 = vsel %vm2154, %v4257, %v4261
      %v4270 = vsel %vm2154, %v4251, %v4255
      %v4271 = vsel %vm2154, %v4253, %v4257
      %v4272 = vsel %vm2154, %v4247, %v4251
      %v4273 = vsel %vm2154, %v4249, %v4253
      %v4274 = vsel %vm2154, %v4243, %v4247
      %v4275 = vsel %vm2154, %v4245, %v4249
      %v4276 = vsel %vm2154, %v4239, %v4243
      %v4277 = vsel %vm2154, %v4241, %v4245
      %v4278 = vsel %vm2154, %v4235, %v4239
      %v4279 = vsel %vm2154, %v4237, %v4241
      %v4280 = vsel %vm2154, %v4263, %v4235
      %v4281 = vsel %vm2154, %v4265, %v4237
      %v4282 = vmul.f32 %v4278, %v805
      %v4283 = vmul.f32 %v4276, %v806
      %v4284 = vmul.f32 %v4274, %v807
      %v4285 = vmul.f32 %v4272, %v808
      %v4286 = vmul.f32 %v4270, %v809
      %v4287 = vmul.f32 %v4268, %v810
      %v4288 = vmul.f32 %v4266, %v811
      %v4289 = vmul.f32 %v4280, %v812
      %v4290 = vmul.f32 %v4279, %v805
      %v4291 = vmul.f32 %v4277, %v806
      %v4292 = vmul.f32 %v4275, %v807
      %v4293 = vmul.f32 %v4273, %v808
      %v4294 = vmul.f32 %v4271, %v809
      %v4295 = vmul.f32 %v4269, %v810
      %v4296 = vmul.f32 %v4267, %v811
      %v4297 = vmul.f32 %v4281, %v812
      %4298 = vrot.lane.b32.xlu0 %v3898, 96
      %v4299 = vpop.permute.xlu0 %4298
      %4300 = vrot.lane.b32.xlu0 %v3906, 96
      %v4301 = vpop.permute.xlu0 %4300
      %4302 = vrot.lane.b32.xlu0 %v3899, 96
      %v4303 = vpop.permute.xlu0 %4302
      %4304 = vrot.lane.b32.xlu0 %v3907, 96
      %v4305 = vpop.permute.xlu0 %4304
      %4306 = vrot.lane.b32.xlu0 %v3900, 96
      %v4307 = vpop.permute.xlu0 %4306
      %4308 = vrot.lane.b32.xlu0 %v3908, 96
      %v4309 = vpop.permute.xlu0 %4308
      %4310 = vrot.lane.b32.xlu0 %v3901, 96
      %v4311 = vpop.permute.xlu0 %4310
      %4312 = vrot.lane.b32.xlu0 %v3909, 96
      %v4313 = vpop.permute.xlu0 %4312
      %4314 = vrot.lane.b32.xlu0 %v3902, 96
      %v4315 = vpop.permute.xlu0 %4314
      %4316 = vrot.lane.b32.xlu0 %v3910, 96
      %v4317 = vpop.permute.xlu0 %4316
      %4318 = vrot.lane.b32.xlu0 %v3903, 96
      %v4319 = vpop.permute.xlu0 %4318
      %4320 = vrot.lane.b32.xlu0 %v3911, 96
      %v4321 = vpop.permute.xlu0 %4320
      %4322 = vrot.lane.b32.xlu0 %v3904, 96
      %v4323 = vpop.permute.xlu0 %4322
      %4324 = vrot.lane.b32.xlu0 %v3912, 96
      %v4325 = vpop.permute.xlu0 %4324
      %4326 = vrot.lane.b32.xlu0 %v3905, 96
      %v4327 = vpop.permute.xlu0 %4326
      %4328 = vrot.lane.b32.xlu0 %v3913, 96
      %v4329 = vpop.permute.xlu0 %4328
      %v4330 = vsel %vm2219, %v4323, %v4327
      %v4331 = vsel %vm2219, %v4325, %v4329
      %v4332 = vsel %vm2219, %v4319, %v4323
      %v4333 = vsel %vm2219, %v4321, %v4325
      %v4334 = vsel %vm2219, %v4315, %v4319
      %v4335 = vsel %vm2219, %v4317, %v4321
      %v4336 = vsel %vm2219, %v4311, %v4315
      %v4337 = vsel %vm2219, %v4313, %v4317
      %v4338 = vsel %vm2219, %v4307, %v4311
      %v4339 = vsel %vm2219, %v4309, %v4313
      %v4340 = vsel %vm2219, %v4303, %v4307
      %v4341 = vsel %vm2219, %v4305, %v4309
      %v4342 = vsel %vm2219, %v4299, %v4303
      %v4343 = vsel %vm2219, %v4301, %v4305
      %v4344 = vsel %vm2219, %v4327, %v4299
      %v4345 = vsel %vm2219, %v4329, %v4301
      %v4346 = vmul.f32 %v4342, %v821
      %v4347 = vmul.f32 %v4340, %v822
      %v4348 = vmul.f32 %v4338, %v823
      %v4349 = vmul.f32 %v4336, %v824
      %v4350 = vmul.f32 %v4334, %v825
      %v4351 = vmul.f32 %v4332, %v826
      %v4352 = vmul.f32 %v4330, %v827
      %v4353 = vmul.f32 %v4344, %v828
      %v4354 = vmul.f32 %v4343, %v821
      %v4355 = vmul.f32 %v4341, %v822
      %v4356 = vmul.f32 %v4339, %v823
      %v4357 = vmul.f32 %v4337, %v824
      %v4358 = vmul.f32 %v4335, %v825
      %v4359 = vmul.f32 %v4333, %v826
      %v4360 = vmul.f32 %v4331, %v827
      %v4361 = vmul.f32 %v4345, %v828
      %4362 = vrot.lane.b32.xlu0 %v3898, 95
      %v4363 = vpop.permute.xlu0 %4362
      %4364 = vrot.lane.b32.xlu0 %v3906, 95
      %v4365 = vpop.permute.xlu0 %4364
      %4366 = vrot.lane.b32.xlu0 %v3899, 95
      %v4367 = vpop.permute.xlu0 %4366
      %4368 = vrot.lane.b32.xlu0 %v3907, 95
      %v4369 = vpop.permute.xlu0 %4368
      %4370 = vrot.lane.b32.xlu0 %v3900, 95
      %v4371 = vpop.permute.xlu0 %4370
      %4372 = vrot.lane.b32.xlu0 %v3908, 95
      %v4373 = vpop.permute.xlu0 %4372
      %4374 = vrot.lane.b32.xlu0 %v3901, 95
      %v4375 = vpop.permute.xlu0 %4374
      %4376 = vrot.lane.b32.xlu0 %v3909, 95
      %v4377 = vpop.permute.xlu0 %4376
      %4378 = vrot.lane.b32.xlu0 %v3902, 95
      %v4379 = vpop.permute.xlu0 %4378
      %4380 = vrot.lane.b32.xlu0 %v3910, 95
      %v4381 = vpop.permute.xlu0 %4380
      %4382 = vrot.lane.b32.xlu0 %v3903, 95
      %v4383 = vpop.permute.xlu0 %4382
      %4384 = vrot.lane.b32.xlu0 %v3911, 95
      %v4385 = vpop.permute.xlu0 %4384
      %4386 = vrot.lane.b32.xlu0 %v3904, 95
      %v4387 = vpop.permute.xlu0 %4386
      %4388 = vrot.lane.b32.xlu0 %v3912, 95
      %v4389 = vpop.permute.xlu0 %4388
      %4390 = vrot.lane.b32.xlu0 %v3905, 95
      %v4391 = vpop.permute.xlu0 %4390
      %4392 = vrot.lane.b32.xlu0 %v3913, 95
      %v4393 = vpop.permute.xlu0 %4392
      %v4394 = vsel %vm2284, %v4387, %v4391
      %v4395 = vsel %vm2284, %v4389, %v4393
      %v4396 = vsel %vm2284, %v4383, %v4387
      %v4397 = vsel %vm2284, %v4385, %v4389
      %v4398 = vsel %vm2284, %v4379, %v4383
      %v4399 = vsel %vm2284, %v4381, %v4385
      %v4400 = vsel %vm2284, %v4375, %v4379
      %v4401 = vsel %vm2284, %v4377, %v4381
      %v4402 = vsel %vm2284, %v4371, %v4375
      %v4403 = vsel %vm2284, %v4373, %v4377
      %v4404 = vsel %vm2284, %v4367, %v4371
      %v4405 = vsel %vm2284, %v4369, %v4373
      %v4406 = vsel %vm2284, %v4363, %v4367
      %v4407 = vsel %vm2284, %v4365, %v4369
      %v4408 = vsel %vm2284, %v4391, %v4363
      %v4409 = vsel %vm2284, %v4393, %v4365
      %v4410 = vmul.f32 %v4406, %v845
      %v4411 = vmul.f32 %v4404, %v846
      %v4412 = vmul.f32 %v4402, %v847
      %v4413 = vmul.f32 %v4400, %v848
      %v4414 = vmul.f32 %v4398, %v849
      %v4415 = vmul.f32 %v4396, %v850
      %v4416 = vmul.f32 %v4394, %v851
      %v4417 = vmul.f32 %v4408, %v852
      %v4418 = vmul.f32 %v4407, %v845
      %v4419 = vmul.f32 %v4405, %v846
      %v4420 = vmul.f32 %v4403, %v847
      %v4421 = vmul.f32 %v4401, %v848
      %v4422 = vmul.f32 %v4399, %v849
      %v4423 = vmul.f32 %v4397, %v850
      %v4424 = vmul.f32 %v4395, %v851
      %v4425 = vmul.f32 %v4409, %v852
      %v4426 = vld [vmem:[%s10] sm:$0xff]
      %v4427 = vpack.c.bf16 %v3970, %v3962
      %v4428 = vpack.c.bf16 %v3971, %v3963
      %v4429 = vpack.c.bf16 %v3972, %v3964
      %v4430 = vpack.c.bf16 %v3973, %v3965
      %v4431 = vpack.c.bf16 %v3974, %v3966
      %v4432 = vpack.c.bf16 %v3975, %v3967
      %v4433 = vpack.c.bf16 %v3976, %v3968
      %v4434 = vpack.c.bf16 %v3977, %v3969
      %v4435 = vpack.c.bf16 %v4034, %v4026
      %v4436 = vpack.c.bf16 %v4035, %v4027
      %v4437 = vpack.c.bf16 %v4036, %v4028
      %v4438 = vpack.c.bf16 %v4037, %v4029
      %v4439 = vpack.c.bf16 %v4038, %v4030
      %v4440 = vpack.c.bf16 %v4039, %v4031
      %v4441 = vpack.c.bf16 %v4040, %v4032
      %v4442 = vpack.c.bf16 %v4041, %v4033
      %v4443 = vpack.c.bf16 %v4098, %v4090
      %v4444 = vpack.c.bf16 %v4099, %v4091
      %v4445 = vpack.c.bf16 %v4100, %v4092
      %v4446 = vpack.c.bf16 %v4101, %v4093
      %v4447 = vpack.c.bf16 %v4102, %v4094
      %v4448 = vpack.c.bf16 %v4103, %v4095
      %v4449 = vpack.c.bf16 %v4104, %v4096
      %v4450 = vpack.c.bf16 %v4105, %v4097
      %v4451 = vpack.c.bf16 %v4162, %v4154
      %v4452 = vpack.c.bf16 %v4163, %v4155
      %v4453 = vpack.c.bf16 %v4164, %v4156
      %v4454 = vpack.c.bf16 %v4165, %v4157
      %v4455 = vpack.c.bf16 %v4166, %v4158
      %v4456 = vpack.c.bf16 %v4167, %v4159
      %v4457 = vpack.c.bf16 %v4168, %v4160
      %v4458 = vpack.c.bf16 %v4169, %v4161
      %v4459 = vpack.c.bf16 %v3906, %v3898
      %v4460 = vpack.c.bf16 %v3907, %v3899
      %v4461 = vpack.c.bf16 %v3908, %v3900
      %v4462 = vpack.c.bf16 %v3909, %v3901
      %v4463 = vpack.c.bf16 %v3910, %v3902
      %v4464 = vpack.c.bf16 %v3911, %v3903
      %v4465 = vpack.c.bf16 %v3912, %v3904
      %v4466 = vpack.c.bf16 %v3913, %v3905
      %v4467 = vpack.c.bf16 %v4226, %v4218
      %v4468 = vpack.c.bf16 %v4227, %v4219
      %v4469 = vpack.c.bf16 %v4228, %v4220
      %v4470 = vpack.c.bf16 %v4229, %v4221
      %v4471 = vpack.c.bf16 %v4230, %v4222
      %v4472 = vpack.c.bf16 %v4231, %v4223
      %v4473 = vpack.c.bf16 %v4232, %v4224
      %v4474 = vpack.c.bf16 %v4233, %v4225
      %v4475 = vpack.c.bf16 %v4290, %v4282
      %v4476 = vpack.c.bf16 %v4291, %v4283
      %v4477 = vpack.c.bf16 %v4292, %v4284
      %v4478 = vpack.c.bf16 %v4293, %v4285
      %v4479 = vpack.c.bf16 %v4294, %v4286
      %v4480 = vpack.c.bf16 %v4295, %v4287
      %v4481 = vpack.c.bf16 %v4296, %v4288
      %v4482 = vpack.c.bf16 %v4297, %v4289
      %v4483 = vpack.c.bf16 %v4354, %v4346
      %v4484 = vpack.c.bf16 %v4355, %v4347
      %v4485 = vpack.c.bf16 %v4356, %v4348
      %v4486 = vpack.c.bf16 %v4357, %v4349
      %v4487 = vpack.c.bf16 %v4358, %v4350
      %v4488 = vpack.c.bf16 %v4359, %v4351
      %v4489 = vpack.c.bf16 %v4360, %v4352
      %v4490 = vpack.c.bf16 %v4361, %v4353
      %v4491 = vpack.c.bf16 %v4418, %v4410
      %v4492 = vpack.c.bf16 %v4419, %v4411
      %v4493 = vpack.c.bf16 %v4420, %v4412
      %v4494 = vpack.c.bf16 %v4421, %v4413
      %v4495 = vpack.c.bf16 %v4422, %v4414
      %v4496 = vpack.c.bf16 %v4423, %v4415
      %v4497 = vpack.c.bf16 %v4424, %v4416
      %v4498 = vpack.c.bf16 %v4425, %v4417
      %v4500 = vunpack.c.l.b16 %v4426
      %v4501 = vunpack.c.h.b16 %v4426
      %v4502 = vpack.c.b16 %v4500, %v4500
      %v4503 = vpack.c.b16 %v4501, %v4501
      %v4506 = vsel %vm2400, %v4503, 0
      %4508 = vmatprep.subr.bf16.mxu0 %v4484
      %4509 = vmatpush1.bf16.msra.mxu0 %v4483
      %4510 = vmatprep.subr.bf16.mxu0 %v4476
      %4511 = vmatpush1.bf16.msra.mxu0 %v4475
      %4512 = vmatprep.subr.bf16.mxu0 %v4468
      %4513 = vmatpush1.bf16.msra.mxu0 %v4467
      %4514 = vmatprep.subr.bf16.mxu0 %v4460
      %4515 = vmatpush1.bf16.msra.mxu0 %v4459
      %4516 = vmatprep.subr.bf16.mxu0 %v4452
      %4517 = vmatpush1.bf16.msra.mxu0 %v4451
      %4518 = vmatprep.subr.bf16.mxu0 %v4444
      %4519 = vmatpush1.bf16.msra.mxu0 %v4443
      %4520 = vmatprep.subr.bf16.mxu0 %v4436
      %4521 = vmatpush1.bf16.msra.mxu0 %v4435
      %4522 = vmatprep.subr.bf16.mxu0 %v4428
      %4523 = vmatpush1.bf16.msra.mxu0 %v4427
      %4524 = vmatprep.subr.bf16.mxu0 0
      %4525 = vmatpush2.bf16.msra.mxu0 0
      %4526 = vmatprep.subr.bf16.mxu0 0
      %4527 = vmatpush2.bf16.msra.mxu0 0
      %4528 = vmatprep.subr.bf16.mxu0 0
      %4529 = vmatpush2.bf16.msra.mxu0 0
      %4530 = vmatprep.subr.bf16.mxu0 0
      %4531 = vmatpush2.bf16.msra.mxu0 0
      %4532 = vmatprep.subr.bf16.mxu0 0
      %4533 = vmatpush2.bf16.msra.mxu0 0
      %4534 = vmatprep.subr.bf16.mxu0 0
      %4535 = vmatpush2.bf16.msra.mxu0 0
      %4536 = vmatprep.subr.bf16.mxu0 0
      %4537 = vmatpush2.bf16.msra.mxu0 0
      %4538 = vmatprep.subr.bf16.mxu0 %v4492
      %4539 = vmatpush2.bf16.msra.mxu0 %v4491
      %4540 = vmatprep.mubr.bf16.mxu0 %v4506
      %4541 = vmatmul.mubr.bf16.gmra.mxu0 %v4502
      %v4542 = vpop.f32.mrf.mxu0
      %v4543 = vadd.f32 0.0, %v4542
      %v4544 = vpop.f32.mrf.mxu0
      %v4545 = vadd.f32 0.0, %v4544
      %v4546 = vpop.f32.mrf.mxu0
      %v4547 = vpop.f32.mrf.mxu0
      %4548 = vdwg.mxu0
      %4549 = vmatprep.subr.bf16.mxu0 %v4486
      %4550 = vmatpush1.bf16.msra.mxu0 %v4485
      %4551 = vmatprep.subr.bf16.mxu0 %v4478
      %4552 = vmatpush1.bf16.msra.mxu0 %v4477
      %4553 = vmatprep.subr.bf16.mxu0 %v4470
      %4554 = vmatpush1.bf16.msra.mxu0 %v4469
      %4555 = vmatprep.subr.bf16.mxu0 %v4462
      %4556 = vmatpush1.bf16.msra.mxu0 %v4461
      %4557 = vmatprep.subr.bf16.mxu0 %v4454
      %4558 = vmatpush1.bf16.msra.mxu0 %v4453
      %4559 = vmatprep.subr.bf16.mxu0 %v4446
      %4560 = vmatpush1.bf16.msra.mxu0 %v4445
      %4561 = vmatprep.subr.bf16.mxu0 %v4438
      %4562 = vmatpush1.bf16.msra.mxu0 %v4437
      %4563 = vmatprep.subr.bf16.mxu0 %v4430
      %4564 = vmatpush1.bf16.msra.mxu0 %v4429
      %4565 = vmatprep.subr.bf16.mxu0 0
      %4566 = vmatpush2.bf16.msra.mxu0 0
      %4567 = vmatprep.subr.bf16.mxu0 0
      %4568 = vmatpush2.bf16.msra.mxu0 0
      %4569 = vmatprep.subr.bf16.mxu0 0
      %4570 = vmatpush2.bf16.msra.mxu0 0
      %4571 = vmatprep.subr.bf16.mxu0 0
      %4572 = vmatpush2.bf16.msra.mxu0 0
      %4573 = vmatprep.subr.bf16.mxu0 0
      %4574 = vmatpush2.bf16.msra.mxu0 0
      %4575 = vmatprep.subr.bf16.mxu0 0
      %4576 = vmatpush2.bf16.msra.mxu0 0
      %4577 = vmatprep.subr.bf16.mxu0 0
      %4578 = vmatpush2.bf16.msra.mxu0 0
      %4579 = vmatprep.subr.bf16.mxu0 %v4494
      %4580 = vmatpush2.bf16.msra.mxu0 %v4493
      %4581 = vmatprep.mubr.bf16.mxu0 %v4506
      %4582 = vmatmul.mubr.bf16.gmra.mxu0 %v4502
      %v4583 = vpop.f32.mrf.mxu0
      %v4584 = vadd.f32 0.0, %v4583
      %v4585 = vpop.f32.mrf.mxu0
      %v4586 = vadd.f32 0.0, %v4585
      %v4587 = vpop.f32.mrf.mxu0
      %v4588 = vpop.f32.mrf.mxu0
      %4589 = vdwg.mxu0
      %4590 = vmatprep.subr.bf16.mxu0 %v4488
      %4591 = vmatpush1.bf16.msra.mxu0 %v4487
      %4592 = vmatprep.subr.bf16.mxu0 %v4480
      %4593 = vmatpush1.bf16.msra.mxu0 %v4479
      %4594 = vmatprep.subr.bf16.mxu0 %v4472
      %4595 = vmatpush1.bf16.msra.mxu0 %v4471
      %4596 = vmatprep.subr.bf16.mxu0 %v4464
      %4597 = vmatpush1.bf16.msra.mxu0 %v4463
      %4598 = vmatprep.subr.bf16.mxu0 %v4456
      %4599 = vmatpush1.bf16.msra.mxu0 %v4455
      %4600 = vmatprep.subr.bf16.mxu0 %v4448
      %4601 = vmatpush1.bf16.msra.mxu0 %v4447
      %4602 = vmatprep.subr.bf16.mxu0 %v4440
      %4603 = vmatpush1.bf16.msra.mxu0 %v4439
      %4604 = vmatprep.subr.bf16.mxu0 %v4432
      %4605 = vmatpush1.bf16.msra.mxu0 %v4431
      %4606 = vmatprep.subr.bf16.mxu0 0
      %4607 = vmatpush2.bf16.msra.mxu0 0
      %4608 = vmatprep.subr.bf16.mxu0 0
      %4609 = vmatpush2.bf16.msra.mxu0 0
      %4610 = vmatprep.subr.bf16.mxu0 0
      %4611 = vmatpush2.bf16.msra.mxu0 0
      %4612 = vmatprep.subr.bf16.mxu0 0
      %4613 = vmatpush2.bf16.msra.mxu0 0
      %4614 = vmatprep.subr.bf16.mxu0 0
      %4615 = vmatpush2.bf16.msra.mxu0 0
      %4616 = vmatprep.subr.bf16.mxu0 0
      %4617 = vmatpush2.bf16.msra.mxu0 0
      %4618 = vmatprep.subr.bf16.mxu0 0
      %4619 = vmatpush2.bf16.msra.mxu0 0
      %4620 = vmatprep.subr.bf16.mxu0 %v4496
      %4621 = vmatpush2.bf16.msra.mxu0 %v4495
      %4622 = vmatprep.mubr.bf16.mxu0 %v4506
      %4623 = vmatmul.mubr.bf16.gmra.mxu0 %v4502
      %v4624 = vpop.f32.mrf.mxu0
      %v4625 = vadd.f32 0.0, %v4624
      %v4626 = vpop.f32.mrf.mxu0
      %v4627 = vadd.f32 0.0, %v4626
      %v4628 = vpop.f32.mrf.mxu0
      %v4629 = vpop.f32.mrf.mxu0
      %4630 = vdwg.mxu0
      %4631 = vmatprep.subr.bf16.mxu0 %v4490
      %4632 = vmatpush1.bf16.msra.mxu0 %v4489
      %4633 = vmatprep.subr.bf16.mxu0 %v4482
      %4634 = vmatpush1.bf16.msra.mxu0 %v4481
      %4635 = vmatprep.subr.bf16.mxu0 %v4474
      %4636 = vmatpush1.bf16.msra.mxu0 %v4473
      %4637 = vmatprep.subr.bf16.mxu0 %v4466
      %4638 = vmatpush1.bf16.msra.mxu0 %v4465
      %4639 = vmatprep.subr.bf16.mxu0 %v4458
      %4640 = vmatpush1.bf16.msra.mxu0 %v4457
      %4641 = vmatprep.subr.bf16.mxu0 %v4450
      %4642 = vmatpush1.bf16.msra.mxu0 %v4449
      %4643 = vmatprep.subr.bf16.mxu0 %v4442
      %4644 = vmatpush1.bf16.msra.mxu0 %v4441
      %4645 = vmatprep.subr.bf16.mxu0 %v4434
      %4646 = vmatpush1.bf16.msra.mxu0 %v4433
      %4647 = vmatprep.subr.bf16.mxu0 0
      %4648 = vmatpush2.bf16.msra.mxu0 0
      %4649 = vmatprep.subr.bf16.mxu0 0
      %4650 = vmatpush2.bf16.msra.mxu0 0
      %4651 = vmatprep.subr.bf16.mxu0 0
      %4652 = vmatpush2.bf16.msra.mxu0 0
      %4653 = vmatprep.subr.bf16.mxu0 0
      %4654 = vmatpush2.bf16.msra.mxu0 0
      %4655 = vmatprep.subr.bf16.mxu0 0
      %4656 = vmatpush2.bf16.msra.mxu0 0
      %4657 = vmatprep.subr.bf16.mxu0 0
      %4658 = vmatpush2.bf16.msra.mxu0 0
      %4659 = vmatprep.subr.bf16.mxu0 0
      %4660 = vmatpush2.bf16.msra.mxu0 0
      %4661 = vmatprep.subr.bf16.mxu0 %v4498
      %4662 = vmatpush2.bf16.msra.mxu0 %v4497
      %4663 = vmatprep.mubr.bf16.mxu0 %v4506
      %4664 = vmatmul.mubr.bf16.gmra.mxu0 %v4502
      %v4665 = vpop.f32.mrf.mxu0
      %v4666 = vadd.f32 0.0, %v4665
      %v4667 = vpop.f32.mrf.mxu0
      %v4668 = vadd.f32 0.0, %v4667
      %v4669 = vpop.f32.mrf.mxu0
      %v4670 = vpop.f32.mrf.mxu0
      %4671 = vdwg.mxu0
      %v4672 = vadd.f32 %v4543, %v4545
      %v4673 = vadd.f32 %v4672, %v4584
      %v4674 = vadd.f32 %v4673, %v4586
      %v4675 = vadd.f32 %v4674, %v4625
      %v4676 = vadd.f32 %v4675, %v4627
      %v4677 = vadd.f32 %v4676, %v4666
      %v4678 = vadd.f32 %v4677, %v4668
      %4679 = vadd.xlane.f32.xlu0 %v4678
      %v4680 = vpop.xlane.xlu0 %4679
      %v4681 = vrot.slane %v4680, 4
      %v4682 = vadd.f32 %v4680, %v4681
      %v4683 = vrot.slane %v4682, 2
      %v4684 = vadd.f32 %v4682, %v4683
      %v4685 = vrot.slane %v4684, 1
      %v4686 = vadd.f32 %v4684, %v4685
      %s4687 = vtos %v4686
      %v4688 = vrcp.pop 8192.0
      %s4689 = vtos %v4688
      %s4690 = smul.f32 %s4687, %s4689
      %v4691 = vstv %s4690
      %v4692 = vsub.f32 %v4543, %v4691
      %v4693 = vsub.f32 %v4545, %v4691
      %v4694 = vsub.f32 %v4584, %v4691
      %v4695 = vsub.f32 %v4586, %v4691
      %v4696 = vsub.f32 %v4625, %v4691
      %v4697 = vsub.f32 %v4627, %v4691
      %v4698 = vsub.f32 %v4666, %v4691
      %v4699 = vsub.f32 %v4668, %v4691
      %v4700 = vmul.f32 %v4692, %v4692
      %v4701 = vmul.f32 %v4693, %v4693
      %v4702 = vmul.f32 %v4694, %v4694
      %v4703 = vmul.f32 %v4695, %v4695
      %v4704 = vmul.f32 %v4696, %v4696
      %v4705 = vmul.f32 %v4697, %v4697
      %v4706 = vmul.f32 %v4698, %v4698
      %v4707 = vmul.f32 %v4699, %v4699
      %v4708 = vadd.f32 %v4700, %v4701
      %v4709 = vadd.f32 %v4708, %v4702
      %v4710 = vadd.f32 %v4709, %v4703
      %v4711 = vadd.f32 %v4710, %v4704
      %v4712 = vadd.f32 %v4711, %v4705
      %v4713 = vadd.f32 %v4712, %v4706
      %v4714 = vadd.f32 %v4713, %v4707
      %4715 = vadd.xlane.f32.xlu0 %v4714
      %v4716 = vpop.xlane.xlu0 %4715
      %v4717 = vrot.slane %v4716, 4
      %v4718 = vadd.f32 %v4716, %v4717
      %v4719 = vrot.slane %v4718, 2
      %v4720 = vadd.f32 %v4718, %v4719
      %v4721 = vrot.slane %v4720, 1
      %v4722 = vadd.f32 %v4720, %v4721
      %s4723 = vtos %v4722
      %v4724 = vrcp.pop 8192.0
      %s4725 = vtos %v4724
      %s4726 = smul.f32 %s4723, %s4725
      %s4727 = sadd.f32 %s4726, 1e-05
      %v4728 = vstv %s4727
      %v4729 = vrsqrt.pop %v4728
      %s4730 = vtos %v4729
      %v4731 = vstv %s4730
      %v4732 = vmul.f32 %v4692, %v4731
      %v4733 = vmul.f32 %v4693, %v4731
      %v4734 = vmul.f32 %v4694, %v4731
      %v4735 = vmul.f32 %v4695, %v4731
      %v4736 = vmul.f32 %v4696, %v4731
      %v4737 = vmul.f32 %v4697, %v4731
      %v4738 = vmul.f32 %v4698, %v4731
      %v4739 = vmul.f32 %v4699, %v4731
      %v4740 = vld [vmem:[%s11] sm:$0xff]
      %4742 = vset.pattern.permute.xlu0 0
      %4743 = vperm.xlu0 %4742, %v4740
      %v4744 = vpop.permute.xlu0 %4743
      %v4746 = vmul.f32 %v4732, %v4744
      %v4747 = vmul.f32 %v4733, %v4744
      %v4748 = vmul.f32 %v4734, %v4744
      %v4749 = vmul.f32 %v4735, %v4744
      %v4750 = vmul.f32 %v4736, %v4744
      %v4751 = vmul.f32 %v4737, %v4744
      %v4752 = vmul.f32 %v4738, %v4744
      %v4753 = vmul.f32 %v4739, %v4744
      %v4754 = vld [vmem:[%s12] sm:$0xff]
      %4756 = vset.pattern.permute.xlu0 0
      %4757 = vperm.xlu0 %4756, %v4754
      %v4758 = vpop.permute.xlu0 %4757
      %v4760 = vadd.f32 %v4746, %v4758
      %v4761 = vadd.f32 %v4747, %v4758
      %v4762 = vadd.f32 %v4748, %v4758
      %v4763 = vadd.f32 %v4749, %v4758
      %v4764 = vadd.f32 %v4750, %v4758
      %v4765 = vadd.f32 %v4751, %v4758
      %v4766 = vadd.f32 %v4752, %v4758
      %v4767 = vadd.f32 %v4753, %v4758
      %v4768 = vxor.u32 %v4760, 2147483648
      %v4769 = vxor.u32 %v4761, 2147483648
      %v4770 = vxor.u32 %v4762, 2147483648
      %v4771 = vxor.u32 %v4763, 2147483648
      %v4772 = vxor.u32 %v4764, 2147483648
      %v4773 = vxor.u32 %v4765, 2147483648
      %v4774 = vxor.u32 %v4766, 2147483648
      %v4775 = vxor.u32 %v4767, 2147483648
      %v4776 = vmul.f32 %v4768, 1.442695
      %v4777 = vpow.pop %v4776
      %v4778 = vmul.f32 %v4769, 1.442695
      %v4779 = vpow.pop %v4778
      %v4780 = vmul.f32 %v4770, 1.442695
      %v4781 = vpow.pop %v4780
      %v4782 = vmul.f32 %v4771, 1.442695
      %v4783 = vpow.pop %v4782
      %v4784 = vmul.f32 %v4772, 1.442695
      %v4785 = vpow.pop %v4784
      %v4786 = vmul.f32 %v4773, 1.442695
      %v4787 = vpow.pop %v4786
      %v4788 = vmul.f32 %v4774, 1.442695
      %v4789 = vpow.pop %v4788
      %v4790 = vmul.f32 %v4775, 1.442695
      %v4791 = vpow.pop %v4790
      %v4792 = vadd.f32 %v4777, 1.0
      %v4793 = vadd.f32 %v4779, 1.0
      %v4794 = vadd.f32 %v4781, 1.0
      %v4795 = vadd.f32 %v4783, 1.0
      %v4796 = vadd.f32 %v4785, 1.0
      %v4797 = vadd.f32 %v4787, 1.0
      %v4798 = vadd.f32 %v4789, 1.0
      %v4799 = vadd.f32 %v4791, 1.0
      %v4800 = vrcp.pop %v4792
      %v4801 = vmul.f32 1.0, %v4800
      %v4802 = vrcp.pop %v4793
      %v4803 = vmul.f32 1.0, %v4802
      %v4804 = vrcp.pop %v4794
      %v4805 = vmul.f32 1.0, %v4804
      %v4806 = vrcp.pop %v4795
      %v4807 = vmul.f32 1.0, %v4806
      %v4808 = vrcp.pop %v4796
      %v4809 = vmul.f32 1.0, %v4808
      %v4810 = vrcp.pop %v4797
      %v4811 = vmul.f32 1.0, %v4810
      %v4812 = vrcp.pop %v4798
      %v4813 = vmul.f32 1.0, %v4812
      %v4814 = vrcp.pop %v4799
      %v4815 = vmul.f32 1.0, %v4814
      %v4816 = vmul.f32 %v4760, %v4801
      %v4817 = vmul.f32 %v4761, %v4803
      %v4818 = vmul.f32 %v4762, %v4805
      %v4819 = vmul.f32 %v4763, %v4807
      %v4820 = vmul.f32 %v4764, %v4809
      %v4821 = vmul.f32 %v4765, %v4811
      %v4822 = vmul.f32 %v4766, %v4813
      %v4823 = vmul.f32 %v4767, %v4815
      %4824 = vrot.lane.b32.xlu0 %v4816, 33
      %v4825 = vpop.permute.xlu0 %4824
      %4826 = vrot.lane.b32.xlu0 %v4817, 33
      %v4827 = vpop.permute.xlu0 %4826
      %4828 = vrot.lane.b32.xlu0 %v4818, 33
      %v4829 = vpop.permute.xlu0 %4828
      %4830 = vrot.lane.b32.xlu0 %v4819, 33
      %v4831 = vpop.permute.xlu0 %4830
      %4832 = vrot.lane.b32.xlu0 %v4820, 33
      %v4833 = vpop.permute.xlu0 %4832
      %4834 = vrot.lane.b32.xlu0 %v4821, 33
      %v4835 = vpop.permute.xlu0 %4834
      %4836 = vrot.lane.b32.xlu0 %v4822, 33
      %v4837 = vpop.permute.xlu0 %4836
      %4838 = vrot.lane.b32.xlu0 %v4823, 33
      %v4839 = vpop.permute.xlu0 %4838
      %v4840 = vsel %vm1829, %v4837, %v4839
      %v4841 = vsel %vm1829, %v4835, %v4837
      %v4842 = vsel %vm1829, %v4833, %v4835
      %v4843 = vsel %vm1829, %v4831, %v4833
      %v4844 = vsel %vm1829, %v4829, %v4831
      %v4845 = vsel %vm1829, %v4827, %v4829
      %v4846 = vsel %vm1829, %v4825, %v4827
      %v4847 = vsel %vm1829, %v4839, %v4825
      %v4848 = vmul.f32 %v4847, %v693
      %v4849 = vmul.f32 %v4846, %v694
      %v4850 = vmul.f32 %v4845, %v695
      %v4851 = vmul.f32 %v4844, %v696
      %v4852 = vmul.f32 %v4843, %v697
      %v4853 = vmul.f32 %v4842, %v698
      %v4854 = vmul.f32 %v4841, %v699
      %v4855 = vmul.f32 %v4840, %v700
      %4856 = vrot.lane.b32.xlu0 %v4816, 32
      %v4857 = vpop.permute.xlu0 %4856
      %4858 = vrot.lane.b32.xlu0 %v4817, 32
      %v4859 = vpop.permute.xlu0 %4858
      %4860 = vrot.lane.b32.xlu0 %v4818, 32
      %v4861 = vpop.permute.xlu0 %4860
      %4862 = vrot.lane.b32.xlu0 %v4819, 32
      %v4863 = vpop.permute.xlu0 %4862
      %4864 = vrot.lane.b32.xlu0 %v4820, 32
      %v4865 = vpop.permute.xlu0 %4864
      %4866 = vrot.lane.b32.xlu0 %v4821, 32
      %v4867 = vpop.permute.xlu0 %4866
      %4868 = vrot.lane.b32.xlu0 %v4822, 32
      %v4869 = vpop.permute.xlu0 %4868
      %4870 = vrot.lane.b32.xlu0 %v4823, 32
      %v4871 = vpop.permute.xlu0 %4870
      %v4872 = vsel %vm1894, %v4869, %v4871
      %v4873 = vsel %vm1894, %v4867, %v4869
      %v4874 = vsel %vm1894, %v4865, %v4867
      %v4875 = vsel %vm1894, %v4863, %v4865
      %v4876 = vsel %vm1894, %v4861, %v4863
      %v4877 = vsel %vm1894, %v4859, %v4861
      %v4878 = vsel %vm1894, %v4857, %v4859
      %v4879 = vsel %vm1894, %v4871, %v4857
      %v4880 = vmul.f32 %v4879, %v709
      %v4881 = vmul.f32 %v4878, %v710
      %v4882 = vmul.f32 %v4877, %v711
      %v4883 = vmul.f32 %v4876, %v712
      %v4884 = vmul.f32 %v4875, %v713
      %v4885 = vmul.f32 %v4874, %v714
      %v4886 = vmul.f32 %v4873, %v715
      %v4887 = vmul.f32 %v4872, %v716
      %4888 = vrot.lane.b32.xlu0 %v4816, 31
      %v4889 = vpop.permute.xlu0 %4888
      %4890 = vrot.lane.b32.xlu0 %v4817, 31
      %v4891 = vpop.permute.xlu0 %4890
      %4892 = vrot.lane.b32.xlu0 %v4818, 31
      %v4893 = vpop.permute.xlu0 %4892
      %4894 = vrot.lane.b32.xlu0 %v4819, 31
      %v4895 = vpop.permute.xlu0 %4894
      %4896 = vrot.lane.b32.xlu0 %v4820, 31
      %v4897 = vpop.permute.xlu0 %4896
      %4898 = vrot.lane.b32.xlu0 %v4821, 31
      %v4899 = vpop.permute.xlu0 %4898
      %4900 = vrot.lane.b32.xlu0 %v4822, 31
      %v4901 = vpop.permute.xlu0 %4900
      %4902 = vrot.lane.b32.xlu0 %v4823, 31
      %v4903 = vpop.permute.xlu0 %4902
      %v4904 = vsel %vm1959, %v4901, %v4903
      %v4905 = vsel %vm1959, %v4899, %v4901
      %v4906 = vsel %vm1959, %v4897, %v4899
      %v4907 = vsel %vm1959, %v4895, %v4897
      %v4908 = vsel %vm1959, %v4893, %v4895
      %v4909 = vsel %vm1959, %v4891, %v4893
      %v4910 = vsel %vm1959, %v4889, %v4891
      %v4911 = vsel %vm1959, %v4903, %v4889
      %v4912 = vmul.f32 %v4911, %v741
      %v4913 = vmul.f32 %v4910, %v742
      %v4914 = vmul.f32 %v4909, %v743
      %v4915 = vmul.f32 %v4908, %v744
      %v4916 = vmul.f32 %v4907, %v745
      %v4917 = vmul.f32 %v4906, %v746
      %v4918 = vmul.f32 %v4905, %v747
      %v4919 = vmul.f32 %v4904, %v748
      %4920 = vrot.lane.b32.xlu0 %v4816, 1
      %v4921 = vpop.permute.xlu0 %4920
      %4922 = vrot.lane.b32.xlu0 %v4817, 1
      %v4923 = vpop.permute.xlu0 %4922
      %4924 = vrot.lane.b32.xlu0 %v4818, 1
      %v4925 = vpop.permute.xlu0 %4924
      %4926 = vrot.lane.b32.xlu0 %v4819, 1
      %v4927 = vpop.permute.xlu0 %4926
      %4928 = vrot.lane.b32.xlu0 %v4820, 1
      %v4929 = vpop.permute.xlu0 %4928
      %4930 = vrot.lane.b32.xlu0 %v4821, 1
      %v4931 = vpop.permute.xlu0 %4930
      %4932 = vrot.lane.b32.xlu0 %v4822, 1
      %v4933 = vpop.permute.xlu0 %4932
      %4934 = vrot.lane.b32.xlu0 %v4823, 1
      %v4935 = vpop.permute.xlu0 %4934
      %v4936 = vsel %vm2024, %v4933, %v4935
      %v4937 = vsel %vm2024, %v4931, %v4933
      %v4938 = vsel %vm2024, %v4929, %v4931
      %v4939 = vsel %vm2024, %v4927, %v4929
      %v4940 = vsel %vm2024, %v4925, %v4927
      %v4941 = vsel %vm2024, %v4923, %v4925
      %v4942 = vsel %vm2024, %v4921, %v4923
      %v4943 = vsel %vm2024, %v4935, %v4921
      %v4944 = vmul.f32 %v4943, %v757
      %v4945 = vmul.f32 %v4942, %v758
      %v4946 = vmul.f32 %v4941, %v759
      %v4947 = vmul.f32 %v4940, %v760
      %v4948 = vmul.f32 %v4939, %v761
      %v4949 = vmul.f32 %v4938, %v762
      %v4950 = vmul.f32 %v4937, %v763
      %v4951 = vmul.f32 %v4936, %v764
      %4952 = vrot.lane.b32.xlu0 %v4816, 127
      %v4953 = vpop.permute.xlu0 %4952
      %4954 = vrot.lane.b32.xlu0 %v4817, 127
      %v4955 = vpop.permute.xlu0 %4954
      %4956 = vrot.lane.b32.xlu0 %v4818, 127
      %v4957 = vpop.permute.xlu0 %4956
      %4958 = vrot.lane.b32.xlu0 %v4819, 127
      %v4959 = vpop.permute.xlu0 %4958
      %4960 = vrot.lane.b32.xlu0 %v4820, 127
      %v4961 = vpop.permute.xlu0 %4960
      %4962 = vrot.lane.b32.xlu0 %v4821, 127
      %v4963 = vpop.permute.xlu0 %4962
      %4964 = vrot.lane.b32.xlu0 %v4822, 127
      %v4965 = vpop.permute.xlu0 %4964
      %4966 = vrot.lane.b32.xlu0 %v4823, 127
      %v4967 = vpop.permute.xlu0 %4966
      %v4968 = vsel %vm2089, %v4965, %v4967
      %v4969 = vsel %vm2089, %v4963, %v4965
      %v4970 = vsel %vm2089, %v4961, %v4963
      %v4971 = vsel %vm2089, %v4959, %v4961
      %v4972 = vsel %vm2089, %v4957, %v4959
      %v4973 = vsel %vm2089, %v4955, %v4957
      %v4974 = vsel %vm2089, %v4953, %v4955
      %v4975 = vsel %vm2089, %v4967, %v4953
      %v4976 = vmul.f32 %v4974, %v773
      %v4977 = vmul.f32 %v4973, %v774
      %v4978 = vmul.f32 %v4972, %v775
      %v4979 = vmul.f32 %v4971, %v776
      %v4980 = vmul.f32 %v4970, %v777
      %v4981 = vmul.f32 %v4969, %v778
      %v4982 = vmul.f32 %v4968, %v779
      %v4983 = vmul.f32 %v4975, %v780
      %4984 = vrot.lane.b32.xlu0 %v4816, 97
      %v4985 = vpop.permute.xlu0 %4984
      %4986 = vrot.lane.b32.xlu0 %v4817, 97
      %v4987 = vpop.permute.xlu0 %4986
      %4988 = vrot.lane.b32.xlu0 %v4818, 97
      %v4989 = vpop.permute.xlu0 %4988
      %4990 = vrot.lane.b32.xlu0 %v4819, 97
      %v4991 = vpop.permute.xlu0 %4990
      %4992 = vrot.lane.b32.xlu0 %v4820, 97
      %v4993 = vpop.permute.xlu0 %4992
      %4994 = vrot.lane.b32.xlu0 %v4821, 97
      %v4995 = vpop.permute.xlu0 %4994
      %4996 = vrot.lane.b32.xlu0 %v4822, 97
      %v4997 = vpop.permute.xlu0 %4996
      %4998 = vrot.lane.b32.xlu0 %v4823, 97
      %v4999 = vpop.permute.xlu0 %4998
      %v5000 = vsel %vm2154, %v4997, %v4999
      %v5001 = vsel %vm2154, %v4995, %v4997
      %v5002 = vsel %vm2154, %v4993, %v4995
      %v5003 = vsel %vm2154, %v4991, %v4993
      %v5004 = vsel %vm2154, %v4989, %v4991
      %v5005 = vsel %vm2154, %v4987, %v4989
      %v5006 = vsel %vm2154, %v4985, %v4987
      %v5007 = vsel %vm2154, %v4999, %v4985
      %v5008 = vmul.f32 %v5006, %v805
      %v5009 = vmul.f32 %v5005, %v806
      %v5010 = vmul.f32 %v5004, %v807
      %v5011 = vmul.f32 %v5003, %v808
      %v5012 = vmul.f32 %v5002, %v809
      %v5013 = vmul.f32 %v5001, %v810
      %v5014 = vmul.f32 %v5000, %v811
      %v5015 = vmul.f32 %v5007, %v812
      %5016 = vrot.lane.b32.xlu0 %v4816, 96
      %v5017 = vpop.permute.xlu0 %5016
      %5018 = vrot.lane.b32.xlu0 %v4817, 96
      %v5019 = vpop.permute.xlu0 %5018
      %5020 = vrot.lane.b32.xlu0 %v4818, 96
      %v5021 = vpop.permute.xlu0 %5020
      %5022 = vrot.lane.b32.xlu0 %v4819, 96
      %v5023 = vpop.permute.xlu0 %5022
      %5024 = vrot.lane.b32.xlu0 %v4820, 96
      %v5025 = vpop.permute.xlu0 %5024
      %5026 = vrot.lane.b32.xlu0 %v4821, 96
      %v5027 = vpop.permute.xlu0 %5026
      %5028 = vrot.lane.b32.xlu0 %v4822, 96
      %v5029 = vpop.permute.xlu0 %5028
      %5030 = vrot.lane.b32.xlu0 %v4823, 96
      %v5031 = vpop.permute.xlu0 %5030
      %v5032 = vsel %vm2219, %v5029, %v5031
      %v5033 = vsel %vm2219, %v5027, %v5029
      %v5034 = vsel %vm2219, %v5025, %v5027
      %v5035 = vsel %vm2219, %v5023, %v5025
      %v5036 = vsel %vm2219, %v5021, %v5023
      %v5037 = vsel %vm2219, %v5019, %v5021
      %v5038 = vsel %vm2219, %v5017, %v5019
      %v5039 = vsel %vm2219, %v5031, %v5017
      %v5040 = vmul.f32 %v5038, %v821
      %v5041 = vmul.f32 %v5037, %v822
      %v5042 = vmul.f32 %v5036, %v823
      %v5043 = vmul.f32 %v5035, %v824
      %v5044 = vmul.f32 %v5034, %v825
      %v5045 = vmul.f32 %v5033, %v826
      %v5046 = vmul.f32 %v5032, %v827
      %v5047 = vmul.f32 %v5039, %v828
      %5048 = vrot.lane.b32.xlu0 %v4816, 95
      %v5049 = vpop.permute.xlu0 %5048
      %5050 = vrot.lane.b32.xlu0 %v4817, 95
      %v5051 = vpop.permute.xlu0 %5050
      %5052 = vrot.lane.b32.xlu0 %v4818, 95
      %v5053 = vpop.permute.xlu0 %5052
      %5054 = vrot.lane.b32.xlu0 %v4819, 95
      %v5055 = vpop.permute.xlu0 %5054
      %5056 = vrot.lane.b32.xlu0 %v4820, 95
      %v5057 = vpop.permute.xlu0 %5056
      %5058 = vrot.lane.b32.xlu0 %v4821, 95
      %v5059 = vpop.permute.xlu0 %5058
      %5060 = vrot.lane.b32.xlu0 %v4822, 95
      %v5061 = vpop.permute.xlu0 %5060
      %5062 = vrot.lane.b32.xlu0 %v4823, 95
      %v5063 = vpop.permute.xlu0 %5062
      %v5064 = vsel %vm2284, %v5061, %v5063
      %v5065 = vsel %vm2284, %v5059, %v5061
      %v5066 = vsel %vm2284, %v5057, %v5059
      %v5067 = vsel %vm2284, %v5055, %v5057
      %v5068 = vsel %vm2284, %v5053, %v5055
      %v5069 = vsel %vm2284, %v5051, %v5053
      %v5070 = vsel %vm2284, %v5049, %v5051
      %v5071 = vsel %vm2284, %v5063, %v5049
      %v5072 = vmul.f32 %v5070, %v845
      %v5073 = vmul.f32 %v5069, %v846
      %v5074 = vmul.f32 %v5068, %v847
      %v5075 = vmul.f32 %v5067, %v848
      %v5076 = vmul.f32 %v5066, %v849
      %v5077 = vmul.f32 %v5065, %v850
      %v5078 = vmul.f32 %v5064, %v851
      %v5079 = vmul.f32 %v5071, %v852
      %v5080 = vld [vmem:[%s13] sm:$0xf]
      %v5081 = vld [vmem:[%s13 + $0x4] sm:$0xf]
      %v5082 = vpack.c.bf16 %v4880, %v4848
      %v5083 = vpack.c.bf16 %v4881, %v4849
      %v5084 = vpack.c.bf16 %v4882, %v4850
      %v5085 = vpack.c.bf16 %v4883, %v4851
      %v5086 = vpack.c.bf16 %v4884, %v4852
      %v5087 = vpack.c.bf16 %v4885, %v4853
      %v5088 = vpack.c.bf16 %v4886, %v4854
      %v5089 = vpack.c.bf16 %v4887, %v4855
      %v5090 = vpack.c.bf16 %v4944, %v4912
      %v5091 = vpack.c.bf16 %v4945, %v4913
      %v5092 = vpack.c.bf16 %v4946, %v4914
      %v5093 = vpack.c.bf16 %v4947, %v4915
      %v5094 = vpack.c.bf16 %v4948, %v4916
      %v5095 = vpack.c.bf16 %v4949, %v4917
      %v5096 = vpack.c.bf16 %v4950, %v4918
      %v5097 = vpack.c.bf16 %v4951, %v4919
      %v5098 = vpack.c.bf16 %v4976, %v4816
      %v5099 = vpack.c.bf16 %v4977, %v4817
      %v5100 = vpack.c.bf16 %v4978, %v4818
      %v5101 = vpack.c.bf16 %v4979, %v4819
      %v5102 = vpack.c.bf16 %v4980, %v4820
      %v5103 = vpack.c.bf16 %v4981, %v4821
      %v5104 = vpack.c.bf16 %v4982, %v4822
      %v5105 = vpack.c.bf16 %v4983, %v4823
      %v5106 = vpack.c.bf16 %v5040, %v5008
      %v5107 = vpack.c.bf16 %v5041, %v5009
      %v5108 = vpack.c.bf16 %v5042, %v5010
      %v5109 = vpack.c.bf16 %v5043, %v5011
      %v5110 = vpack.c.bf16 %v5044, %v5012
      %v5111 = vpack.c.bf16 %v5045, %v5013
      %v5112 = vpack.c.bf16 %v5046, %v5014
      %v5113 = vpack.c.bf16 %v5047, %v5015
      %v5114 = vpack.c.bf16 %v5072, %v5072
      %v5115 = vpack.c.bf16 %v5073, %v5073
      %v5116 = vpack.c.bf16 %v5074, %v5074
      %v5117 = vpack.c.bf16 %v5075, %v5075
      %v5118 = vpack.c.bf16 %v5076, %v5076
      %v5119 = vpack.c.bf16 %v5077, %v5077
      %v5120 = vpack.c.bf16 %v5078, %v5078
      %v5121 = vpack.c.bf16 %v5079, %v5079
      %v5124 = vunpack.c.l.b16 %v5080
      %v5125 = vunpack.c.l.b16 %v5081
      %v5126 = vpack.c.b16 %v5125, %v5124
      %vm5127 = vcmask 588800
      %v5129 = vsel %vm5127, %v5126, 0
      %vm5131 = vcmask 1043456
      %v5133 = vsel %vm5131, %v5114, 0
      %v5136 = vsel %vm5131, %v5115, 0
      %v5139 = vsel %vm5131, %v5116, 0
      %v5142 = vsel %vm5131, %v5117, 0
      %v5145 = vsel %vm5131, %v5118, 0
      %v5148 = vsel %vm5131, %v5119, 0
      %v5151 = vsel %vm5131, %v5120, 0
      %v5154 = vsel %vm5131, %v5121, 0
      %5156 = vmatprep.subr.bf16.mxu0 0
      %5157 = vmatpush1.bf16.msra.mxu0 0
      %5158 = vmatprep.subr.bf16.mxu0 0
      %5159 = vmatpush1.bf16.msra.mxu0 0
      %5160 = vmatprep.subr.bf16.mxu0 0
      %5161 = vmatpush1.bf16.msra.mxu0 0
      %5162 = vmatprep.subr.bf16.mxu0 %v5136
      %5163 = vmatpush1.bf16.msra.mxu0 %v5133
      %5164 = vmatprep.subr.bf16.mxu0 %v5107
      %5165 = vmatpush1.bf16.msra.mxu0 %v5106
      %5166 = vmatprep.subr.bf16.mxu0 %v5099
      %5167 = vmatpush1.bf16.msra.mxu0 %v5098
      %5168 = vmatprep.subr.bf16.mxu0 %v5091
      %5169 = vmatpush1.bf16.msra.mxu0 %v5090
      %5170 = vmatprep.subr.bf16.mxu0 %v5083
      %5171 = vmatpush1.bf16.msra.mxu0 %v5082
      %5172 = vmatprep.subr.bf16.mxu0 0
      %5173 = vmatpush2.bf16.msra.mxu0 0
      %5174 = vmatprep.subr.bf16.mxu0 0
      %5175 = vmatpush2.bf16.msra.mxu0 0
      %5176 = vmatprep.subr.bf16.mxu0 0
      %5177 = vmatpush2.bf16.msra.mxu0 0
      %5178 = vmatprep.subr.bf16.mxu0 0
      %5179 = vmatpush2.bf16.msra.mxu0 0
      %5180 = vmatprep.subr.bf16.mxu0 0
      %5181 = vmatpush2.bf16.msra.mxu0 0
      %5182 = vmatprep.subr.bf16.mxu0 0
      %5183 = vmatpush2.bf16.msra.mxu0 0
      %5184 = vmatprep.subr.bf16.mxu0 0
      %5185 = vmatpush2.bf16.msra.mxu0 0
      %5186 = vmatprep.subr.bf16.mxu0 0
      %5187 = vmatpush2.bf16.msra.mxu0 0
      %5188 = vmatprep.mubr.bf16.mxu0 0
      %5189 = vmatmul.mubr.bf16.gmra.mxu0 %v5129
      %v5190 = vpop.f32.mrf.mxu0
      %v5191 = vadd.f32 0.0, %v5190
      %v5192 = vpop.f32.mrf.mxu0
      %v5193 = vadd.f32 0.0, %v5192
      %v5194 = vpop.f32.mrf.mxu0
      %v5195 = vadd.f32 0.0, %v5194
      %v5196 = vpop.f32.mrf.mxu0
      %v5197 = vadd.f32 0.0, %v5196
      %5198 = vdwg.mxu0
      %5199 = vmatprep.subr.bf16.mxu0 0
      %5200 = vmatpush1.bf16.msra.mxu0 0
      %5201 = vmatprep.subr.bf16.mxu0 0
      %5202 = vmatpush1.bf16.msra.mxu0 0
      %5203 = vmatprep.subr.bf16.mxu0 0
      %5204 = vmatpush1.bf16.msra.mxu0 0
      %5205 = vmatprep.subr.bf16.mxu0 %v5142
      %5206 = vmatpush1.bf16.msra.mxu0 %v5139
      %5207 = vmatprep.subr.bf16.mxu0 %v5109
      %5208 = vmatpush1.bf16.msra.mxu0 %v5108
      %5209 = vmatprep.subr.bf16.mxu0 %v5101
      %5210 = vmatpush1.bf16.msra.mxu0 %v5100
      %5211 = vmatprep.subr.bf16.mxu0 %v5093
      %5212 = vmatpush1.bf16.msra.mxu0 %v5092
      %5213 = vmatprep.subr.bf16.mxu0 %v5085
      %5214 = vmatpush1.bf16.msra.mxu0 %v5084
      %5215 = vmatprep.subr.bf16.mxu0 0
      %5216 = vmatpush2.bf16.msra.mxu0 0
      %5217 = vmatprep.subr.bf16.mxu0 0
      %5218 = vmatpush2.bf16.msra.mxu0 0
      %5219 = vmatprep.subr.bf16.mxu0 0
      %5220 = vmatpush2.bf16.msra.mxu0 0
      %5221 = vmatprep.subr.bf16.mxu0 0
      %5222 = vmatpush2.bf16.msra.mxu0 0
      %5223 = vmatprep.subr.bf16.mxu0 0
      %5224 = vmatpush2.bf16.msra.mxu0 0
      %5225 = vmatprep.subr.bf16.mxu0 0
      %5226 = vmatpush2.bf16.msra.mxu0 0
      %5227 = vmatprep.subr.bf16.mxu0 0
      %5228 = vmatpush2.bf16.msra.mxu0 0
      %5229 = vmatprep.subr.bf16.mxu0 0
      %5230 = vmatpush2.bf16.msra.mxu0 0
      %5231 = vmatprep.mubr.bf16.mxu0 0
      %5232 = vmatmul.mubr.bf16.gmra.mxu0 %v5129
      %v5233 = vpop.f32.mrf.mxu0
      %v5234 = vadd.f32 0.0, %v5233
      %v5235 = vpop.f32.mrf.mxu0
      %v5236 = vadd.f32 0.0, %v5235
      %v5237 = vpop.f32.mrf.mxu0
      %v5238 = vadd.f32 0.0, %v5237
      %v5239 = vpop.f32.mrf.mxu0
      %v5240 = vadd.f32 0.0, %v5239
      %5241 = vdwg.mxu0
      %5242 = vmatprep.subr.bf16.mxu0 0
      %5243 = vmatpush1.bf16.msra.mxu0 0
      %5244 = vmatprep.subr.bf16.mxu0 0
      %5245 = vmatpush1.bf16.msra.mxu0 0
      %5246 = vmatprep.subr.bf16.mxu0 0
      %5247 = vmatpush1.bf16.msra.mxu0 0
      %5248 = vmatprep.subr.bf16.mxu0 %v5148
      %5249 = vmatpush1.bf16.msra.mxu0 %v5145
      %5250 = vmatprep.subr.bf16.mxu0 %v5111
      %5251 = vmatpush1.bf16.msra.mxu0 %v5110
      %5252 = vmatprep.subr.bf16.mxu0 %v5103
      %5253 = vmatpush1.bf16.msra.mxu0 %v5102
      %5254 = vmatprep.subr.bf16.mxu0 %v5095
      %5255 = vmatpush1.bf16.msra.mxu0 %v5094
      %5256 = vmatprep.subr.bf16.mxu0 %v5087
      %5257 = vmatpush1.bf16.msra.mxu0 %v5086
      %5258 = vmatprep.subr.bf16.mxu0 0
      %5259 = vmatpush2.bf16.msra.mxu0 0
      %5260 = vmatprep.subr.bf16.mxu0 0
      %5261 = vmatpush2.bf16.msra.mxu0 0
      %5262 = vmatprep.subr.bf16.mxu0 0
      %5263 = vmatpush2.bf16.msra.mxu0 0
      %5264 = vmatprep.subr.bf16.mxu0 0
      %5265 = vmatpush2.bf16.msra.mxu0 0
      %5266 = vmatprep.subr.bf16.mxu0 0
      %5267 = vmatpush2.bf16.msra.mxu0 0
      %5268 = vmatprep.subr.bf16.mxu0 0
      %5269 = vmatpush2.bf16.msra.mxu0 0
      %5270 = vmatprep.subr.bf16.mxu0 0
      %5271 = vmatpush2.bf16.msra.mxu0 0
      %5272 = vmatprep.subr.bf16.mxu0 0
      %5273 = vmatpush2.bf16.msra.mxu0 0
      %5274 = vmatprep.mubr.bf16.mxu0 0
      %5275 = vmatmul.mubr.bf16.gmra.mxu0 %v5129
      %v5276 = vpop.f32.mrf.mxu0
      %v5277 = vadd.f32 0.0, %v5276
      %v5278 = vpop.f32.mrf.mxu0
      %v5279 = vadd.f32 0.0, %v5278
      %v5280 = vpop.f32.mrf.mxu0
      %v5281 = vadd.f32 0.0, %v5280
      %v5282 = vpop.f32.mrf.mxu0
      %v5283 = vadd.f32 0.0, %v5282
      %5284 = vdwg.mxu0
      %5285 = vmatprep.subr.bf16.mxu0 0
      %5286 = vmatpush1.bf16.msra.mxu0 0
      %5287 = vmatprep.subr.bf16.mxu0 0
      %5288 = vmatpush1.bf16.msra.mxu0 0
      %5289 = vmatprep.subr.bf16.mxu0 0
      %5290 = vmatpush1.bf16.msra.mxu0 0
      %5291 = vmatprep.subr.bf16.mxu0 %v5154
      %5292 = vmatpush1.bf16.msra.mxu0 %v5151
      %5293 = vmatprep.subr.bf16.mxu0 %v5113
      %5294 = vmatpush1.bf16.msra.mxu0 %v5112
      %5295 = vmatprep.subr.bf16.mxu0 %v5105
      %5296 = vmatpush1.bf16.msra.mxu0 %v5104
      %5297 = vmatprep.subr.bf16.mxu0 %v5097
      %5298 = vmatpush1.bf16.msra.mxu0 %v5096
      %5299 = vmatprep.subr.bf16.mxu0 %v5089
      %5300 = vmatpush1.bf16.msra.mxu0 %v5088
      %5301 = vmatprep.subr.bf16.mxu0 0
      %5302 = vmatpush2.bf16.msra.mxu0 0
      %5303 = vmatprep.subr.bf16.mxu0 0
      %5304 = vmatpush2.bf16.msra.mxu0 0
      %5305 = vmatprep.subr.bf16.mxu0 0
      %5306 = vmatpush2.bf16.msra.mxu0 0
      %5307 = vmatprep.subr.bf16.mxu0 0
      %5308 = vmatpush2.bf16.msra.mxu0 0
      %5309 = vmatprep.subr.bf16.mxu0 0
      %5310 = vmatpush2.bf16.msra.mxu0 0
      %5311 = vmatprep.subr.bf16.mxu0 0
      %5312 = vmatpush2.bf16.msra.mxu0 0
      %5313 = vmatprep.subr.bf16.mxu0 0
      %5314 = vmatpush2.bf16.msra.mxu0 0
      %5315 = vmatprep.subr.bf16.mxu0 0
      %5316 = vmatpush2.bf16.msra.mxu0 0
      %5317 = vmatprep.mubr.bf16.mxu0 0
      %5318 = vmatmul.mubr.bf16.gmra.mxu0 %v5129
      %v5319 = vpop.f32.mrf.mxu0
      %v5320 = vadd.f32 0.0, %v5319
      %v5321 = vpop.f32.mrf.mxu0
      %v5322 = vadd.f32 0.0, %v5321
      %v5323 = vpop.f32.mrf.mxu0
      %v5324 = vadd.f32 0.0, %v5323
      %v5325 = vpop.f32.mrf.mxu0
      %v5326 = vadd.f32 0.0, %v5325
      %5327 = vdwg.mxu0
      %v5328 = vadd.f32 %v5191, %v5193
      %v5329 = vadd.f32 %v5328, %v5234
      %v5330 = vadd.f32 %v5329, %v5236
      %v5331 = vadd.f32 %v5330, %v5277
      %v5332 = vadd.f32 %v5331, %v5279
      %v5333 = vadd.f32 %v5332, %v5320
      %v5334 = vadd.f32 %v5333, %v5322
      %v5335 = vadd.f32 %v5334, %v5195
      %v5336 = vadd.f32 %v5335, %v5197
      %v5337 = vadd.f32 %v5336, %v5238
      %v5338 = vadd.f32 %v5337, %v5240
      %v5339 = vadd.f32 %v5338, %v5281
      %v5340 = vadd.f32 %v5339, %v5283
      %v5341 = vadd.f32 %v5340, %v5324
      %v5342 = vadd.f32 %v5341, %v5326
      %5343 = vadd.xlane.f32.xlu0 %v5342
      %v5344 = vpop.xlane.xlu0 %5343
      %v5345 = vrot.slane %v5344, 4
      %v5346 = vadd.f32 %v5344, %v5345
      %v5347 = vrot.slane %v5346, 2
      %v5348 = vadd.f32 %v5346, %v5347
      %v5349 = vrot.slane %v5348, 1
      %v5350 = vadd.f32 %v5348, %v5349
      %s5351 = vtos %v5350
      %v5352 = vrcp.pop 16384.0
      %s5353 = vtos %v5352
      %s5354 = smul.f32 %s5351, %s5353
      %v5355 = vstv %s5354
      %v5356 = vsub.f32 %v5191, %v5355
      %v5357 = vsub.f32 %v5193, %v5355
      %v5358 = vsub.f32 %v5234, %v5355
      %v5359 = vsub.f32 %v5236, %v5355
      %v5360 = vsub.f32 %v5277, %v5355
      %v5361 = vsub.f32 %v5279, %v5355
      %v5362 = vsub.f32 %v5320, %v5355
      %v5363 = vsub.f32 %v5322, %v5355
      %v5364 = vsub.f32 %v5195, %v5355
      %v5365 = vsub.f32 %v5197, %v5355
      %v5366 = vsub.f32 %v5238, %v5355
      %v5367 = vsub.f32 %v5240, %v5355
      %v5368 = vsub.f32 %v5281, %v5355
      %v5369 = vsub.f32 %v5283, %v5355
      %v5370 = vsub.f32 %v5324, %v5355
      %v5371 = vsub.f32 %v5326, %v5355
      %v5372 = vmul.f32 %v5356, %v5356
      %v5373 = vmul.f32 %v5357, %v5357
      %v5374 = vmul.f32 %v5358, %v5358
      %v5375 = vmul.f32 %v5359, %v5359
      %v5376 = vmul.f32 %v5360, %v5360
      %v5377 = vmul.f32 %v5361, %v5361
      %v5378 = vmul.f32 %v5362, %v5362
      %v5379 = vmul.f32 %v5363, %v5363
      %v5380 = vmul.f32 %v5364, %v5364
      %v5381 = vmul.f32 %v5365, %v5365
      %v5382 = vmul.f32 %v5366, %v5366
      %v5383 = vmul.f32 %v5367, %v5367
      %v5384 = vmul.f32 %v5368, %v5368
      %v5385 = vmul.f32 %v5369, %v5369
      %v5386 = vmul.f32 %v5370, %v5370
      %v5387 = vmul.f32 %v5371, %v5371
      %v5388 = vadd.f32 %v5372, %v5373
      %v5389 = vadd.f32 %v5388, %v5374
      %v5390 = vadd.f32 %v5389, %v5375
      %v5391 = vadd.f32 %v5390, %v5376
      %v5392 = vadd.f32 %v5391, %v5377
      %v5393 = vadd.f32 %v5392, %v5378
      %v5394 = vadd.f32 %v5393, %v5379
      %v5395 = vadd.f32 %v5394, %v5380
      %v5396 = vadd.f32 %v5395, %v5381
      %v5397 = vadd.f32 %v5396, %v5382
      %v5398 = vadd.f32 %v5397, %v5383
      %v5399 = vadd.f32 %v5398, %v5384
      %v5400 = vadd.f32 %v5399, %v5385
      %v5401 = vadd.f32 %v5400, %v5386
      %v5402 = vadd.f32 %v5401, %v5387
      %5403 = vadd.xlane.f32.xlu0 %v5402
      %v5404 = vpop.xlane.xlu0 %5403
      %v5405 = vrot.slane %v5404, 4
      %v5406 = vadd.f32 %v5404, %v5405
      %v5407 = vrot.slane %v5406, 2
      %v5408 = vadd.f32 %v5406, %v5407
      %v5409 = vrot.slane %v5408, 1
      %v5410 = vadd.f32 %v5408, %v5409
      %s5411 = vtos %v5410
      %v5412 = vrcp.pop 16384.0
      %s5413 = vtos %v5412
      %s5414 = smul.f32 %s5411, %s5413
      %s5415 = sadd.f32 %s5414, 1e-05
      %v5416 = vstv %s5415
      %v5417 = vrsqrt.pop %v5416
      %s5418 = vtos %v5417
      %v5419 = vstv %s5418
      %v5420 = vmul.f32 %v5356, %v5419
      %v5421 = vmul.f32 %v5357, %v5419
      %v5422 = vmul.f32 %v5358, %v5419
      %v5423 = vmul.f32 %v5359, %v5419
      %v5424 = vmul.f32 %v5360, %v5419
      %v5425 = vmul.f32 %v5361, %v5419
      %v5426 = vmul.f32 %v5362, %v5419
      %v5427 = vmul.f32 %v5363, %v5419
      %v5428 = vmul.f32 %v5364, %v5419
      %v5429 = vmul.f32 %v5365, %v5419
      %v5430 = vmul.f32 %v5366, %v5419
      %v5431 = vmul.f32 %v5367, %v5419
      %v5432 = vmul.f32 %v5368, %v5419
      %v5433 = vmul.f32 %v5369, %v5419
      %v5434 = vmul.f32 %v5370, %v5419
      %v5435 = vmul.f32 %v5371, %v5419
      %v5436 = vld [vmem:[%s14] sm:$0xff]
      %v5437 = vld [vmem:[%s14 + $0x8] sm:$0xff]
      %5439 = vset.pattern.permute.xlu0 0
      %5440 = vperm.xlu0 %5439, %v5436
      %v5441 = vpop.permute.xlu0 %5440
      %5444 = vset.pattern.permute.xlu0 0
      %5445 = vperm.xlu0 %5444, %v5437
      %v5446 = vpop.permute.xlu0 %5445
      %v5448 = vmul.f32 %v5420, %v5441
      %v5449 = vmul.f32 %v5421, %v5441
      %v5450 = vmul.f32 %v5422, %v5441
      %v5451 = vmul.f32 %v5423, %v5441
      %v5452 = vmul.f32 %v5424, %v5441
      %v5453 = vmul.f32 %v5425, %v5441
      %v5454 = vmul.f32 %v5426, %v5441
      %v5455 = vmul.f32 %v5427, %v5441
      %v5456 = vmul.f32 %v5428, %v5446
      %v5457 = vmul.f32 %v5429, %v5446
      %v5458 = vmul.f32 %v5430, %v5446
      %v5459 = vmul.f32 %v5431, %v5446
      %v5460 = vmul.f32 %v5432, %v5446
      %v5461 = vmul.f32 %v5433, %v5446
      %v5462 = vmul.f32 %v5434, %v5446
      %v5463 = vmul.f32 %v5435, %v5446
      %v5464 = vld [vmem:[%s15] sm:$0xff]
      %v5465 = vld [vmem:[%s15 + $0x8] sm:$0xff]
      %5467 = vset.pattern.permute.xlu0 0
      %5468 = vperm.xlu0 %5467, %v5464
      %v5469 = vpop.permute.xlu0 %5468
      %5472 = vset.pattern.permute.xlu0 0
      %5473 = vperm.xlu0 %5472, %v5465
      %v5474 = vpop.permute.xlu0 %5473
      %v5476 = vadd.f32 %v5448, %v5469
      %v5477 = vadd.f32 %v5449, %v5469
      %v5478 = vadd.f32 %v5450, %v5469
      %v5479 = vadd.f32 %v5451, %v5469
      %v5480 = vadd.f32 %v5452, %v5469
      %v5481 = vadd.f32 %v5453, %v5469
      %v5482 = vadd.f32 %v5454, %v5469
      %v5483 = vadd.f32 %v5455, %v5469
      %v5484 = vadd.f32 %v5456, %v5474
      %v5485 = vadd.f32 %v5457, %v5474
      %v5486 = vadd.f32 %v5458, %v5474
      %v5487 = vadd.f32 %v5459, %v5474
      %v5488 = vadd.f32 %v5460, %v5474
      %v5489 = vadd.f32 %v5461, %v5474
      %v5490 = vadd.f32 %v5462, %v5474
      %v5491 = vadd.f32 %v5463, %v5474
      %v5492 = vld [vmem:[%s604] sm:$0x1]
      %v5493 = vxor.u32 %v5492, 2147483648
      %v5494 = vmul.f32 %v5493, 1.442695
      %v5495 = vpow.pop %v5494
      %v5496 = vadd.f32 %v5495, 1.0
      %v5497 = vrcp.pop %v5496
      %v5498 = vmul.f32 1.0, %v5497
      %v5499 = vmul.f32 %v5492, %v5498
      %v5500 = vld [vmem:[%s16] sm:$0xff]
      %v5501 = vld [vmem:[%s16 + $0x8] sm:$0xff]
      %v5503 = vlaneseq
      %v5504 = vshrl.u32 %v5503, 7
      %v5505 = vsub.s32 0, %v5504
      %v5506 = vrot.slane %v5499, %v5505
      %v5508 = vmul.f32 %v5500, %v5506
      %v5509 = vmul.f32 %v5501, %v5506
      %vm5510 = vcmask 261120
      %v5511 = vsel %vm5510, %v5508, 0.0
      %5512 = vadd.xlane.f32.xlu0 %v5511
      %v5513 = vpop.xlane.xlu0 %5512
      %v5514 = vsel %vm5510, %v5509, 0.0
      %5515 = vadd.xlane.f32.xlu0 %v5514
      %v5516 = vpop.xlane.xlu0 %5515
      %v5517 = vld [vmem:[%s17] sm:$0xff]
      %v5518 = vld [vmem:[%s17 + $0x8] sm:$0xff]
      %v5519 = vadd.f32 %v5513, %v5517
      %v5520 = vadd.f32 %v5516, %v5518
      %5522 = vset.pattern.permute.xlu0 0
      %5523 = vperm.xlu0 %5522, %v5519
      %v5524 = vpop.permute.xlu0 %5523
      %5527 = vset.pattern.permute.xlu0 0
      %5528 = vperm.xlu0 %5527, %v5520
      %v5529 = vpop.permute.xlu0 %5528
      %v5531 = vadd.f32 %v5476, %v5524
      %v5532 = vadd.f32 %v5477, %v5524
      %v5533 = vadd.f32 %v5478, %v5524
      %v5534 = vadd.f32 %v5479, %v5524
      %v5535 = vadd.f32 %v5480, %v5524
      %v5536 = vadd.f32 %v5481, %v5524
      %v5537 = vadd.f32 %v5482, %v5524
      %v5538 = vadd.f32 %v5483, %v5524
      %v5539 = vadd.f32 %v5484, %v5529
      %v5540 = vadd.f32 %v5485, %v5529
      %v5541 = vadd.f32 %v5486, %v5529
      %v5542 = vadd.f32 %v5487, %v5529
      %v5543 = vadd.f32 %v5488, %v5529
      %v5544 = vadd.f32 %v5489, %v5529
      %v5545 = vadd.f32 %v5490, %v5529
      %v5546 = vadd.f32 %v5491, %v5529
      %5547 = vst [vmem:[%s609] sm:$0xff] %v5531
      %5548 = vst [vmem:[%s609 + $0x8] sm:$0xff] %v5532
      %5549 = vst [vmem:[%s609 + $0x10] sm:$0xff] %v5533
      %5550 = vst [vmem:[%s609 + $0x18] sm:$0xff] %v5534
      %5551 = vst [vmem:[%s609 + $0x20] sm:$0xff] %v5535
      %5552 = vst [vmem:[%s609 + $0x28] sm:$0xff] %v5536
      %5553 = vst [vmem:[%s609 + $0x30] sm:$0xff] %v5537
      %5554 = vst [vmem:[%s609 + $0x38] sm:$0xff] %v5538
      %5555 = vst [vmem:[%s609 + $0x40] sm:$0xff] %v5539
      %5556 = vst [vmem:[%s609 + $0x48] sm:$0xff] %v5540
      %5557 = vst [vmem:[%s609 + $0x50] sm:$0xff] %v5541
      %5558 = vst [vmem:[%s609 + $0x58] sm:$0xff] %v5542
      %5559 = vst [vmem:[%s609 + $0x60] sm:$0xff] %v5543
      %5560 = vst [vmem:[%s609 + $0x68] sm:$0xff] %v5544
      %5561 = vst [vmem:[%s609 + $0x70] sm:$0xff] %v5545
      %5562 = vst [vmem:[%s609 + $0x78] sm:$0xff] %v5546
      %p5563 = scmp.lt.s32.totalorder %s29, 1
      %s5564 = scalar_select %p5563, %s29, 1
      %s5565 = smul.addr %s5564, 16
      %s5566 = smul.addr %s5565, 8
      %s5567 = scalar_lea.vmem %s18, %s5566
      // Predicated region
      $region93: #{upblock_forward.1} parent=91 // pred_check
        %p5568 = pneg %p440
      $region94: #{upblock_forward.1} parent=91 // pred_check_branch
        %5570 = sbr.rel (%p5568) target = $region96
      $region95: #{upblock_forward.1} parent=91 // pred_region
        _
      $region96: #{upblock_forward.1} parent=91 // pred_fallthru
        _
    $region92: #{upblock_forward.1} parent=5 // pred_fallthru
      _
    %p5571 = scmp.le.s32.totalorder 2, %s24
    // Predicated region
    $region97: #{upblock_forward.1} parent=5 // pred_check
      %p5572 = pneg %p5571
    $region98: #{upblock_forward.1} parent=5 // pred_check_branch
      %5574 = sbr.rel (%p5572) target = $region100
    $region99: #{upblock_forward.1} parent=5 // pred_region
      %s5575 = ssub.s32 %s24, 2
      // Predicated region
      $region101: #{upblock_forward.1} parent=99 // pred_check
        %p5576 = pneg %p446
      $region102: #{upblock_forward.1} parent=99 // pred_check_branch
        %5578 = sbr.rel (%p5576) target = $region104
      $region103: #{upblock_forward.1} parent=99 // pred_region
        %p5579 = scmp.lt.s32.totalorder %s30, 1
        %s5580 = scalar_select %p5579, %s30, 1
        %s5581 = smul.addr %s5580, 16
        %s5582 = smul.addr %s5581, 8
        %s5583 = scalar_lea.vmem %s18, %s5582
      $region104: #{upblock_forward.1} parent=99 // pred_fallthru
        _
    $region100: #{upblock_forward.1} parent=5 // pred_fallthru
      _
  $region6: #{upblock_forward.1} parent=0 // loop_footer
    %s28 = sadd.s32 1, %s24
  $region7: #{upblock_forward.1} parent=0 // loop_footer_branch
    %23 = sbr.rel target = $region3
  $region8: #{upblock_forward.1} parent=0 // loop_exit
    _

</llo_original>
